<compile_context>
chip_gen: v5e
topology: v5e:2x2
jax: 0.10.0
libtpu: 0.0.40
codegen_flags: <defaults>
</compile_context>

<pallas_src>
import functools
import math

import numpy as np

import jax
import jax.numpy as jnp
from jax.experimental import pallas as pl
from jax.experimental.pallas import tpu as pltpu


# --------------------------------------------------------------------------- #
#                          Fused forward-pass kernel                           #
# --------------------------------------------------------------------------- #
def _fused_agent_attention_kernel(
        x_ref, wq_ref, wk_ref, wv_ref, pool_ref, pb_ref, ab_ref,
        wdwc_ref, bdwc_ref, wproj_ref, bproj_ref, o_ref,
        *, num_heads, head_dim, img_w, scale):
    """One grid step == one batch element. All tensors are VMEM resident.

    Shapes inside the kernel (example config: N=64, C=32, A=16, H=4, d=8):
      x:(N,C)  wq/wk/wv:(C,C)  pool:(A,N)  pb:(H,A,N)  ab:(H,N,A)
      wdwc:(9,C)  bdwc:(1,C)  wproj:(C,C)  bproj:(1,C)  out:(N,C)
    """
    f32 = jnp.float32
    n_tok, _ = x_ref.shape

    x = x_ref[...].astype(f32)
    # qkv projection (qkv_bias=False in the reference module).
    q = jnp.dot(x, wq_ref[...].astype(f32), preferred_element_type=f32)
    k = jnp.dot(x, wk_ref[...].astype(f32), preferred_element_type=f32)
    v = jnp.dot(x, wv_ref[...].astype(f32), preferred_element_type=f32)

    # Agent tokens = AdaptiveAvgPool2d(q) expressed as an (A, N) matmul.
    # (Pooling uses the UN-scaled q, matching the PyTorch module.)
    agent = jnp.dot(pool_ref[...].astype(f32), q, preferred_element_type=f32)

    # Pre-scale once instead of scaling every per-head score matrix:
    #   stage 1: (agent @ (k*scale)^T)  ==  (agent @ k^T) * scale
    #   stage 2: ((q*scale) @ agent^T)  ==  (q @ agent^T) * scale
    q_s = q * scale
    k_s = k * scale

    # -------------------- two-stage agent attention (all heads) ------------ #
    contract_last = (((1,), (1,)), ((), ()))   # contract last axis of both
    head_outs = []
    for h in range(num_heads):
        sl = slice(h * head_dim, (h + 1) * head_dim)
        qh, kh, vh, ah = q_s[:, sl], k_s[:, sl], v[:, sl], agent[:, sl]

        # stage 1: agent aggregation, softmax over keys (last axis)
        s1 = jax.lax.dot_general(ah, kh, contract_last,
                                 preferred_element_type=f32)
        s1 = s1 + pb_ref[h].astype(f32)                       # (A, N)
        s1 = s1 - jnp.max(s1, axis=-1, keepdims=True)
        e1 = jnp.exp(s1)
        p1 = e1 * pl.reciprocal(jnp.sum(e1, axis=-1, keepdims=True),
                                approx=True)
        agent_v = jnp.dot(p1, vh, preferred_element_type=f32)  # (A, d)

        # stage 2: agent broadcast, softmax over agents (last axis)
        s2 = jax.lax.dot_general(qh, ah, contract_last,
                                 preferred_element_type=f32)
        s2 = s2 + ab_ref[h].astype(f32)                       # (N, A)
        s2 = s2 - jnp.max(s2, axis=-1, keepdims=True)
        e2 = jnp.exp(s2)
        p2 = e2 * pl.reciprocal(jnp.sum(e2, axis=-1, keepdims=True),
                                approx=True)
        head_outs.append(jnp.dot(p2, agent_v, preferred_element_type=f32))

    x_attn = jnp.concatenate(head_outs, axis=-1)              # (N, C)

    # ---------------- depthwise 3x3 conv on v + residual ------------------- #
    # v is (N, C) with N = H*W row-major. A (di, dj) spatial shift is a flat
    # shift of di*W + dj implemented with pltpu.roll (XLU) + boundary masks.
    wdwc = wdwc_ref[...].astype(f32)                          # (9, C)
    n_flat = jax.lax.broadcasted_iota(jnp.int32, (n_tok, 1), 0)
    col = n_flat % img_w
    acc = x_attn + bdwc_ref[...].astype(f32)                  # residual + bias
    for di in (-1, 0, 1):
        for dj in (-1, 0, 1):
            tap = (di + 1) * 3 + (dj + 1)
            w_tap = wdwc[tap:tap + 1, :]                      # (1, C)
            s = di * img_w + dj
            if s == 0:
                acc = acc + v * w_tap
                continue
            shifted = pltpu.roll(v, shift=(-s) % n_tok, axis=0)  # out[n]=v[n+s]
            valid = (n_flat + s >= 0) & (n_flat + s < n_tok)     # row bounds
            if dj != 0:
                valid = valid & (col + dj >= 0) & (col + dj < img_w)  # col bounds
            acc = acc + shifted * valid.astype(f32) * w_tap

    # ---------------------------- output projection ------------------------ #
    y = jnp.dot(acc, wproj_ref[...].astype(f32), preferred_element_type=f32)
    o_ref[...] = (y + bproj_ref[...].astype(f32)).astype(o_ref.dtype)


# --------------------------------------------------------------------------- #
#                         Parameter-only glue (run once)                       #
# --------------------------------------------------------------------------- #
def _adaptive_pool_matrix(in_size, out_size):
    """Row-stochastic (out, in) matrix replicating AdaptiveAvgPool1d."""
    m = np.zeros((out_size, in_size), np.float32)
    for o in range(out_size):
        s = (o * in_size) // out_size
        e = -((-(o + 1) * in_size) // out_size)   # ceil
        m[o, s:e] = 1.0 / (e - s)
    return m


def _bias_tables(params, num_heads, agent_num, window, n):
    A = agent_num
    # TODO(synk): jax.image.resize 'bilinear' may differ slightly from torch
    # F.interpolate(mode='bilinear', align_corners=False) corner handling.
    pb1 = jax.image.resize(params["an_bias"], (num_heads, A, window, window),
                           method="bilinear").reshape(num_heads, A, n)
    pb2 = (params["ah_bias"] + params["aw_bias"]).reshape(num_heads, A, n)
    ab1 = jax.image.resize(params["na_bias"], (num_heads, A, window, window),
                           method="bilinear").reshape(num_heads, A, n)
    ab1 = ab1.transpose(0, 2, 1)
    ab2 = (params["ha_bias"] + params["wa_bias"]).reshape(num_heads, n, A)
    return pb1 + pb2, ab1 + ab2                   # (H, A, N), (H, N, A)


# --------------------------------------------------------------------------- #
#                                Forward wrapper                               #
# --------------------------------------------------------------------------- #
def agent_attention_forward(x, params, *, num_heads, agent_num, window):
    b, n, c = x.shape
    h = w = int(round(math.sqrt(n)))
    head_dim = c // num_heads
    scale = head_dim ** (-0.5)
    A = agent_num
    p = int(round(math.sqrt(A)))

    pos_bias, agent_bias = _bias_tables(params, num_heads, A, window, n)
    pool_mat = jnp.asarray(
        np.kron(_adaptive_pool_matrix(h, p), _adaptive_pool_matrix(w, p)),
        x.dtype)                                               # (A, N)

    wq = params["w_qkv"][:, :c]
    wk = params["w_qkv"][:, c:2 * c]
    wv = params["w_qkv"][:, 2 * c:]

    kernel = functools.partial(
        _fused_agent_attention_kernel,
        num_heads=num_heads, head_dim=head_dim, img_w=w, scale=scale)

    full2d = lambda i: (0, 0)
    full3d = lambda i: (0, 0, 0)
    per_batch = lambda i: (i, 0, 0)

    # TODO(synk): attn_drop / proj_drop are identity (p=0.0, eval mode).
    return pl.pallas_call(
        kernel,
        out_shape=jax.ShapeDtypeStruct((b, n, c), x.dtype),
        grid=(b,),
        in_specs=[
            pl.BlockSpec((None, n, c), per_batch),          # x  (per batch)
            pl.BlockSpec((c, c), full2d),                   # wq
            pl.BlockSpec((c, c), full2d),                   # wk
            pl.BlockSpec((c, c), full2d),                   # wv
            pl.BlockSpec((A, n), full2d),                   # pool matrix
            pl.BlockSpec((num_heads, A, n), full3d),        # position bias
            pl.BlockSpec((num_heads, n, A), full3d),        # agent bias
            pl.BlockSpec((9, c), full2d),                   # dwc taps
            pl.BlockSpec((1, c), full2d),                   # dwc bias
            pl.BlockSpec((c, c), full2d),                   # proj weight
            pl.BlockSpec((1, c), full2d),                   # proj bias
        ],
        out_specs=pl.BlockSpec((None, n, c), per_batch),
        compiler_params=pltpu.CompilerParams(
            dimension_semantics=("parallel",)),
    )(x, wq, wk, wv, pool_mat, pos_bias, agent_bias,
      params["w_dwc"], params["b_dwc"].reshape(1, c),
      params["w_proj"], params["b_proj"].reshape(1, c))


# --------------------------------------------------------------------------- #
#                     Pure-JAX reference (correctness check)                   #
# --------------------------------------------------------------------------- #
def agent_attention_reference(x, params, *, num_heads, agent_num, window):
    b, n, c = x.shape
    h = w = int(round(math.sqrt(n)))
    d = c // num_heads
    scale = d ** (-0.5)
    A = agent_num
    p = int(round(math.sqrt(A)))

    qkv = x @ params["w_qkv"]
    q, k, v = qkv[..., :c], qkv[..., c:2 * c], qkv[..., 2 * c:]
    pool_mat = jnp.asarray(
        np.kron(_adaptive_pool_matrix(h, p), _adaptive_pool_matrix(w, p)),
        x.dtype)
    agent = jnp.einsum("an,bnc->bac", pool_mat, q)

    qh = q.reshape(b, n, num_heads, d).transpose(0, 2, 1, 3)
    kh = k.reshape(b, n, num_heads, d).transpose(0, 2, 1, 3)
    vh = v.reshape(b, n, num_heads, d).transpose(0, 2, 1, 3)
    ah = agent.reshape(b, A, num_heads, d).transpose(0, 2, 1, 3)

    pos_bias, agent_bias = _bias_tables(params, num_heads, A, window, n)

    attn1 = jax.nn.softmax(
        jnp.einsum("bhad,bhnd->bhan", ah * scale, kh) + pos_bias[None], axis=-1)
    agent_v = jnp.einsum("bhan,bhnd->bhad", attn1, vh)
    attn2 = jax.nn.softmax(
        jnp.einsum("bhnd,bhad->bhna", qh * scale, ah) + agent_bias[None], axis=-1)
    x_attn = jnp.einsum("bhna,bhad->bhnd", attn2, agent_v)
    x_attn = x_attn.transpose(0, 2, 1, 3).reshape(b, n, c)

    v_img = v.reshape(b, h, w, c)
    vp = jnp.pad(v_img, ((0, 0), (1, 1), (1, 1), (0, 0)))
    dwc = jnp.zeros_like(v_img) + params["b_dwc"]
    for ki in range(3):
        for kj in range(3):
            dwc = dwc + vp[:, ki:ki + h, kj:kj + w, :] * params["w_dwc"][ki * 3 + kj]
    x_sum = x_attn + dwc.reshape(b, n, c)
    return x_sum @ params["w_proj"] + params["b_proj"]


# --------------------------------------------------------------------------- #
#                               Parameter init                                 #
# --------------------------------------------------------------------------- #
def init_params(key, dim, num_heads, agent_num, window):
    ks = jax.random.split(key, 11)

    def tn(k, shape, std=0.02):
        return std * jax.random.truncated_normal(k, -2.0, 2.0, shape, jnp.float32)

    return {
        "w_qkv": 0.05 * jax.random.normal(ks[0], (dim, 3 * dim), jnp.float32),
        "w_proj": 0.05 * jax.random.normal(ks[1], (dim, dim), jnp.float32),
        "b_proj": 0.01 * jax.random.normal(ks[2], (dim,), jnp.float32),
        "w_dwc": 0.1 * jax.random.normal(ks[3], (9, dim), jnp.float32),  # 3x3 taps x C
        "b_dwc": 0.01 * jax.random.normal(ks[4], (dim,), jnp.float32),
        "an_bias": tn(ks[5], (num_heads, agent_num, 7, 7)),
        "na_bias": tn(ks[6], (num_heads, agent_num, 7, 7)),
        "ah_bias": tn(ks[7], (num_heads, agent_num, window, 1)),
        "aw_bias": tn(ks[8], (num_heads, agent_num, 1, window)),
        "ha_bias": tn(ks[9], (num_heads, window, 1, agent_num)),
        "wa_bias": tn(ks[10], (num_heads, 1, window, agent_num)),
    }


if __name__ == "__main__":
    dim, num_heads, window, agent_num = 32, 4, 8, 16   # n = window^2 = 64, pool 4x4
    batch = 2
    n = window * window

    key = jax.random.PRNGKey(0)
    kx, kp = jax.random.split(key)
    x = jax.random.normal(kx, (batch, n, dim), jnp.float32)
    params = init_params(kp, dim, num_heads, agent_num, window)

    fwd = jax.jit(functools.partial(agent_attention_forward, num_heads=num_heads,
                                    agent_num=agent_num, window=window))
    out = jax.block_until_ready(fwd(x, params))
    assert out.shape == (batch, n, dim), out.shape
    assert bool(jnp.all(jnp.isfinite(out)))

    ref = agent_attention_reference(x, params, num_heads=num_heads,
                                    agent_num=agent_num, window=window)
    max_err = float(jnp.max(jnp.abs(out - ref)))
    assert max_err < 2e-2, f"max abs err vs reference: {max_err}"
    print("KERNEL_OK")
</pallas_src>

<mosaic_0001>
module attributes {stable_mosaic.version = 11 : i64} {
  func.func @_fused_agent_attention_kernel(%arg0: i32, %arg1: memref<1x64x32xf32, #tpu.memory_space<vmem>>, %arg2: memref<32x32xf32, #tpu.memory_space<vmem>>, %arg3: memref<32x32xf32, #tpu.memory_space<vmem>>, %arg4: memref<32x32xf32, #tpu.memory_space<vmem>>, %arg5: memref<16x64xf32, #tpu.memory_space<vmem>>, %arg6: memref<4x16x64xf32, #tpu.memory_space<vmem>>, %arg7: memref<4x64x16xf32, #tpu.memory_space<vmem>>, %arg8: memref<9x32xf32, #tpu.memory_space<vmem>>, %arg9: memref<1x32xf32, #tpu.memory_space<vmem>>, %arg10: memref<32x32xf32, #tpu.memory_space<vmem>>, %arg11: memref<1x32xf32, #tpu.memory_space<vmem>>, %arg12: memref<1x64x32xf32, #tpu.memory_space<vmem>>) attributes {dimension_semantics = [#tpu.dimension_semantics<parallel>], iteration_bounds = array<i64: 2>, scalar_prefetch = 0 : i64, scratch_operands = 0 : i64, tpu.core_type = #tpu.core_type<tc>, window_params = [{transform_indices = @transform_0, window_bounds = array<i64: 1, 64, 32>}, {pipeline_mode = #tpu.pipeline_mode<synchronous>, transform_indices = @transform_1, window_bounds = array<i64: 32, 32>}, {pipeline_mode = #tpu.pipeline_mode<synchronous>, transform_indices = @transform_2, window_bounds = array<i64: 32, 32>}, {pipeline_mode = #tpu.pipeline_mode<synchronous>, transform_indices = @transform_3, window_bounds = array<i64: 32, 32>}, {pipeline_mode = #tpu.pipeline_mode<synchronous>, transform_indices = @transform_4, window_bounds = array<i64: 16, 64>}, {pipeline_mode = #tpu.pipeline_mode<synchronous>, transform_indices = @transform_5, window_bounds = array<i64: 4, 16, 64>}, {pipeline_mode = #tpu.pipeline_mode<synchronous>, transform_indices = @transform_6, window_bounds = array<i64: 4, 64, 16>}, {pipeline_mode = #tpu.pipeline_mode<synchronous>, transform_indices = @transform_7, window_bounds = array<i64: 9, 32>}, {pipeline_mode = #tpu.pipeline_mode<synchronous>, transform_indices = @transform_8, window_bounds = array<i64: 1, 32>}, {pipeline_mode = #tpu.pipeline_mode<synchronous>, transform_indices = @transform_9, window_bounds = array<i64: 32, 32>}, {pipeline_mode = #tpu.pipeline_mode<synchronous>, transform_indices = @transform_10, window_bounds = array<i64: 1, 32>}, {transform_indices = @transform_11, window_bounds = array<i64: 1, 64, 32>}]} {
    %c0 = arith.constant 0 : index
    %c0_0 = arith.constant 0 : index
    %c0_1 = arith.constant 0 : index
    %0 = vector.load %arg1[%c0, %c0_0, %c0_1] : memref<1x64x32xf32, #tpu.memory_space<vmem>>, vector<1x64x32xf32>
    %1 = vector.shape_cast %0 : vector<1x64x32xf32> to vector<64x32xf32>
    %c0_2 = arith.constant 0 : index
    %c0_3 = arith.constant 0 : index
    %2 = vector.load %arg2[%c0_2, %c0_3] : memref<32x32xf32, #tpu.memory_space<vmem>>, vector<32x32xf32>
    %cst = arith.constant dense<0.000000e+00> : vector<64x32xf32>
    %3 = tpu.matmul %1, %2, %cst {dimension_numbers = #tpu.dot_dimension_numbers<[1], [0], [0], [1], [0, 0, 1, 1], [], []>} : vector<64x32xf32>, vector<32x32xf32>, vector<64x32xf32> -> vector<64x32xf32>
    %c0_4 = arith.constant 0 : index
    %c0_5 = arith.constant 0 : index
    %4 = vector.load %arg3[%c0_4, %c0_5] : memref<32x32xf32, #tpu.memory_space<vmem>>, vector<32x32xf32>
    %cst_6 = arith.constant dense<0.000000e+00> : vector<64x32xf32>
    %5 = tpu.matmul %1, %4, %cst_6 {dimension_numbers = #tpu.dot_dimension_numbers<[1], [0], [0], [1], [0, 0, 1, 1], [], []>} : vector<64x32xf32>, vector<32x32xf32>, vector<64x32xf32> -> vector<64x32xf32>
    %c0_7 = arith.constant 0 : index
    %c0_8 = arith.constant 0 : index
    %6 = vector.load %arg4[%c0_7, %c0_8] : memref<32x32xf32, #tpu.memory_space<vmem>>, vector<32x32xf32>
    %cst_9 = arith.constant dense<0.000000e+00> : vector<64x32xf32>
    %7 = tpu.matmul %1, %6, %cst_9 {dimension_numbers = #tpu.dot_dimension_numbers<[1], [0], [0], [1], [0, 0, 1, 1], [], []>} : vector<64x32xf32>, vector<32x32xf32>, vector<64x32xf32> -> vector<64x32xf32>
    %c0_10 = arith.constant 0 : index
    %c0_11 = arith.constant 0 : index
    %8 = vector.load %arg5[%c0_10, %c0_11] : memref<16x64xf32, #tpu.memory_space<vmem>>, vector<16x64xf32>
    %cst_12 = arith.constant dense<0.000000e+00> : vector<16x32xf32>
    %9 = tpu.matmul %8, %3, %cst_12 {dimension_numbers = #tpu.dot_dimension_numbers<[1], [0], [0], [1], [0, 0, 1, 1], [], []>} : vector<16x64xf32>, vector<64x32xf32>, vector<16x32xf32> -> vector<16x32xf32>
    %cst_13 = arith.constant 0.353553385 : f32
    %10 = vector.broadcast %cst_13 : f32 to vector<64x32xf32>
    %11 = arith.mulf %3, %10 : vector<64x32xf32>
    %cst_14 = arith.constant 0.353553385 : f32
    %12 = vector.broadcast %cst_14 : f32 to vector<64x32xf32>
    %13 = arith.mulf %5, %12 : vector<64x32xf32>
    %14 = vector.extract_strided_slice %11 {offsets = [0, 0], sizes = [64, 8], strides = [1, 1]} : vector<64x32xf32> to vector<64x8xf32>
    %15 = vector.extract_strided_slice %13 {offsets = [0, 0], sizes = [64, 8], strides = [1, 1]} : vector<64x32xf32> to vector<64x8xf32>
    %16 = vector.extract_strided_slice %7 {offsets = [0, 0], sizes = [64, 8], strides = [1, 1]} : vector<64x32xf32> to vector<64x8xf32>
    %17 = vector.extract_strided_slice %9 {offsets = [0, 0], sizes = [16, 8], strides = [1, 1]} : vector<16x32xf32> to vector<16x8xf32>
    %cst_15 = arith.constant dense<0.000000e+00> : vector<16x64xf32>
    %18 = tpu.matmul %17, %15, %cst_15 {dimension_numbers = #tpu.dot_dimension_numbers<[1], [1], [0], [0], [0, 0, 1, 0], [], []>} : vector<16x8xf32>, vector<64x8xf32>, vector<16x64xf32> -> vector<16x64xf32>
    %c0_16 = arith.constant 0 : index
    %c0_17 = arith.constant 0 : index
    %c0_18 = arith.constant 0 : index
    %19 = vector.load %arg6[%c0_16, %c0_17, %c0_18] : memref<4x16x64xf32, #tpu.memory_space<vmem>>, vector<1x16x64xf32>
    %20 = vector.shape_cast %19 : vector<1x16x64xf32> to vector<16x64xf32>
    %21 = arith.addf %18, %20 : vector<16x64xf32>
    %cst_19 = arith.constant dense<0xFF800000> : vector<16xf32>
    %22 = vector.multi_reduction <maximumf>, %21, %cst_19 [1] : vector<16x64xf32> to vector<16xf32>
    %23 = vector.shape_cast %22 : vector<16xf32> to vector<16x1xf32>
    %24 = vector.broadcast %23 : vector<16x1xf32> to vector<16x64xf32>
    %25 = arith.subf %21, %24 : vector<16x64xf32>
    %26 = math.exp %25 : vector<16x64xf32>
    %cst_20 = arith.constant dense<0.000000e+00> : vector<16xf32>
    %27 = vector.multi_reduction <add>, %26, %cst_20 [1] : vector<16x64xf32> to vector<16xf32>
    %28 = vector.shape_cast %27 : vector<16xf32> to vector<16x1xf32>
    %29 = tpu.reciprocal %28 {approx = true} : vector<16x1xf32> -> vector<16x1xf32>
    %30 = vector.broadcast %29 : vector<16x1xf32> to vector<16x64xf32>
    %31 = arith.mulf %26, %30 : vector<16x64xf32>
    %cst_21 = arith.constant dense<0.000000e+00> : vector<16x8xf32>
    %32 = tpu.matmul %31, %16, %cst_21 {dimension_numbers = #tpu.dot_dimension_numbers<[1], [0], [0], [1], [0, 0, 1, 1], [], []>} : vector<16x64xf32>, vector<64x8xf32>, vector<16x8xf32> -> vector<16x8xf32>
    %cst_22 = arith.constant dense<0.000000e+00> : vector<64x16xf32>
    %33 = tpu.matmul %14, %17, %cst_22 {dimension_numbers = #tpu.dot_dimension_numbers<[1], [1], [0], [0], [0, 0, 1, 0], [], []>} : vector<64x8xf32>, vector<16x8xf32>, vector<64x16xf32> -> vector<64x16xf32>
    %c0_23 = arith.constant 0 : index
    %c0_24 = arith.constant 0 : index
    %c0_25 = arith.constant 0 : index
    %34 = vector.load %arg7[%c0_23, %c0_24, %c0_25] : memref<4x64x16xf32, #tpu.memory_space<vmem>>, vector<1x64x16xf32>
    %35 = vector.shape_cast %34 : vector<1x64x16xf32> to vector<64x16xf32>
    %36 = arith.addf %33, %35 : vector<64x16xf32>
    %cst_26 = arith.constant dense<0xFF800000> : vector<64xf32>
    %37 = vector.multi_reduction <maximumf>, %36, %cst_26 [1] : vector<64x16xf32> to vector<64xf32>
    %38 = vector.shape_cast %37 : vector<64xf32> to vector<64x1xf32>
    %39 = vector.broadcast %38 : vector<64x1xf32> to vector<64x16xf32>
    %40 = arith.subf %36, %39 : vector<64x16xf32>
    %41 = math.exp %40 : vector<64x16xf32>
    %cst_27 = arith.constant dense<0.000000e+00> : vector<64xf32>
    %42 = vector.multi_reduction <add>, %41, %cst_27 [1] : vector<64x16xf32> to vector<64xf32>
    %43 = vector.shape_cast %42 : vector<64xf32> to vector<64x1xf32>
    %44 = tpu.reciprocal %43 {approx = true} : vector<64x1xf32> -> vector<64x1xf32>
    %45 = vector.broadcast %44 : vector<64x1xf32> to vector<64x16xf32>
    %46 = arith.mulf %41, %45 : vector<64x16xf32>
    %cst_28 = arith.constant dense<0.000000e+00> : vector<64x8xf32>
    %47 = tpu.matmul %46, %32, %cst_28 {dimension_numbers = #tpu.dot_dimension_numbers<[1], [0], [0], [1], [0, 0, 1, 1], [], []>} : vector<64x16xf32>, vector<16x8xf32>, vector<64x8xf32> -> vector<64x8xf32>
    %48 = vector.extract_strided_slice %11 {offsets = [0, 8], sizes = [64, 8], strides = [1, 1]} : vector<64x32xf32> to vector<64x8xf32>
    %49 = vector.extract_strided_slice %13 {offsets = [0, 8], sizes = [64, 8], strides = [1, 1]} : vector<64x32xf32> to vector<64x8xf32>
    %50 = vector.extract_strided_slice %7 {offsets = [0, 8], sizes = [64, 8], strides = [1, 1]} : vector<64x32xf32> to vector<64x8xf32>
    %51 = vector.extract_strided_slice %9 {offsets = [0, 8], sizes = [16, 8], strides = [1, 1]} : vector<16x32xf32> to vector<16x8xf32>
    %cst_29 = arith.constant dense<0.000000e+00> : vector<16x64xf32>
    %52 = tpu.matmul %51, %49, %cst_29 {dimension_numbers = #tpu.dot_dimension_numbers<[1], [1], [0], [0], [0, 0, 1, 0], [], []>} : vector<16x8xf32>, vector<64x8xf32>, vector<16x64xf32> -> vector<16x64xf32>
    %c1 = arith.constant 1 : index
    %c0_30 = arith.constant 0 : index
    %c0_31 = arith.constant 0 : index
    %53 = vector.load %arg6[%c1, %c0_30, %c0_31] : memref<4x16x64xf32, #tpu.memory_space<vmem>>, vector<1x16x64xf32>
    %54 = vector.shape_cast %53 : vector<1x16x64xf32> to vector<16x64xf32>
    %55 = arith.addf %52, %54 : vector<16x64xf32>
    %cst_32 = arith.constant dense<0xFF800000> : vector<16xf32>
    %56 = vector.multi_reduction <maximumf>, %55, %cst_32 [1] : vector<16x64xf32> to vector<16xf32>
    %57 = vector.shape_cast %56 : vector<16xf32> to vector<16x1xf32>
    %58 = vector.broadcast %57 : vector<16x1xf32> to vector<16x64xf32>
    %59 = arith.subf %55, %58 : vector<16x64xf32>
    %60 = math.exp %59 : vector<16x64xf32>
    %cst_33 = arith.constant dense<0.000000e+00> : vector<16xf32>
    %61 = vector.multi_reduction <add>, %60, %cst_33 [1] : vector<16x64xf32> to vector<16xf32>
    %62 = vector.shape_cast %61 : vector<16xf32> to vector<16x1xf32>
    %63 = tpu.reciprocal %62 {approx = true} : vector<16x1xf32> -> vector<16x1xf32>
    %64 = vector.broadcast %63 : vector<16x1xf32> to vector<16x64xf32>
    %65 = arith.mulf %60, %64 : vector<16x64xf32>
    %cst_34 = arith.constant dense<0.000000e+00> : vector<16x8xf32>
    %66 = tpu.matmul %65, %50, %cst_34 {dimension_numbers = #tpu.dot_dimension_numbers<[1], [0], [0], [1], [0, 0, 1, 1], [], []>} : vector<16x64xf32>, vector<64x8xf32>, vector<16x8xf32> -> vector<16x8xf32>
    %cst_35 = arith.constant dense<0.000000e+00> : vector<64x16xf32>
    %67 = tpu.matmul %48, %51, %cst_35 {dimension_numbers = #tpu.dot_dimension_numbers<[1], [1], [0], [0], [0, 0, 1, 0], [], []>} : vector<64x8xf32>, vector<16x8xf32>, vector<64x16xf32> -> vector<64x16xf32>
    %c1_36 = arith.constant 1 : index
    %c0_37 = arith.constant 0 : index
    %c0_38 = arith.constant 0 : index
    %68 = vector.load %arg7[%c1_36, %c0_37, %c0_38] : memref<4x64x16xf32, #tpu.memory_space<vmem>>, vector<1x64x16xf32>
    %69 = vector.shape_cast %68 : vector<1x64x16xf32> to vector<64x16xf32>
    %70 = arith.addf %67, %69 : vector<64x16xf32>
    %cst_39 = arith.constant dense<0xFF800000> : vector<64xf32>
    %71 = vector.multi_reduction <maximumf>, %70, %cst_39 [1] : vector<64x16xf32> to vector<64xf32>
    %72 = vector.shape_cast %71 : vector<64xf32> to vector<64x1xf32>
    %73 = vector.broadcast %72 : vector<64x1xf32> to vector<64x16xf32>
    %74 = arith.subf %70, %73 : vector<64x16xf32>
    %75 = math.exp %74 : vector<64x16xf32>
    %cst_40 = arith.constant dense<0.000000e+00> : vector<64xf32>
    %76 = vector.multi_reduction <add>, %75, %cst_40 [1] : vector<64x16xf32> to vector<64xf32>
    %77 = vector.shape_cast %76 : vector<64xf32> to vector<64x1xf32>
    %78 = tpu.reciprocal %77 {approx = true} : vector<64x1xf32> -> vector<64x1xf32>
    %79 = vector.broadcast %78 : vector<64x1xf32> to vector<64x16xf32>
    %80 = arith.mulf %75, %79 : vector<64x16xf32>
    %cst_41 = arith.constant dense<0.000000e+00> : vector<64x8xf32>
    %81 = tpu.matmul %80, %66, %cst_41 {dimension_numbers = #tpu.dot_dimension_numbers<[1], [0], [0], [1], [0, 0, 1, 1], [], []>} : vector<64x16xf32>, vector<16x8xf32>, vector<64x8xf32> -> vector<64x8xf32>
    %82 = vector.extract_strided_slice %11 {offsets = [0, 16], sizes = [64, 8], strides = [1, 1]} : vector<64x32xf32> to vector<64x8xf32>
    %83 = vector.extract_strided_slice %13 {offsets = [0, 16], sizes = [64, 8], strides = [1, 1]} : vector<64x32xf32> to vector<64x8xf32>
    %84 = vector.extract_strided_slice %7 {offsets = [0, 16], sizes = [64, 8], strides = [1, 1]} : vector<64x32xf32> to vector<64x8xf32>
    %85 = vector.extract_strided_slice %9 {offsets = [0, 16], sizes = [16, 8], strides = [1, 1]} : vector<16x32xf32> to vector<16x8xf32>
    %cst_42 = arith.constant dense<0.000000e+00> : vector<16x64xf32>
    %86 = tpu.matmul %85, %83, %cst_42 {dimension_numbers = #tpu.dot_dimension_numbers<[1], [1], [0], [0], [0, 0, 1, 0], [], []>} : vector<16x8xf32>, vector<64x8xf32>, vector<16x64xf32> -> vector<16x64xf32>
    %c2 = arith.constant 2 : index
    %c0_43 = arith.constant 0 : index
    %c0_44 = arith.constant 0 : index
    %87 = vector.load %arg6[%c2, %c0_43, %c0_44] : memref<4x16x64xf32, #tpu.memory_space<vmem>>, vector<1x16x64xf32>
    %88 = vector.shape_cast %87 : vector<1x16x64xf32> to vector<16x64xf32>
    %89 = arith.addf %86, %88 : vector<16x64xf32>
    %cst_45 = arith.constant dense<0xFF800000> : vector<16xf32>
    %90 = vector.multi_reduction <maximumf>, %89, %cst_45 [1] : vector<16x64xf32> to vector<16xf32>
    %91 = vector.shape_cast %90 : vector<16xf32> to vector<16x1xf32>
    %92 = vector.broadcast %91 : vector<16x1xf32> to vector<16x64xf32>
    %93 = arith.subf %89, %92 : vector<16x64xf32>
    %94 = math.exp %93 : vector<16x64xf32>
    %cst_46 = arith.constant dense<0.000000e+00> : vector<16xf32>
    %95 = vector.multi_reduction <add>, %94, %cst_46 [1] : vector<16x64xf32> to vector<16xf32>
    %96 = vector.shape_cast %95 : vector<16xf32> to vector<16x1xf32>
    %97 = tpu.reciprocal %96 {approx = true} : vector<16x1xf32> -> vector<16x1xf32>
    %98 = vector.broadcast %97 : vector<16x1xf32> to vector<16x64xf32>
    %99 = arith.mulf %94, %98 : vector<16x64xf32>
    %cst_47 = arith.constant dense<0.000000e+00> : vector<16x8xf32>
    %100 = tpu.matmul %99, %84, %cst_47 {dimension_numbers = #tpu.dot_dimension_numbers<[1], [0], [0], [1], [0, 0, 1, 1], [], []>} : vector<16x64xf32>, vector<64x8xf32>, vector<16x8xf32> -> vector<16x8xf32>
    %cst_48 = arith.constant dense<0.000000e+00> : vector<64x16xf32>
    %101 = tpu.matmul %82, %85, %cst_48 {dimension_numbers = #tpu.dot_dimension_numbers<[1], [1], [0], [0], [0, 0, 1, 0], [], []>} : vector<64x8xf32>, vector<16x8xf32>, vector<64x16xf32> -> vector<64x16xf32>
    %c2_49 = arith.constant 2 : index
    %c0_50 = arith.constant 0 : index
    %c0_51 = arith.constant 0 : index
    %102 = vector.load %arg7[%c2_49, %c0_50, %c0_51] : memref<4x64x16xf32, #tpu.memory_space<vmem>>, vector<1x64x16xf32>
    %103 = vector.shape_cast %102 : vector<1x64x16xf32> to vector<64x16xf32>
    %104 = arith.addf %101, %103 : vector<64x16xf32>
    %cst_52 = arith.constant dense<0xFF800000> : vector<64xf32>
    %105 = vector.multi_reduction <maximumf>, %104, %cst_52 [1] : vector<64x16xf32> to vector<64xf32>
    %106 = vector.shape_cast %105 : vector<64xf32> to vector<64x1xf32>
    %107 = vector.broadcast %106 : vector<64x1xf32> to vector<64x16xf32>
    %108 = arith.subf %104, %107 : vector<64x16xf32>
    %109 = math.exp %108 : vector<64x16xf32>
    %cst_53 = arith.constant dense<0.000000e+00> : vector<64xf32>
    %110 = vector.multi_reduction <add>, %109, %cst_53 [1] : vector<64x16xf32> to vector<64xf32>
    %111 = vector.shape_cast %110 : vector<64xf32> to vector<64x1xf32>
    %112 = tpu.reciprocal %111 {approx = true} : vector<64x1xf32> -> vector<64x1xf32>
    %113 = vector.broadcast %112 : vector<64x1xf32> to vector<64x16xf32>
    %114 = arith.mulf %109, %113 : vector<64x16xf32>
    %cst_54 = arith.constant dense<0.000000e+00> : vector<64x8xf32>
    %115 = tpu.matmul %114, %100, %cst_54 {dimension_numbers = #tpu.dot_dimension_numbers<[1], [0], [0], [1], [0, 0, 1, 1], [], []>} : vector<64x16xf32>, vector<16x8xf32>, vector<64x8xf32> -> vector<64x8xf32>
    %116 = vector.extract_strided_slice %11 {offsets = [0, 24], sizes = [64, 8], strides = [1, 1]} : vector<64x32xf32> to vector<64x8xf32>
    %117 = vector.extract_strided_slice %13 {offsets = [0, 24], sizes = [64, 8], strides = [1, 1]} : vector<64x32xf32> to vector<64x8xf32>
    %118 = vector.extract_strided_slice %7 {offsets = [0, 24], sizes = [64, 8], strides = [1, 1]} : vector<64x32xf32> to vector<64x8xf32>
    %119 = vector.extract_strided_slice %9 {offsets = [0, 24], sizes = [16, 8], strides = [1, 1]} : vector<16x32xf32> to vector<16x8xf32>
    %cst_55 = arith.constant dense<0.000000e+00> : vector<16x64xf32>
    %120 = tpu.matmul %119, %117, %cst_55 {dimension_numbers = #tpu.dot_dimension_numbers<[1], [1], [0], [0], [0, 0, 1, 0], [], []>} : vector<16x8xf32>, vector<64x8xf32>, vector<16x64xf32> -> vector<16x64xf32>
    %c3 = arith.constant 3 : index
    %c0_56 = arith.constant 0 : index
    %c0_57 = arith.constant 0 : index
    %121 = vector.load %arg6[%c3, %c0_56, %c0_57] : memref<4x16x64xf32, #tpu.memory_space<vmem>>, vector<1x16x64xf32>
    %122 = vector.shape_cast %121 : vector<1x16x64xf32> to vector<16x64xf32>
    %123 = arith.addf %120, %122 : vector<16x64xf32>
    %cst_58 = arith.constant dense<0xFF800000> : vector<16xf32>
    %124 = vector.multi_reduction <maximumf>, %123, %cst_58 [1] : vector<16x64xf32> to vector<16xf32>
    %125 = vector.shape_cast %124 : vector<16xf32> to vector<16x1xf32>
    %126 = vector.broadcast %125 : vector<16x1xf32> to vector<16x64xf32>
    %127 = arith.subf %123, %126 : vector<16x64xf32>
    %128 = math.exp %127 : vector<16x64xf32>
    %cst_59 = arith.constant dense<0.000000e+00> : vector<16xf32>
    %129 = vector.multi_reduction <add>, %128, %cst_59 [1] : vector<16x64xf32> to vector<16xf32>
    %130 = vector.shape_cast %129 : vector<16xf32> to vector<16x1xf32>
    %131 = tpu.reciprocal %130 {approx = true} : vector<16x1xf32> -> vector<16x1xf32>
    %132 = vector.broadcast %131 : vector<16x1xf32> to vector<16x64xf32>
    %133 = arith.mulf %128, %132 : vector<16x64xf32>
    %cst_60 = arith.constant dense<0.000000e+00> : vector<16x8xf32>
    %134 = tpu.matmul %133, %118, %cst_60 {dimension_numbers = #tpu.dot_dimension_numbers<[1], [0], [0], [1], [0, 0, 1, 1], [], []>} : vector<16x64xf32>, vector<64x8xf32>, vector<16x8xf32> -> vector<16x8xf32>
    %cst_61 = arith.constant dense<0.000000e+00> : vector<64x16xf32>
    %135 = tpu.matmul %116, %119, %cst_61 {dimension_numbers = #tpu.dot_dimension_numbers<[1], [1], [0], [0], [0, 0, 1, 0], [], []>} : vector<64x8xf32>, vector<16x8xf32>, vector<64x16xf32> -> vector<64x16xf32>
    %c3_62 = arith.constant 3 : index
    %c0_63 = arith.constant 0 : index
    %c0_64 = arith.constant 0 : index
    %136 = vector.load %arg7[%c3_62, %c0_63, %c0_64] : memref<4x64x16xf32, #tpu.memory_space<vmem>>, vector<1x64x16xf32>
    %137 = vector.shape_cast %136 : vector<1x64x16xf32> to vector<64x16xf32>
    %138 = arith.addf %135, %137 : vector<64x16xf32>
    %cst_65 = arith.constant dense<0xFF800000> : vector<64xf32>
    %139 = vector.multi_reduction <maximumf>, %138, %cst_65 [1] : vector<64x16xf32> to vector<64xf32>
    %140 = vector.shape_cast %139 : vector<64xf32> to vector<64x1xf32>
    %141 = vector.broadcast %140 : vector<64x1xf32> to vector<64x16xf32>
    %142 = arith.subf %138, %141 : vector<64x16xf32>
    %143 = math.exp %142 : vector<64x16xf32>
    %cst_66 = arith.constant dense<0.000000e+00> : vector<64xf32>
    %144 = vector.multi_reduction <add>, %143, %cst_66 [1] : vector<64x16xf32> to vector<64xf32>
    %145 = vector.shape_cast %144 : vector<64xf32> to vector<64x1xf32>
    %146 = tpu.reciprocal %145 {approx = true} : vector<64x1xf32> -> vector<64x1xf32>
    %147 = vector.broadcast %146 : vector<64x1xf32> to vector<64x16xf32>
    %148 = arith.mulf %143, %147 : vector<64x16xf32>
    %cst_67 = arith.constant dense<0.000000e+00> : vector<64x8xf32>
    %149 = tpu.matmul %148, %134, %cst_67 {dimension_numbers = #tpu.dot_dimension_numbers<[1], [0], [0], [1], [0, 0, 1, 1], [], []>} : vector<64x16xf32>, vector<16x8xf32>, vector<64x8xf32> -> vector<64x8xf32>
    %150 = tpu.concatenate %47, %81, %115, %149 in 1 : vector<64x8xf32>, vector<64x8xf32>, vector<64x8xf32>, vector<64x8xf32> -> vector<64x32xf32>
    %c0_68 = arith.constant 0 : index
    %c0_69 = arith.constant 0 : index
    %151 = vector.load %arg8[%c0_68, %c0_69] : memref<9x32xf32, #tpu.memory_space<vmem>>, vector<9x32xf32>
    %152 = tpu.iota {dimensions = array<i32: 0>} : vector<64x1xi32>
    %c8_i32 = arith.constant 8 : i32
    %c0_i32 = arith.constant 0 : i32
    %153 = arith.cmpi eq, %c8_i32, %c0_i32 : i32
    %c1_i32 = arith.constant 1 : i32
    %154 = arith.select %153, %c1_i32, %c8_i32 : i32
    %155 = vector.broadcast %154 : i32 to vector<64x1xi32>
    %156 = arith.remsi %152, %155 : vector<64x1xi32>
    %c0_i32_70 = arith.constant 0 : i32
    %157 = vector.broadcast %c0_i32_70 : i32 to vector<64x1xi32>
    %158 = arith.cmpi ne, %156, %157 : vector<64x1xi32>
    %c0_i32_71 = arith.constant 0 : i32
    %159 = vector.broadcast %c0_i32_71 : i32 to vector<64x1xi32>
    %160 = arith.cmpi slt, %156, %159 : vector<64x1xi32>
    %c0_i32_72 = arith.constant 0 : i32
    %161 = arith.cmpi slt, %154, %c0_i32_72 : i32
    %162 = vector.broadcast %161 : i1 to vector<64x1xi1>
    %163 = vector.broadcast %162 : vector<64x1xi1> to vector<64x1xi1>
    %164 = arith.xori %160, %163 : vector<64x1xi1>
    %165 = arith.andi %164, %158 : vector<64x1xi1>
    %166 = vector.broadcast %154 : i32 to vector<64x1xi32>
    %167 = arith.addi %156, %166 : vector<64x1xi32>
    %168 = arith.select %165, %167, %156 : vector<64x1xi1>, vector<64x1xi32>
    %c0_73 = arith.constant 0 : index
    %c0_74 = arith.constant 0 : index
    %169 = vector.load %arg9[%c0_73, %c0_74] : memref<1x32xf32, #tpu.memory_space<vmem>>, vector<1x32xf32>
    %170 = vector.broadcast %169 : vector<1x32xf32> to vector<64x32xf32>
    %171 = arith.addf %150, %170 : vector<64x32xf32>
    %172 = vector.extract_strided_slice %151 {offsets = [0, 0], sizes = [1, 32], strides = [1, 1]} : vector<9x32xf32> to vector<1x32xf32>
    %c9_i32 = arith.constant 9 : i32
    %173 = tpu.dynamic_rotate %7 by %c9_i32 dim 0 : vector<64x32xf32>, i32 -> vector<64x32xf32>
    %c-9_i32 = arith.constant -9 : i32
    %174 = vector.broadcast %c-9_i32 : i32 to vector<64x1xi32>
    %175 = arith.addi %152, %174 : vector<64x1xi32>
    %c0_i32_75 = arith.constant 0 : i32
    %176 = vector.broadcast %c0_i32_75 : i32 to vector<64x1xi32>
    %177 = arith.cmpi sge, %175, %176 : vector<64x1xi32>
    %c-9_i32_76 = arith.constant -9 : i32
    %178 = vector.broadcast %c-9_i32_76 : i32 to vector<64x1xi32>
    %179 = arith.addi %152, %178 : vector<64x1xi32>
    %c64_i32 = arith.constant 64 : i32
    %180 = vector.broadcast %c64_i32 : i32 to vector<64x1xi32>
    %181 = arith.cmpi slt, %179, %180 : vector<64x1xi32>
    %182 = arith.andi %177, %181 : vector<64x1xi1>
    %c-1_i32 = arith.constant -1 : i32
    %183 = vector.broadcast %c-1_i32 : i32 to vector<64x1xi32>
    %184 = arith.addi %168, %183 : vector<64x1xi32>
    %c0_i32_77 = arith.constant 0 : i32
    %185 = vector.broadcast %c0_i32_77 : i32 to vector<64x1xi32>
    %186 = arith.cmpi sge, %184, %185 : vector<64x1xi32>
    %187 = arith.andi %182, %186 : vector<64x1xi1>
    %c-1_i32_78 = arith.constant -1 : i32
    %188 = vector.broadcast %c-1_i32_78 : i32 to vector<64x1xi32>
    %189 = arith.addi %168, %188 : vector<64x1xi32>
    %c8_i32_79 = arith.constant 8 : i32
    %190 = vector.broadcast %c8_i32_79 : i32 to vector<64x1xi32>
    %191 = arith.cmpi slt, %189, %190 : vector<64x1xi32>
    %192 = arith.andi %187, %191 : vector<64x1xi1>
    %193 = arith.extui %192 : vector<64x1xi1> to vector<64x1xi32>
    %194 = arith.sitofp %193 : vector<64x1xi32> to vector<64x1xf32>
    %195 = vector.broadcast %194 : vector<64x1xf32> to vector<64x32xf32>
    %196 = arith.mulf %173, %195 : vector<64x32xf32>
    %197 = vector.broadcast %172 : vector<1x32xf32> to vector<64x32xf32>
    %198 = arith.mulf %196, %197 : vector<64x32xf32>
    %199 = arith.addf %171, %198 : vector<64x32xf32>
    %200 = vector.extract_strided_slice %151 {offsets = [1, 0], sizes = [1, 32], strides = [1, 1]} : vector<9x32xf32> to vector<1x32xf32>
    %c8_i32_80 = arith.constant 8 : i32
    %201 = tpu.dynamic_rotate %7 by %c8_i32_80 dim 0 : vector<64x32xf32>, i32 -> vector<64x32xf32>
    %c-8_i32 = arith.constant -8 : i32
    %202 = vector.broadcast %c-8_i32 : i32 to vector<64x1xi32>
    %203 = arith.addi %152, %202 : vector<64x1xi32>
    %c0_i32_81 = arith.constant 0 : i32
    %204 = vector.broadcast %c0_i32_81 : i32 to vector<64x1xi32>
    %205 = arith.cmpi sge, %203, %204 : vector<64x1xi32>
    %c-8_i32_82 = arith.constant -8 : i32
    %206 = vector.broadcast %c-8_i32_82 : i32 to vector<64x1xi32>
    %207 = arith.addi %152, %206 : vector<64x1xi32>
    %c64_i32_83 = arith.constant 64 : i32
    %208 = vector.broadcast %c64_i32_83 : i32 to vector<64x1xi32>
    %209 = arith.cmpi slt, %207, %208 : vector<64x1xi32>
    %210 = arith.andi %205, %209 : vector<64x1xi1>
    %211 = arith.extui %210 : vector<64x1xi1> to vector<64x1xi32>
    %212 = arith.sitofp %211 : vector<64x1xi32> to vector<64x1xf32>
    %213 = vector.broadcast %212 : vector<64x1xf32> to vector<64x32xf32>
    %214 = arith.mulf %201, %213 : vector<64x32xf32>
    %215 = vector.broadcast %200 : vector<1x32xf32> to vector<64x32xf32>
    %216 = arith.mulf %214, %215 : vector<64x32xf32>
    %217 = arith.addf %199, %216 : vector<64x32xf32>
    %218 = vector.extract_strided_slice %151 {offsets = [2, 0], sizes = [1, 32], strides = [1, 1]} : vector<9x32xf32> to vector<1x32xf32>
    %c7_i32 = arith.constant 7 : i32
    %219 = tpu.dynamic_rotate %7 by %c7_i32 dim 0 : vector<64x32xf32>, i32 -> vector<64x32xf32>
    %c-7_i32 = arith.constant -7 : i32
    %220 = vector.broadcast %c-7_i32 : i32 to vector<64x1xi32>
    %221 = arith.addi %152, %220 : vector<64x1xi32>
    %c0_i32_84 = arith.constant 0 : i32
    %222 = vector.broadcast %c0_i32_84 : i32 to vector<64x1xi32>
    %223 = arith.cmpi sge, %221, %222 : vector<64x1xi32>
    %c-7_i32_85 = arith.constant -7 : i32
    %224 = vector.broadcast %c-7_i32_85 : i32 to vector<64x1xi32>
    %225 = arith.addi %152, %224 : vector<64x1xi32>
    %c64_i32_86 = arith.constant 64 : i32
    %226 = vector.broadcast %c64_i32_86 : i32 to vector<64x1xi32>
    %227 = arith.cmpi slt, %225, %226 : vector<64x1xi32>
    %228 = arith.andi %223, %227 : vector<64x1xi1>
    %c1_i32_87 = arith.constant 1 : i32
    %229 = vector.broadcast %c1_i32_87 : i32 to vector<64x1xi32>
    %230 = arith.addi %168, %229 : vector<64x1xi32>
    %c0_i32_88 = arith.constant 0 : i32
    %231 = vector.broadcast %c0_i32_88 : i32 to vector<64x1xi32>
    %232 = arith.cmpi sge, %230, %231 : vector<64x1xi32>
    %233 = arith.andi %228, %232 : vector<64x1xi1>
    %c1_i32_89 = arith.constant 1 : i32
    %234 = vector.broadcast %c1_i32_89 : i32 to vector<64x1xi32>
    %235 = arith.addi %168, %234 : vector<64x1xi32>
    %c8_i32_90 = arith.constant 8 : i32
    %236 = vector.broadcast %c8_i32_90 : i32 to vector<64x1xi32>
    %237 = arith.cmpi slt, %235, %236 : vector<64x1xi32>
    %238 = arith.andi %233, %237 : vector<64x1xi1>
    %239 = arith.extui %238 : vector<64x1xi1> to vector<64x1xi32>
    %240 = arith.sitofp %239 : vector<64x1xi32> to vector<64x1xf32>
    %241 = vector.broadcast %240 : vector<64x1xf32> to vector<64x32xf32>
    %242 = arith.mulf %219, %241 : vector<64x32xf32>
    %243 = vector.broadcast %218 : vector<1x32xf32> to vector<64x32xf32>
    %244 = arith.mulf %242, %243 : vector<64x32xf32>
    %245 = arith.addf %217, %244 : vector<64x32xf32>
    %246 = vector.extract_strided_slice %151 {offsets = [3, 0], sizes = [1, 32], strides = [1, 1]} : vector<9x32xf32> to vector<1x32xf32>
    %c1_i32_91 = arith.constant 1 : i32
    %247 = tpu.dynamic_rotate %7 by %c1_i32_91 dim 0 : vector<64x32xf32>, i32 -> vector<64x32xf32>
    %c-1_i32_92 = arith.constant -1 : i32
    %248 = vector.broadcast %c-1_i32_92 : i32 to vector<64x1xi32>
    %249 = arith.addi %152, %248 : vector<64x1xi32>
    %c0_i32_93 = arith.constant 0 : i32
    %250 = vector.broadcast %c0_i32_93 : i32 to vector<64x1xi32>
    %251 = arith.cmpi sge, %249, %250 : vector<64x1xi32>
    %c-1_i32_94 = arith.constant -1 : i32
    %252 = vector.broadcast %c-1_i32_94 : i32 to vector<64x1xi32>
    %253 = arith.addi %152, %252 : vector<64x1xi32>
    %c64_i32_95 = arith.constant 64 : i32
    %254 = vector.broadcast %c64_i32_95 : i32 to vector<64x1xi32>
    %255 = arith.cmpi slt, %253, %254 : vector<64x1xi32>
    %256 = arith.andi %251, %255 : vector<64x1xi1>
    %c-1_i32_96 = arith.constant -1 : i32
    %257 = vector.broadcast %c-1_i32_96 : i32 to vector<64x1xi32>
    %258 = arith.addi %168, %257 : vector<64x1xi32>
    %c0_i32_97 = arith.constant 0 : i32
    %259 = vector.broadcast %c0_i32_97 : i32 to vector<64x1xi32>
    %260 = arith.cmpi sge, %258, %259 : vector<64x1xi32>
    %261 = arith.andi %256, %260 : vector<64x1xi1>
    %c-1_i32_98 = arith.constant -1 : i32
    %262 = vector.broadcast %c-1_i32_98 : i32 to vector<64x1xi32>
    %263 = arith.addi %168, %262 : vector<64x1xi32>
    %c8_i32_99 = arith.constant 8 : i32
    %264 = vector.broadcast %c8_i32_99 : i32 to vector<64x1xi32>
    %265 = arith.cmpi slt, %263, %264 : vector<64x1xi32>
    %266 = arith.andi %261, %265 : vector<64x1xi1>
    %267 = arith.extui %266 : vector<64x1xi1> to vector<64x1xi32>
    %268 = arith.sitofp %267 : vector<64x1xi32> to vector<64x1xf32>
    %269 = vector.broadcast %268 : vector<64x1xf32> to vector<64x32xf32>
    %270 = arith.mulf %247, %269 : vector<64x32xf32>
    %271 = vector.broadcast %246 : vector<1x32xf32> to vector<64x32xf32>
    %272 = arith.mulf %270, %271 : vector<64x32xf32>
    %273 = arith.addf %245, %272 : vector<64x32xf32>
    %274 = vector.extract_strided_slice %151 {offsets = [4, 0], sizes = [1, 32], strides = [1, 1]} : vector<9x32xf32> to vector<1x32xf32>
    %275 = vector.broadcast %274 : vector<1x32xf32> to vector<64x32xf32>
    %276 = arith.mulf %7, %275 : vector<64x32xf32>
    %277 = arith.addf %273, %276 : vector<64x32xf32>
    %278 = vector.extract_strided_slice %151 {offsets = [5, 0], sizes = [1, 32], strides = [1, 1]} : vector<9x32xf32> to vector<1x32xf32>
    %c63_i32 = arith.constant 63 : i32
    %279 = tpu.dynamic_rotate %7 by %c63_i32 dim 0 : vector<64x32xf32>, i32 -> vector<64x32xf32>
    %c1_i32_100 = arith.constant 1 : i32
    %280 = vector.broadcast %c1_i32_100 : i32 to vector<64x1xi32>
    %281 = arith.addi %152, %280 : vector<64x1xi32>
    %c0_i32_101 = arith.constant 0 : i32
    %282 = vector.broadcast %c0_i32_101 : i32 to vector<64x1xi32>
    %283 = arith.cmpi sge, %281, %282 : vector<64x1xi32>
    %c1_i32_102 = arith.constant 1 : i32
    %284 = vector.broadcast %c1_i32_102 : i32 to vector<64x1xi32>
    %285 = arith.addi %152, %284 : vector<64x1xi32>
    %c64_i32_103 = arith.constant 64 : i32
    %286 = vector.broadcast %c64_i32_103 : i32 to vector<64x1xi32>
    %287 = arith.cmpi slt, %285, %286 : vector<64x1xi32>
    %288 = arith.andi %283, %287 : vector<64x1xi1>
    %c1_i32_104 = arith.constant 1 : i32
    %289 = vector.broadcast %c1_i32_104 : i32 to vector<64x1xi32>
    %290 = arith.addi %168, %289 : vector<64x1xi32>
    %c0_i32_105 = arith.constant 0 : i32
    %291 = vector.broadcast %c0_i32_105 : i32 to vector<64x1xi32>
    %292 = arith.cmpi sge, %290, %291 : vector<64x1xi32>
    %293 = arith.andi %288, %292 : vector<64x1xi1>
    %c1_i32_106 = arith.constant 1 : i32
    %294 = vector.broadcast %c1_i32_106 : i32 to vector<64x1xi32>
    %295 = arith.addi %168, %294 : vector<64x1xi32>
    %c8_i32_107 = arith.constant 8 : i32
    %296 = vector.broadcast %c8_i32_107 : i32 to vector<64x1xi32>
    %297 = arith.cmpi slt, %295, %296 : vector<64x1xi32>
    %298 = arith.andi %293, %297 : vector<64x1xi1>
    %299 = arith.extui %298 : vector<64x1xi1> to vector<64x1xi32>
    %300 = arith.sitofp %299 : vector<64x1xi32> to vector<64x1xf32>
    %301 = vector.broadcast %300 : vector<64x1xf32> to vector<64x32xf32>
    %302 = arith.mulf %279, %301 : vector<64x32xf32>
    %303 = vector.broadcast %278 : vector<1x32xf32> to vector<64x32xf32>
    %304 = arith.mulf %302, %303 : vector<64x32xf32>
    %305 = arith.addf %277, %304 : vector<64x32xf32>
    %306 = vector.extract_strided_slice %151 {offsets = [6, 0], sizes = [1, 32], strides = [1, 1]} : vector<9x32xf32> to vector<1x32xf32>
    %c57_i32 = arith.constant 57 : i32
    %307 = tpu.dynamic_rotate %7 by %c57_i32 dim 0 : vector<64x32xf32>, i32 -> vector<64x32xf32>
    %c7_i32_108 = arith.constant 7 : i32
    %308 = vector.broadcast %c7_i32_108 : i32 to vector<64x1xi32>
    %309 = arith.addi %152, %308 : vector<64x1xi32>
    %c0_i32_109 = arith.constant 0 : i32
    %310 = vector.broadcast %c0_i32_109 : i32 to vector<64x1xi32>
    %311 = arith.cmpi sge, %309, %310 : vector<64x1xi32>
    %c7_i32_110 = arith.constant 7 : i32
    %312 = vector.broadcast %c7_i32_110 : i32 to vector<64x1xi32>
    %313 = arith.addi %152, %312 : vector<64x1xi32>
    %c64_i32_111 = arith.constant 64 : i32
    %314 = vector.broadcast %c64_i32_111 : i32 to vector<64x1xi32>
    %315 = arith.cmpi slt, %313, %314 : vector<64x1xi32>
    %316 = arith.andi %311, %315 : vector<64x1xi1>
    %c-1_i32_112 = arith.constant -1 : i32
    %317 = vector.broadcast %c-1_i32_112 : i32 to vector<64x1xi32>
    %318 = arith.addi %168, %317 : vector<64x1xi32>
    %c0_i32_113 = arith.constant 0 : i32
    %319 = vector.broadcast %c0_i32_113 : i32 to vector<64x1xi32>
    %320 = arith.cmpi sge, %318, %319 : vector<64x1xi32>
    %321 = arith.andi %316, %320 : vector<64x1xi1>
    %c-1_i32_114 = arith.constant -1 : i32
    %322 = vector.broadcast %c-1_i32_114 : i32 to vector<64x1xi32>
    %323 = arith.addi %168, %322 : vector<64x1xi32>
    %c8_i32_115 = arith.constant 8 : i32
    %324 = vector.broadcast %c8_i32_115 : i32 to vector<64x1xi32>
    %325 = arith.cmpi slt, %323, %324 : vector<64x1xi32>
    %326 = arith.andi %321, %325 : vector<64x1xi1>
    %327 = arith.extui %326 : vector<64x1xi1> to vector<64x1xi32>
    %328 = arith.sitofp %327 : vector<64x1xi32> to vector<64x1xf32>
    %329 = vector.broadcast %328 : vector<64x1xf32> to vector<64x32xf32>
    %330 = arith.mulf %307, %329 : vector<64x32xf32>
    %331 = vector.broadcast %306 : vector<1x32xf32> to vector<64x32xf32>
    %332 = arith.mulf %330, %331 : vector<64x32xf32>
    %333 = arith.addf %305, %332 : vector<64x32xf32>
    %334 = vector.extract_strided_slice %151 {offsets = [7, 0], sizes = [1, 32], strides = [1, 1]} : vector<9x32xf32> to vector<1x32xf32>
    %c56_i32 = arith.constant 56 : i32
    %335 = tpu.dynamic_rotate %7 by %c56_i32 dim 0 : vector<64x32xf32>, i32 -> vector<64x32xf32>
    %c8_i32_116 = arith.constant 8 : i32
    %336 = vector.broadcast %c8_i32_116 : i32 to vector<64x1xi32>
    %337 = arith.addi %152, %336 : vector<64x1xi32>
    %c0_i32_117 = arith.constant 0 : i32
    %338 = vector.broadcast %c0_i32_117 : i32 to vector<64x1xi32>
    %339 = arith.cmpi sge, %337, %338 : vector<64x1xi32>
    %c8_i32_118 = arith.constant 8 : i32
    %340 = vector.broadcast %c8_i32_118 : i32 to vector<64x1xi32>
    %341 = arith.addi %152, %340 : vector<64x1xi32>
    %c64_i32_119 = arith.constant 64 : i32
    %342 = vector.broadcast %c64_i32_119 : i32 to vector<64x1xi32>
    %343 = arith.cmpi slt, %341, %342 : vector<64x1xi32>
    %344 = arith.andi %339, %343 : vector<64x1xi1>
    %345 = arith.extui %344 : vector<64x1xi1> to vector<64x1xi32>
    %346 = arith.sitofp %345 : vector<64x1xi32> to vector<64x1xf32>
    %347 = vector.broadcast %346 : vector<64x1xf32> to vector<64x32xf32>
    %348 = arith.mulf %335, %347 : vector<64x32xf32>
    %349 = vector.broadcast %334 : vector<1x32xf32> to vector<64x32xf32>
    %350 = arith.mulf %348, %349 : vector<64x32xf32>
    %351 = arith.addf %333, %350 : vector<64x32xf32>
    %352 = vector.extract_strided_slice %151 {offsets = [8, 0], sizes = [1, 32], strides = [1, 1]} : vector<9x32xf32> to vector<1x32xf32>
    %c55_i32 = arith.constant 55 : i32
    %353 = tpu.dynamic_rotate %7 by %c55_i32 dim 0 : vector<64x32xf32>, i32 -> vector<64x32xf32>
    %c9_i32_120 = arith.constant 9 : i32
    %354 = vector.broadcast %c9_i32_120 : i32 to vector<64x1xi32>
    %355 = arith.addi %152, %354 : vector<64x1xi32>
    %c0_i32_121 = arith.constant 0 : i32
    %356 = vector.broadcast %c0_i32_121 : i32 to vector<64x1xi32>
    %357 = arith.cmpi sge, %355, %356 : vector<64x1xi32>
    %c9_i32_122 = arith.constant 9 : i32
    %358 = vector.broadcast %c9_i32_122 : i32 to vector<64x1xi32>
    %359 = arith.addi %152, %358 : vector<64x1xi32>
    %c64_i32_123 = arith.constant 64 : i32
    %360 = vector.broadcast %c64_i32_123 : i32 to vector<64x1xi32>
    %361 = arith.cmpi slt, %359, %360 : vector<64x1xi32>
    %362 = arith.andi %357, %361 : vector<64x1xi1>
    %c1_i32_124 = arith.constant 1 : i32
    %363 = vector.broadcast %c1_i32_124 : i32 to vector<64x1xi32>
    %364 = arith.addi %168, %363 : vector<64x1xi32>
    %c0_i32_125 = arith.constant 0 : i32
    %365 = vector.broadcast %c0_i32_125 : i32 to vector<64x1xi32>
    %366 = arith.cmpi sge, %364, %365 : vector<64x1xi32>
    %367 = arith.andi %362, %366 : vector<64x1xi1>
    %c1_i32_126 = arith.constant 1 : i32
    %368 = vector.broadcast %c1_i32_126 : i32 to vector<64x1xi32>
    %369 = arith.addi %168, %368 : vector<64x1xi32>
    %c8_i32_127 = arith.constant 8 : i32
    %370 = vector.broadcast %c8_i32_127 : i32 to vector<64x1xi32>
    %371 = arith.cmpi slt, %369, %370 : vector<64x1xi32>
    %372 = arith.andi %367, %371 : vector<64x1xi1>
    %373 = arith.extui %372 : vector<64x1xi1> to vector<64x1xi32>
    %374 = arith.sitofp %373 : vector<64x1xi32> to vector<64x1xf32>
    %375 = vector.broadcast %374 : vector<64x1xf32> to vector<64x32xf32>
    %376 = arith.mulf %353, %375 : vector<64x32xf32>
    %377 = vector.broadcast %352 : vector<1x32xf32> to vector<64x32xf32>
    %378 = arith.mulf %376, %377 : vector<64x32xf32>
    %379 = arith.addf %351, %378 : vector<64x32xf32>
    %c0_128 = arith.constant 0 : index
    %c0_129 = arith.constant 0 : index
    %380 = vector.load %arg10[%c0_128, %c0_129] : memref<32x32xf32, #tpu.memory_space<vmem>>, vector<32x32xf32>
    %cst_130 = arith.constant dense<0.000000e+00> : vector<64x32xf32>
    %381 = tpu.matmul %379, %380, %cst_130 {dimension_numbers = #tpu.dot_dimension_numbers<[1], [0], [0], [1], [0, 0, 1, 1], [], []>} : vector<64x32xf32>, vector<32x32xf32>, vector<64x32xf32> -> vector<64x32xf32>
    %c0_131 = arith.constant 0 : index
    %c0_132 = arith.constant 0 : index
    %382 = vector.load %arg11[%c0_131, %c0_132] : memref<1x32xf32, #tpu.memory_space<vmem>>, vector<1x32xf32>
    %383 = vector.broadcast %382 : vector<1x32xf32> to vector<64x32xf32>
    %384 = arith.addf %381, %383 : vector<64x32xf32>
    %c0_133 = arith.constant 0 : index
    %c0_134 = arith.constant 0 : index
    %c0_135 = arith.constant 0 : index
    %385 = vector.load %arg12[%c0_133, %c0_134, %c0_135] : memref<1x64x32xf32, #tpu.memory_space<vmem>>, vector<1x64x32xf32>
    %386 = vector.shape_cast %385 : vector<1x64x32xf32> to vector<64x32xf32>
    %387 = vector.shape_cast %384 : vector<64x32xf32> to vector<1x64x32xf32>
    tpu.vector_store %arg12[%c0_133, %c0_134, %c0_135], %387 {strides = array<i32>} : memref<1x64x32xf32, #tpu.memory_space<vmem>>, vector<1x64x32xf32>,
    return
  }
  func.func @transform_0(%arg0: i32) -> (i32, i32, i32) {
    %c0_i32 = arith.constant 0 : i32
    %c0_i32_0 = arith.constant 0 : i32
    %c0_i32_1 = arith.constant 0 : i32
    return %arg0, %c0_i32, %c0_i32_0 : i32, i32, i32
  }
  func.func @transform_1(%arg0: i32) -> (i32, i32) {
    %c0_i32 = arith.constant 0 : i32
    %c0_i32_0 = arith.constant 0 : i32
    %c0_i32_1 = arith.constant 0 : i32
    return %c0_i32, %c0_i32_0 : i32, i32
  }
  func.func @transform_2(%arg0: i32) -> (i32, i32) {
    %c0_i32 = arith.constant 0 : i32
    %c0_i32_0 = arith.constant 0 : i32
    %c0_i32_1 = arith.constant 0 : i32
    return %c0_i32, %c0_i32_0 : i32, i32
  }
  func.func @transform_3(%arg0: i32) -> (i32, i32) {
    %c0_i32 = arith.constant 0 : i32
    %c0_i32_0 = arith.constant 0 : i32
    %c0_i32_1 = arith.constant 0 : i32
    return %c0_i32, %c0_i32_0 : i32, i32
  }
  func.func @transform_4(%arg0: i32) -> (i32, i32) {
    %c0_i32 = arith.constant 0 : i32
    %c0_i32_0 = arith.constant 0 : i32
    %c0_i32_1 = arith.constant 0 : i32
    return %c0_i32, %c0_i32_0 : i32, i32
  }
  func.func @transform_5(%arg0: i32) -> (i32, i32, i32) {
    %c0_i32 = arith.constant 0 : i32
    %c0_i32_0 = arith.constant 0 : i32
    %c0_i32_1 = arith.constant 0 : i32
    %c0_i32_2 = arith.constant 0 : i32
    return %c0_i32, %c0_i32_0, %c0_i32_1 : i32, i32, i32
  }
  func.func @transform_6(%arg0: i32) -> (i32, i32, i32) {
    %c0_i32 = arith.constant 0 : i32
    %c0_i32_0 = arith.constant 0 : i32
    %c0_i32_1 = arith.constant 0 : i32
    %c0_i32_2 = arith.constant 0 : i32
    return %c0_i32, %c0_i32_0, %c0_i32_1 : i32, i32, i32
  }
  func.func @transform_7(%arg0: i32) -> (i32, i32) {
    %c0_i32 = arith.constant 0 : i32
    %c0_i32_0 = arith.constant 0 : i32
    %c0_i32_1 = arith.constant 0 : i32
    return %c0_i32, %c0_i32_0 : i32, i32
  }
  func.func @transform_8(%arg0: i32) -> (i32, i32) {
    %c0_i32 = arith.constant 0 : i32
    %c0_i32_0 = arith.constant 0 : i32
    %c0_i32_1 = arith.constant 0 : i32
    return %c0_i32, %c0_i32_0 : i32, i32
  }
  func.func @transform_9(%arg0: i32) -> (i32, i32) {
    %c0_i32 = arith.constant 0 : i32
    %c0_i32_0 = arith.constant 0 : i32
    %c0_i32_1 = arith.constant 0 : i32
    return %c0_i32, %c0_i32_0 : i32, i32
  }
  func.func @transform_10(%arg0: i32) -> (i32, i32) {
    %c0_i32 = arith.constant 0 : i32
    %c0_i32_0 = arith.constant 0 : i32
    %c0_i32_1 = arith.constant 0 : i32
    return %c0_i32, %c0_i32_0 : i32, i32
  }
  func.func @transform_11(%arg0: i32) -> (i32, i32, i32) {
    %c0_i32 = arith.constant 0 : i32
    %c0_i32_0 = arith.constant 0 : i32
    %c0_i32_1 = arith.constant 0 : i32
    return %arg0, %c0_i32, %c0_i32_0 : i32, i32, i32
  }
}

</mosaic_0001>

<llo_original>
// kernel: agent_attention_forward.1
$region0: #{agent_attention_forward.1}
  #allocation0 [shape = 'u32[]', space=smem, size = 0x4, offset = 0x4, fixed_abs, tag = 'smem constant byte address 0x4 - core index']
  #allocation1 [shape = 'u32[72,128]{1,0:T(1,128)}', space=vmem, size = 0x9000, scoped, tag = 'internal scratch']
  %s0 = inlined_call_operand.vmem [shape: f32[2,64,32], index: 0, kind: input, shape index: {}]
  %s1 = inlined_call_operand.vmem [shape: f32[32,32], index: 1, kind: input, shape index: {}]
  %s2 = inlined_call_operand.vmem [shape: f32[32,32], index: 2, kind: input, shape index: {}]
  %s3 = inlined_call_operand.vmem [shape: f32[32,32], index: 3, kind: input, shape index: {}]
  %s4 = inlined_call_operand.vmem [shape: f32[16,64], index: 4, kind: input, shape index: {}]
  %s5 = inlined_call_operand.vmem [shape: f32[4,16,64], index: 5, kind: input, shape index: {}]
  %s6 = inlined_call_operand.vmem [shape: f32[4,64,16], index: 6, kind: input, shape index: {}]
  %s7 = inlined_call_operand.vmem [shape: f32[9,32], index: 7, kind: input, shape index: {}]
  %s8 = inlined_call_operand.vmem [shape: f32[1,32], index: 8, kind: input, shape index: {}]
  %s9 = inlined_call_operand.vmem [shape: f32[32,32], index: 9, kind: input, shape index: {}]
  %s10 = inlined_call_operand.vmem [shape: f32[1,32], index: 10, kind: input, shape index: {}]
  %s11 = inlined_call_operand.vmem [shape: f32[2,64,32], index: 11, kind: output, shape index: {}]
  %s12 = sld [smem:[#allocation0]]
  $region77: #{agent_attention_forward.1} parent=0
    _
  %s14 = ssub.s32 1, %s12
  %s15 = scalar_select 0, %s14, %s12
  loop: start=0, step=1, limit=4
  $region2: #{agent_attention_forward.1} parent=0 // loop_pre_header
    _
  $region3: #{agent_attention_forward.1} parent=0 // loop_header
    %s17 = sphi 0, %s21
    %p18 = scmp.ge.s32.totalorder %s17, 4
    %s27 = sphi 0, %s29
    %s30 = sphi 0, %s27
    %s31 = sphi 0, %s30
    %s47 = sphi 0, %s31
    %s51 = sphi 0, %s51
    %s53 = sphi 0, %s51
    %s54 = sphi 0, %s53
    %s68 = sphi 0, %s54
    %s72 = sphi 0, %s72
    %s74 = sphi 0, %s72
    %s75 = sphi 0, %s74
    %s89 = sphi 0, %s75
    %s93 = sphi 0, %s93
    %s95 = sphi 0, %s93
    %s96 = sphi 0, %s95
    %s110 = sphi 0, %s96
    %s114 = sphi 0, %s114
    %s116 = sphi 0, %s114
    %s117 = sphi 0, %s116
    %s131 = sphi 0, %s117
    %s135 = sphi 0, %s135
    %s137 = sphi 0, %s135
    %s138 = sphi 0, %s137
    %s152 = sphi 0, %s138
    %s156 = sphi 0, %s156
    %s158 = sphi 0, %s156
    %s159 = sphi 0, %s158
    %s173 = sphi 0, %s159
    %s177 = sphi 0, %s177
    %s179 = sphi 0, %s177
    %s180 = sphi 0, %s179
    %s194 = sphi 0, %s180
    %s198 = sphi 0, %s198
    %s200 = sphi 0, %s198
    %s201 = sphi 0, %s200
    %s215 = sphi 0, %s201
    %s219 = sphi 0, %s219
    %s221 = sphi 0, %s219
    %s222 = sphi 0, %s221
    %s236 = sphi 0, %s222
    %s240 = sphi 0, %s240
    %s242 = sphi 0, %s240
    %s243 = sphi 0, %s242
    %s257 = sphi 0, %s243
    %s263 = sphi 0, %s265
    %s266 = sphi 0, %s263
    %s267 = sphi 0, %s266
    %s283 = sphi 0, %s267
  $region4: #{agent_attention_forward.1} parent=0 // loop_header_branch
    %20 = sbr.rel (%p18) target = $region8
  $region5: #{agent_attention_forward.1} parent=0 // loop_body
    %s22 = ssub.s32 %s17, 1
    %s23 = ssub.s32 %s17, 2
    %s24 = sadd.s32 %s17, 1
    %s25 = ssub.s32 %s17, %s24
    %p26 = scmp.eq.s32.totalorder %s25, 0
    %s28 = sadd.s32 %s27, 1
    %s29 = scalar_select %p26, %s27, %s28
    %p32 = pneg %p26
    %p33 = scmp.eq.s32.totalorder %s17, 1
    %p34 = por %p32, %p33
    %p35 = scmp.ne.s32.totalorder %s27, %s30
    %p36 = scmp.eq.s32.totalorder %s17, 0
    %p37 = por %p35, %p36
    %p38 = scmp.ne.s32.totalorder %s27, %s30
    %p39 = scmp.eq.s32.totalorder %s22, 1
    %p40 = por %p38, %p39
    %p41 = scmp.ne.s32.totalorder %s30, %s31
    %p42 = scmp.eq.s32.totalorder %s22, 0
    %p43 = por %p41, %p42
    %p44 = scmp.ne.s32.totalorder %s30, %s31
    %p45 = scmp.eq.s32.totalorder %s23, 1
    %p46 = por %p44, %p45
    %p48 = scmp.ne.s32.totalorder %s31, %s47
    %p49 = scmp.eq.s32.totalorder %s23, 0
    %p50 = por %p48, %p49
    %s52 = sadd.s32 %s51, 1
    %p55 = scmp.eq.s32.totalorder %s17, 1
    %p56 = scmp.ne.s32.totalorder %s51, %s53
    %p57 = scmp.eq.s32.totalorder %s17, 0
    %p58 = por %p56, %p57
    %p59 = scmp.ne.s32.totalorder %s51, %s53
    %p60 = scmp.eq.s32.totalorder %s22, 1
    %p61 = por %p59, %p60
    %p62 = scmp.ne.s32.totalorder %s53, %s54
    %p63 = scmp.eq.s32.totalorder %s22, 0
    %p64 = por %p62, %p63
    %p65 = scmp.ne.s32.totalorder %s53, %s54
    %p66 = scmp.eq.s32.totalorder %s23, 1
    %p67 = por %p65, %p66
    %p69 = scmp.ne.s32.totalorder %s54, %s68
    %p70 = scmp.eq.s32.totalorder %s23, 0
    %p71 = por %p69, %p70
    %s73 = sadd.s32 %s72, 1
    %p76 = scmp.eq.s32.totalorder %s17, 1
    %p77 = scmp.ne.s32.totalorder %s72, %s74
    %p78 = scmp.eq.s32.totalorder %s17, 0
    %p79 = por %p77, %p78
    %p80 = scmp.ne.s32.totalorder %s72, %s74
    %p81 = scmp.eq.s32.totalorder %s22, 1
    %p82 = por %p80, %p81
    %p83 = scmp.ne.s32.totalorder %s74, %s75
    %p84 = scmp.eq.s32.totalorder %s22, 0
    %p85 = por %p83, %p84
    %p86 = scmp.ne.s32.totalorder %s74, %s75
    %p87 = scmp.eq.s32.totalorder %s23, 1
    %p88 = por %p86, %p87
    %p90 = scmp.ne.s32.totalorder %s75, %s89
    %p91 = scmp.eq.s32.totalorder %s23, 0
    %p92 = por %p90, %p91
    %s94 = sadd.s32 %s93, 1
    %p97 = scmp.eq.s32.totalorder %s17, 1
    %p98 = scmp.ne.s32.totalorder %s93, %s95
    %p99 = scmp.eq.s32.totalorder %s17, 0
    %p100 = por %p98, %p99
    %p101 = scmp.ne.s32.totalorder %s93, %s95
    %p102 = scmp.eq.s32.totalorder %s22, 1
    %p103 = por %p101, %p102
    %p104 = scmp.ne.s32.totalorder %s95, %s96
    %p105 = scmp.eq.s32.totalorder %s22, 0
    %p106 = por %p104, %p105
    %p107 = scmp.ne.s32.totalorder %s95, %s96
    %p108 = scmp.eq.s32.totalorder %s23, 1
    %p109 = por %p107, %p108
    %p111 = scmp.ne.s32.totalorder %s96, %s110
    %p112 = scmp.eq.s32.totalorder %s23, 0
    %p113 = por %p111, %p112
    %s115 = sadd.s32 %s114, 1
    %p118 = scmp.eq.s32.totalorder %s17, 1
    %p119 = scmp.ne.s32.totalorder %s114, %s116
    %p120 = scmp.eq.s32.totalorder %s17, 0
    %p121 = por %p119, %p120
    %p122 = scmp.ne.s32.totalorder %s114, %s116
    %p123 = scmp.eq.s32.totalorder %s22, 1
    %p124 = por %p122, %p123
    %p125 = scmp.ne.s32.totalorder %s116, %s117
    %p126 = scmp.eq.s32.totalorder %s22, 0
    %p127 = por %p125, %p126
    %p128 = scmp.ne.s32.totalorder %s116, %s117
    %p129 = scmp.eq.s32.totalorder %s23, 1
    %p130 = por %p128, %p129
    %p132 = scmp.ne.s32.totalorder %s117, %s131
    %p133 = scmp.eq.s32.totalorder %s23, 0
    %p134 = por %p132, %p133
    %s136 = sadd.s32 %s135, 1
    %p139 = scmp.eq.s32.totalorder %s17, 1
    %p140 = scmp.ne.s32.totalorder %s135, %s137
    %p141 = scmp.eq.s32.totalorder %s17, 0
    %p142 = por %p140, %p141
    %p143 = scmp.ne.s32.totalorder %s135, %s137
    %p144 = scmp.eq.s32.totalorder %s22, 1
    %p145 = por %p143, %p144
    %p146 = scmp.ne.s32.totalorder %s137, %s138
    %p147 = scmp.eq.s32.totalorder %s22, 0
    %p148 = por %p146, %p147
    %p149 = scmp.ne.s32.totalorder %s137, %s138
    %p150 = scmp.eq.s32.totalorder %s23, 1
    %p151 = por %p149, %p150
    %p153 = scmp.ne.s32.totalorder %s138, %s152
    %p154 = scmp.eq.s32.totalorder %s23, 0
    %p155 = por %p153, %p154
    %s157 = sadd.s32 %s156, 1
    %p160 = scmp.eq.s32.totalorder %s17, 1
    %p161 = scmp.ne.s32.totalorder %s156, %s158
    %p162 = scmp.eq.s32.totalorder %s17, 0
    %p163 = por %p161, %p162
    %p164 = scmp.ne.s32.totalorder %s156, %s158
    %p165 = scmp.eq.s32.totalorder %s22, 1
    %p166 = por %p164, %p165
    %p167 = scmp.ne.s32.totalorder %s158, %s159
    %p168 = scmp.eq.s32.totalorder %s22, 0
    %p169 = por %p167, %p168
    %p170 = scmp.ne.s32.totalorder %s158, %s159
    %p171 = scmp.eq.s32.totalorder %s23, 1
    %p172 = por %p170, %p171
    %p174 = scmp.ne.s32.totalorder %s159, %s173
    %p175 = scmp.eq.s32.totalorder %s23, 0
    %p176 = por %p174, %p175
    %s178 = sadd.s32 %s177, 1
    %p181 = scmp.eq.s32.totalorder %s17, 1
    %p182 = scmp.ne.s32.totalorder %s177, %s179
    %p183 = scmp.eq.s32.totalorder %s17, 0
    %p184 = por %p182, %p183
    %p185 = scmp.ne.s32.totalorder %s177, %s179
    %p186 = scmp.eq.s32.totalorder %s22, 1
    %p187 = por %p185, %p186
    %p188 = scmp.ne.s32.totalorder %s179, %s180
    %p189 = scmp.eq.s32.totalorder %s22, 0
    %p190 = por %p188, %p189
    %p191 = scmp.ne.s32.totalorder %s179, %s180
    %p192 = scmp.eq.s32.totalorder %s23, 1
    %p193 = por %p191, %p192
    %p195 = scmp.ne.s32.totalorder %s180, %s194
    %p196 = scmp.eq.s32.totalorder %s23, 0
    %p197 = por %p195, %p196
    %s199 = sadd.s32 %s198, 1
    %p202 = scmp.eq.s32.totalorder %s17, 1
    %p203 = scmp.ne.s32.totalorder %s198, %s200
    %p204 = scmp.eq.s32.totalorder %s17, 0
    %p205 = por %p203, %p204
    %p206 = scmp.ne.s32.totalorder %s198, %s200
    %p207 = scmp.eq.s32.totalorder %s22, 1
    %p208 = por %p206, %p207
    %p209 = scmp.ne.s32.totalorder %s200, %s201
    %p210 = scmp.eq.s32.totalorder %s22, 0
    %p211 = por %p209, %p210
    %p212 = scmp.ne.s32.totalorder %s200, %s201
    %p213 = scmp.eq.s32.totalorder %s23, 1
    %p214 = por %p212, %p213
    %p216 = scmp.ne.s32.totalorder %s201, %s215
    %p217 = scmp.eq.s32.totalorder %s23, 0
    %p218 = por %p216, %p217
    %s220 = sadd.s32 %s219, 1
    %p223 = scmp.eq.s32.totalorder %s17, 1
    %p224 = scmp.ne.s32.totalorder %s219, %s221
    %p225 = scmp.eq.s32.totalorder %s17, 0
    %p226 = por %p224, %p225
    %p227 = scmp.ne.s32.totalorder %s219, %s221
    %p228 = scmp.eq.s32.totalorder %s22, 1
    %p229 = por %p227, %p228
    %p230 = scmp.ne.s32.totalorder %s221, %s222
    %p231 = scmp.eq.s32.totalorder %s22, 0
    %p232 = por %p230, %p231
    %p233 = scmp.ne.s32.totalorder %s221, %s222
    %p234 = scmp.eq.s32.totalorder %s23, 1
    %p235 = por %p233, %p234
    %p237 = scmp.ne.s32.totalorder %s222, %s236
    %p238 = scmp.eq.s32.totalorder %s23, 0
    %p239 = por %p237, %p238
    %s241 = sadd.s32 %s240, 1
    %p244 = scmp.eq.s32.totalorder %s17, 1
    %p245 = scmp.ne.s32.totalorder %s240, %s242
    %p246 = scmp.eq.s32.totalorder %s17, 0
    %p247 = por %p245, %p246
    %p248 = scmp.ne.s32.totalorder %s240, %s242
    %p249 = scmp.eq.s32.totalorder %s22, 1
    %p250 = por %p248, %p249
    %p251 = scmp.ne.s32.totalorder %s242, %s243
    %p252 = scmp.eq.s32.totalorder %s22, 0
    %p253 = por %p251, %p252
    %p254 = scmp.ne.s32.totalorder %s242, %s243
    %p255 = scmp.eq.s32.totalorder %s23, 1
    %p256 = por %p254, %p255
    %p258 = scmp.ne.s32.totalorder %s243, %s257
    %p259 = scmp.eq.s32.totalorder %s23, 0
    %p260 = por %p258, %p259
    %s261 = ssub.s32 %s17, %s24
    %p262 = scmp.eq.s32.totalorder %s261, 0
    %s264 = sadd.s32 %s263, 1
    %s265 = scalar_select %p262, %s263, %s264
    %p268 = pneg %p262
    %p269 = scmp.eq.s32.totalorder %s17, 1
    %p270 = por %p268, %p269
    %p271 = scmp.ne.s32.totalorder %s263, %s266
    %p272 = scmp.eq.s32.totalorder %s17, 0
    %p273 = por %p271, %p272
    %p274 = scmp.ne.s32.totalorder %s263, %s266
    %p275 = scmp.eq.s32.totalorder %s22, 1
    %p276 = por %p274, %p275
    %p277 = scmp.ne.s32.totalorder %s266, %s267
    %p278 = scmp.eq.s32.totalorder %s22, 0
    %p279 = por %p277, %p278
    %p280 = scmp.ne.s32.totalorder %s266, %s267
    %p281 = scmp.eq.s32.totalorder %s23, 1
    %p282 = por %p280, %p281
    %p284 = scmp.ne.s32.totalorder %s267, %s283
    %p285 = scmp.eq.s32.totalorder %s23, 0
    %p286 = por %p284, %p285
    %p287 = scmp.le.s32.totalorder 1, %s17
    %p288 = scmp.lt.s32.totalorder %s17, 3
    %p289 = pnand %p287, %p288
    %p290 = pneg %p289
    // Predicated region
    $region9: #{agent_attention_forward.1} parent=5 // pred_check
      _
    $region10: #{agent_attention_forward.1} parent=5 // pred_check_branch
      %292 = sbr.rel (%p289) target = $region12
    $region11: #{agent_attention_forward.1} parent=5 // pred_region
      %s293 = ssub.s32 %s17, 1
      // Predicated region
      $region13: #{agent_attention_forward.1} parent=11 // pred_check
        %p294 = pneg %p64
      $region14: #{agent_attention_forward.1} parent=11 // pred_check_branch
        %296 = sbr.rel (%p294) target = $region16
      $region15: #{agent_attention_forward.1} parent=11 // pred_region
        _
      $region16: #{agent_attention_forward.1} parent=11 // pred_fallthru
        _
      // Predicated region
      $region17: #{agent_attention_forward.1} parent=11 // pred_check
        %p297 = pneg %p85
      $region18: #{agent_attention_forward.1} parent=11 // pred_check_branch
        %299 = sbr.rel (%p297) target = $region20
      $region19: #{agent_attention_forward.1} parent=11 // pred_region
        _
      $region20: #{agent_attention_forward.1} parent=11 // pred_fallthru
        _
      // Predicated region
      $region21: #{agent_attention_forward.1} parent=11 // pred_check
        %p300 = pneg %p106
      $region22: #{agent_attention_forward.1} parent=11 // pred_check_branch
        %302 = sbr.rel (%p300) target = $region24
      $region23: #{agent_attention_forward.1} parent=11 // pred_region
        _
      $region24: #{agent_attention_forward.1} parent=11 // pred_fallthru
        _
      // Predicated region
      $region25: #{agent_attention_forward.1} parent=11 // pred_check
        %p303 = pneg %p127
      $region26: #{agent_attention_forward.1} parent=11 // pred_check_branch
        %305 = sbr.rel (%p303) target = $region28
      $region27: #{agent_attention_forward.1} parent=11 // pred_region
        _
      $region28: #{agent_attention_forward.1} parent=11 // pred_fallthru
        _
      // Predicated region
      $region29: #{agent_attention_forward.1} parent=11 // pred_check
        %p306 = pneg %p148
      $region30: #{agent_attention_forward.1} parent=11 // pred_check_branch
        %308 = sbr.rel (%p306) target = $region32
      $region31: #{agent_attention_forward.1} parent=11 // pred_region
        _
      $region32: #{agent_attention_forward.1} parent=11 // pred_fallthru
        _
      // Predicated region
      $region33: #{agent_attention_forward.1} parent=11 // pred_check
        %p309 = pneg %p169
      $region34: #{agent_attention_forward.1} parent=11 // pred_check_branch
        %311 = sbr.rel (%p309) target = $region36
      $region35: #{agent_attention_forward.1} parent=11 // pred_region
        _
      $region36: #{agent_attention_forward.1} parent=11 // pred_fallthru
        _
      // Predicated region
      $region37: #{agent_attention_forward.1} parent=11 // pred_check
        %p312 = pneg %p190
      $region38: #{agent_attention_forward.1} parent=11 // pred_check_branch
        %314 = sbr.rel (%p312) target = $region40
      $region39: #{agent_attention_forward.1} parent=11 // pred_region
        _
      $region40: #{agent_attention_forward.1} parent=11 // pred_fallthru
        _
      // Predicated region
      $region41: #{agent_attention_forward.1} parent=11 // pred_check
        %p315 = pneg %p211
      $region42: #{agent_attention_forward.1} parent=11 // pred_check_branch
        %317 = sbr.rel (%p315) target = $region44
      $region43: #{agent_attention_forward.1} parent=11 // pred_region
        _
      $region44: #{agent_attention_forward.1} parent=11 // pred_fallthru
        _
      // Predicated region
      $region45: #{agent_attention_forward.1} parent=11 // pred_check
        %p318 = pneg %p232
      $region46: #{agent_attention_forward.1} parent=11 // pred_check_branch
        %320 = sbr.rel (%p318) target = $region48
      $region47: #{agent_attention_forward.1} parent=11 // pred_region
        _
      $region48: #{agent_attention_forward.1} parent=11 // pred_fallthru
        _
      // Predicated region
      $region49: #{agent_attention_forward.1} parent=11 // pred_check
        %p321 = pneg %p253
      $region50: #{agent_attention_forward.1} parent=11 // pred_check_branch
        %323 = sbr.rel (%p321) target = $region52
      $region51: #{agent_attention_forward.1} parent=11 // pred_region
        _
      $region52: #{agent_attention_forward.1} parent=11 // pred_fallthru
        _
    $region12: #{agent_attention_forward.1} parent=5 // pred_fallthru
      _
    %p324 = scmp.lt.s32.totalorder %s17, 2
    // Predicated region
    $region53: #{agent_attention_forward.1} parent=5 // pred_check
      %p325 = pneg %p324
    $region54: #{agent_attention_forward.1} parent=5 // pred_check_branch
      %327 = sbr.rel (%p325) target = $region56
    $region55: #{agent_attention_forward.1} parent=5 // pred_region
      // Predicated region
      $region57: #{agent_attention_forward.1} parent=55 // pred_check
        %p328 = pneg %p37
      $region58: #{agent_attention_forward.1} parent=55 // pred_check_branch
        %330 = sbr.rel (%p328) target = $region60
      $region59: #{agent_attention_forward.1} parent=55 // pred_region
        %p331 = scmp.lt.s32.totalorder %s17, 1
        %s332 = scalar_select %p331, %s17, 1
        %s333 = smul.addr %s332, 8
        %s334 = smul.addr %s333, 8
        %s335 = scalar_lea.vmem %s0, %s334
      $region60: #{agent_attention_forward.1} parent=55 // pred_fallthru
        _
    $region56: #{agent_attention_forward.1} parent=5 // pred_fallthru
      _
    %p336 = scmp.le.s32.totalorder 1, %s17
    %p337 = scmp.lt.s32.totalorder %s17, 3
    %p338 = pnand %p336, %p337
    %p339 = pneg %p338
    // Predicated region
    $region61: #{agent_attention_forward.1} parent=5 // pred_check
      _
    $region62: #{agent_attention_forward.1} parent=5 // pred_check_branch
      %341 = sbr.rel (%p338) target = $region64
    $region63: #{agent_attention_forward.1} parent=5 // pred_region
      %s342 = ssub.s32 %s17, 1
      %p343 = scmp.lt.s32.totalorder %s22, 1
      %s344 = scalar_select %p343, %s22, 1
      %s345 = smul.addr %s344, 8
      %s346 = smul.addr %s345, 8
      %s347 = scalar_lea.vmem %s0, %s346
      %p348 = pneg %p43
      %p349 = pneg %p40
      %p350 = pneg %p64
      %p351 = pneg %p61
      %p352 = pneg %p85
      %p353 = pneg %p82
      %p354 = pneg %p106
      %p355 = pneg %p103
      %p356 = pneg %p127
      %p357 = pneg %p124
      %p358 = pneg %p148
      %p359 = pneg %p145
      %p360 = pneg %p169
      %p361 = pneg %p166
      %p362 = pneg %p190
      %p363 = pneg %p187
      %p364 = pneg %p211
      %p365 = pneg %p208
      %p366 = pneg %p232
      %p367 = pneg %p229
      %p368 = pneg %p253
      %p369 = pneg %p250
      %p370 = pneg %p279
      %p371 = pneg %p276
      %p372 = scmp.lt.s32.totalorder %s22, 1
      %s373 = scalar_select %p372, %s22, 1
      %s374 = smul.addr %s373, 8
      %s375 = smul.addr %s374, 8
      %s376 = scalar_lea.vmem %s11, %s375
      %p377 = scmp.lt.s32.totalorder %s22, 1
      %s378 = scalar_select %p377, %s22, 1
      %s379 = smul.addr %s378, 8
      %s380 = smul.addr %s379, 8
      %s381 = scalar_lea.vmem %s0, %s380
      %p382 = scmp.lt.s32.totalorder %s22, 1
      %s383 = scalar_select %p382, %s22, 1
      %s384 = smul.addr %s383, 8
      %s385 = smul.addr %s384, 8
      %s386 = scalar_lea.vmem %s11, %s385
      %v387 = vld [vmem:[%s381] sm:$0xff]
      %v388 = vld [vmem:[%s381 + $0x8] sm:$0xff]
      %v389 = vld [vmem:[%s381 + $0x10] sm:$0xff]
      %v390 = vld [vmem:[%s381 + $0x18] sm:$0xff]
      %v391 = vld [vmem:[%s381 + $0x20] sm:$0xff]
      %v392 = vld [vmem:[%s381 + $0x28] sm:$0xff]
      %v393 = vld [vmem:[%s381 + $0x30] sm:$0xff]
      %v394 = vld [vmem:[%s381 + $0x38] sm:$0xff]
      %v395 = vld [vmem:[%s1] sm:$0xff]
      %v396 = vld [vmem:[%s1 + $0x8] sm:$0xff]
      %v397 = vld [vmem:[%s1 + $0x10] sm:$0xff]
      %v398 = vld [vmem:[%s1 + $0x18] sm:$0xff]
      %vm399 = vcmask 261120
      %v401 = vsel %vm399, %v387, 0
      %v404 = vsel %vm399, %v388, 0
      %v407 = vsel %vm399, %v389, 0
      %v410 = vsel %vm399, %v390, 0
      %v413 = vsel %vm399, %v391, 0
      %v416 = vsel %vm399, %v392, 0
      %v419 = vsel %vm399, %v393, 0
      %v422 = vsel %vm399, %v394, 0
      %424 = vmatpush.msra.mxu0 0.0
      %425 = vmatpush.msra.mxu0 0.0
      %426 = vmatpush.msra.mxu0 0.0
      %427 = vmatpush.msra.mxu0 0.0
      %428 = vmatpush.msra.mxu0 0.0
      %429 = vmatpush.msra.mxu0 0.0
      %430 = vmatpush.msra.mxu0 0.0
      %431 = vmatpush.msra.mxu0 0.0
      %432 = vmatpush.msra.mxu0 0.0
      %433 = vmatpush.msra.mxu0 0.0
      %434 = vmatpush.msra.mxu0 0.0
      %435 = vmatpush.msra.mxu0 0.0
      %436 = vmatpush.msra.mxu0 %v398
      %437 = vmatpush.msra.mxu0 %v397
      %438 = vmatpush.msra.mxu0 %v396
      %439 = vmatpush.msra.mxu0 %v395
      %440 = vmatmul.f32.gmra.mxu0 %v401
      %v441 = vpop.f32.mrf.mxu0
      %v442 = vadd.f32 0.0, %v441
      %443 = vmatmul.f32.gmra.mxu0 %v404
      %v444 = vpop.f32.mrf.mxu0
      %v445 = vadd.f32 0.0, %v444
      %446 = vmatmul.f32.gmra.mxu0 %v407
      %v447 = vpop.f32.mrf.mxu0
      %v448 = vadd.f32 0.0, %v447
      %449 = vmatmul.f32.gmra.mxu0 %v410
      %v450 = vpop.f32.mrf.mxu0
      %v451 = vadd.f32 0.0, %v450
      %452 = vmatmul.f32.gmra.mxu0 %v413
      %v453 = vpop.f32.mrf.mxu0
      %v454 = vadd.f32 0.0, %v453
      %455 = vmatmul.f32.gmra.mxu0 %v416
      %v456 = vpop.f32.mrf.mxu0
      %v457 = vadd.f32 0.0, %v456
      %458 = vmatmul.f32.gmra.mxu0 %v419
      %v459 = vpop.f32.mrf.mxu0
      %v460 = vadd.f32 0.0, %v459
      %461 = vmatmul.f32.gmra.mxu0 %v422
      %v462 = vpop.f32.mrf.mxu0
      %v463 = vadd.f32 0.0, %v462
      %464 = vdwg.mxu0
      %v465 = vld [vmem:[%s2] sm:$0xff]
      %v466 = vld [vmem:[%s2 + $0x8] sm:$0xff]
      %v467 = vld [vmem:[%s2 + $0x10] sm:$0xff]
      %v468 = vld [vmem:[%s2 + $0x18] sm:$0xff]
      %469 = vmatpush.msra.mxu0 0.0
      %470 = vmatpush.msra.mxu0 0.0
      %471 = vmatpush.msra.mxu0 0.0
      %472 = vmatpush.msra.mxu0 0.0
      %473 = vmatpush.msra.mxu0 0.0
      %474 = vmatpush.msra.mxu0 0.0
      %475 = vmatpush.msra.mxu0 0.0
      %476 = vmatpush.msra.mxu0 0.0
      %477 = vmatpush.msra.mxu0 0.0
      %478 = vmatpush.msra.mxu0 0.0
      %479 = vmatpush.msra.mxu0 0.0
      %480 = vmatpush.msra.mxu0 0.0
      %481 = vmatpush.msra.mxu0 %v468
      %482 = vmatpush.msra.mxu0 %v467
      %483 = vmatpush.msra.mxu0 %v466
      %484 = vmatpush.msra.mxu0 %v465
      %485 = vmatmul.f32.gmra.mxu0 %v401
      %v486 = vpop.f32.mrf.mxu0
      %v487 = vadd.f32 0.0, %v486
      %488 = vmatmul.f32.gmra.mxu0 %v404
      %v489 = vpop.f32.mrf.mxu0
      %v490 = vadd.f32 0.0, %v489
      %491 = vmatmul.f32.gmra.mxu0 %v407
      %v492 = vpop.f32.mrf.mxu0
      %v493 = vadd.f32 0.0, %v492
      %494 = vmatmul.f32.gmra.mxu0 %v410
      %v495 = vpop.f32.mrf.mxu0
      %v496 = vadd.f32 0.0, %v495
      %497 = vmatmul.f32.gmra.mxu0 %v413
      %v498 = vpop.f32.mrf.mxu0
      %v499 = vadd.f32 0.0, %v498
      %500 = vmatmul.f32.gmra.mxu0 %v416
      %v501 = vpop.f32.mrf.mxu0
      %v502 = vadd.f32 0.0, %v501
      %503 = vmatmul.f32.gmra.mxu0 %v419
      %v504 = vpop.f32.mrf.mxu0
      %v505 = vadd.f32 0.0, %v504
      %506 = vmatmul.f32.gmra.mxu0 %v422
      %v507 = vpop.f32.mrf.mxu0
      %v508 = vadd.f32 0.0, %v507
      %509 = vdwg.mxu0
      %v510 = vld [vmem:[%s3] sm:$0xff]
      %v511 = vld [vmem:[%s3 + $0x8] sm:$0xff]
      %v512 = vld [vmem:[%s3 + $0x10] sm:$0xff]
      %v513 = vld [vmem:[%s3 + $0x18] sm:$0xff]
      %514 = vmatpush.msra.mxu0 0.0
      %515 = vmatpush.msra.mxu0 0.0
      %516 = vmatpush.msra.mxu0 0.0
      %517 = vmatpush.msra.mxu0 0.0
      %518 = vmatpush.msra.mxu0 0.0
      %519 = vmatpush.msra.mxu0 0.0
      %520 = vmatpush.msra.mxu0 0.0
      %521 = vmatpush.msra.mxu0 0.0
      %522 = vmatpush.msra.mxu0 0.0
      %523 = vmatpush.msra.mxu0 0.0
      %524 = vmatpush.msra.mxu0 0.0
      %525 = vmatpush.msra.mxu0 0.0
      %526 = vmatpush.msra.mxu0 %v513
      %527 = vmatpush.msra.mxu0 %v512
      %528 = vmatpush.msra.mxu0 %v511
      %529 = vmatpush.msra.mxu0 %v510
      %530 = vmatmul.f32.gmra.mxu0 %v401
      %v531 = vpop.f32.mrf.mxu0
      %v532 = vadd.f32 0.0, %v531
      %533 = vmatmul.f32.gmra.mxu0 %v404
      %v534 = vpop.f32.mrf.mxu0
      %v535 = vadd.f32 0.0, %v534
      %536 = vmatmul.f32.gmra.mxu0 %v407
      %v537 = vpop.f32.mrf.mxu0
      %v538 = vadd.f32 0.0, %v537
      %539 = vmatmul.f32.gmra.mxu0 %v410
      %v540 = vpop.f32.mrf.mxu0
      %v541 = vadd.f32 0.0, %v540
      %542 = vmatmul.f32.gmra.mxu0 %v413
      %v543 = vpop.f32.mrf.mxu0
      %v544 = vadd.f32 0.0, %v543
      %545 = vmatmul.f32.gmra.mxu0 %v416
      %v546 = vpop.f32.mrf.mxu0
      %v547 = vadd.f32 0.0, %v546
      %548 = vmatmul.f32.gmra.mxu0 %v419
      %v549 = vpop.f32.mrf.mxu0
      %v550 = vadd.f32 0.0, %v549
      %551 = vmatmul.f32.gmra.mxu0 %v422
      %v552 = vpop.f32.mrf.mxu0
      %v553 = vadd.f32 0.0, %v552
      %554 = vdwg.mxu0
      %v555 = vld [vmem:[%s4] sm:$0xff]
      %v556 = vld [vmem:[%s4 + $0x8] sm:$0xff]
      %vm557 = vcmask 523264
      %v559 = vsel %vm557, %v555, 0
      %v562 = vsel %vm557, %v556, 0
      %564 = vmatpush.msra.mxu0 0.0
      %565 = vmatpush.msra.mxu0 0.0
      %566 = vmatpush.msra.mxu0 0.0
      %567 = vmatpush.msra.mxu0 0.0
      %568 = vmatpush.msra.mxu0 0.0
      %569 = vmatpush.msra.mxu0 0.0
      %570 = vmatpush.msra.mxu0 0.0
      %571 = vmatpush.msra.mxu0 0.0
      %572 = vmatpush.msra.mxu0 %v463
      %573 = vmatpush.msra.mxu0 %v460
      %574 = vmatpush.msra.mxu0 %v457
      %575 = vmatpush.msra.mxu0 %v454
      %576 = vmatpush.msra.mxu0 %v451
      %577 = vmatpush.msra.mxu0 %v448
      %578 = vmatpush.msra.mxu0 %v445
      %579 = vmatpush.msra.mxu0 %v442
      %580 = vmatmul.f32.gmra.mxu0 %v559
      %v581 = vpop.f32.mrf.mxu0
      %v582 = vadd.f32 0.0, %v581
      %583 = vmatmul.f32.gmra.mxu0 %v562
      %v584 = vpop.f32.mrf.mxu0
      %v585 = vadd.f32 0.0, %v584
      %586 = vdwg.mxu0
      %v587 = vmul.f32 %v442, 0.35355338
      %v588 = vmul.f32 %v445, 0.35355338
      %v589 = vmul.f32 %v448, 0.35355338
      %v590 = vmul.f32 %v451, 0.35355338
      %v591 = vmul.f32 %v454, 0.35355338
      %v592 = vmul.f32 %v457, 0.35355338
      %v593 = vmul.f32 %v460, 0.35355338
      %v594 = vmul.f32 %v463, 0.35355338
      %v595 = vmul.f32 %v487, 0.35355338
      %v596 = vmul.f32 %v490, 0.35355338
      %v597 = vmul.f32 %v493, 0.35355338
      %v598 = vmul.f32 %v496, 0.35355338
      %v599 = vmul.f32 %v499, 0.35355338
      %v600 = vmul.f32 %v502, 0.35355338
      %v601 = vmul.f32 %v505, 0.35355338
      %v602 = vmul.f32 %v508, 0.35355338
      %v603 = vld [vmem:[%s5] sm:$0xff]
      %v604 = vld [vmem:[%s5 + $0x8] sm:$0xff]
      %vm605 = vcmask 64512
      %v607 = vsel %vm605, %v582, 0
      %v610 = vsel %vm605, %v585, 0
      %v613 = vsel %vm605, %v595, 0
      %v616 = vsel %vm605, %v596, 0
      %v619 = vsel %vm605, %v597, 0
      %v622 = vsel %vm605, %v598, 0
      %v625 = vsel %vm605, %v599, 0
      %v628 = vsel %vm605, %v600, 0
      %v631 = vsel %vm605, %v601, 0
      %v634 = vsel %vm605, %v602, 0
      %636 = vmatpush.xpose.msra.mxu0 0.0
      %637 = vmatpush.xpose.msra.mxu0 0.0
      %638 = vmatpush.xpose.msra.mxu0 0.0
      %639 = vmatpush.xpose.msra.mxu0 0.0
      %640 = vmatpush.xpose.msra.mxu0 0.0
      %641 = vmatpush.xpose.msra.mxu0 0.0
      %642 = vmatpush.xpose.msra.mxu0 0.0
      %643 = vmatpush.xpose.msra.mxu0 0.0
      %644 = vmatpush.xpose.msra.mxu0 %v634
      %645 = vmatpush.xpose.msra.mxu0 %v631
      %646 = vmatpush.xpose.msra.mxu0 %v628
      %647 = vmatpush.xpose.msra.mxu0 %v625
      %648 = vmatpush.xpose.msra.mxu0 %v622
      %649 = vmatpush.xpose.msra.mxu0 %v619
      %650 = vmatpush.xpose.msra.mxu0 %v616
      %651 = vmatpush.xpose.msra.mxu0 %v613
      %652 = vmatmul.f32.gmra.mxu0 %v607
      %v653 = vpop.f32.mrf.mxu0
      %v654 = vadd.f32 %v603, %v653
      %655 = vmatmul.f32.gmra.mxu0 %v610
      %v656 = vpop.f32.mrf.mxu0
      %v657 = vadd.f32 %v604, %v656
      %658 = vdwg.mxu0
      %v659 = vsel %vm557, %v654, -inf
      %660 = vmax.xlane.f32.xlu0 %v659
      %v661 = vpop.xlane.xlu0 %660
      %v662 = vsel %vm557, %v657, -inf
      %663 = vmax.xlane.f32.xlu0 %v662
      %v664 = vpop.xlane.xlu0 %663
      %v665 = vsub.f32 %v654, %v661
      %v666 = vsub.f32 %v657, %v664
      %v667 = vmul.f32 %v665, 1.442695
      %v668 = vpow.pop %v667
      %v669 = vmul.f32 %v666, 1.442695
      %v670 = vpow.pop %v669
      %v671 = vsel %vm557, %v668, 0.0
      %672 = vadd.xlane.f32.xlu0 %v671
      %v673 = vpop.xlane.xlu0 %672
      %v674 = vsel %vm557, %v670, 0.0
      %675 = vadd.xlane.f32.xlu0 %v674
      %v676 = vpop.xlane.xlu0 %675
      %v677 = vrcp.pop %v673
      %v678 = vrcp.pop %v676
      %v679 = vmul.f32 %v668, %v677
      %v680 = vmul.f32 %v670, %v678
      %v682 = vsel %vm557, %v679, 0
      %v685 = vsel %vm557, %v680, 0
      %687 = vmatpush.msra.mxu0 0.0
      %688 = vmatpush.msra.mxu0 0.0
      %689 = vmatpush.msra.mxu0 0.0
      %690 = vmatpush.msra.mxu0 0.0
      %691 = vmatpush.msra.mxu0 0.0
      %692 = vmatpush.msra.mxu0 0.0
      %693 = vmatpush.msra.mxu0 0.0
      %694 = vmatpush.msra.mxu0 0.0
      %695 = vmatpush.msra.mxu0 %v553
      %696 = vmatpush.msra.mxu0 %v550
      %697 = vmatpush.msra.mxu0 %v547
      %698 = vmatpush.msra.mxu0 %v544
      %699 = vmatpush.msra.mxu0 %v541
      %700 = vmatpush.msra.mxu0 %v538
      %701 = vmatpush.msra.mxu0 %v535
      %702 = vmatpush.msra.mxu0 %v532
      %703 = vmatmul.f32.gmra.mxu0 %v682
      %v704 = vpop.f32.mrf.mxu0
      %v705 = vadd.f32 0.0, %v704
      %706 = vmatmul.f32.gmra.mxu0 %v685
      %v707 = vpop.f32.mrf.mxu0
      %v708 = vadd.f32 0.0, %v707
      %709 = vdwg.mxu0
      %v710 = vld [vmem:[%s6] sm:$0xff]
      %v711 = vld [vmem:[%s6 + $0x8] sm:$0xff]
      %v712 = vld [vmem:[%s6 + $0x10] sm:$0xff]
      %v713 = vld [vmem:[%s6 + $0x18] sm:$0xff]
      %v714 = vld [vmem:[%s6 + $0x20] sm:$0xff]
      %v715 = vld [vmem:[%s6 + $0x28] sm:$0xff]
      %v716 = vld [vmem:[%s6 + $0x30] sm:$0xff]
      %v717 = vld [vmem:[%s6 + $0x38] sm:$0xff]
      %v719 = vsel %vm605, %v587, 0
      %v722 = vsel %vm605, %v588, 0
      %v725 = vsel %vm605, %v589, 0
      %v728 = vsel %vm605, %v590, 0
      %v731 = vsel %vm605, %v591, 0
      %v734 = vsel %vm605, %v592, 0
      %v737 = vsel %vm605, %v593, 0
      %v740 = vsel %vm605, %v594, 0
      %742 = vmatpush.xpose.msra.mxu0 0.0
      %743 = vmatpush.xpose.msra.mxu0 0.0
      %744 = vmatpush.xpose.msra.mxu0 0.0
      %745 = vmatpush.xpose.msra.mxu0 0.0
      %746 = vmatpush.xpose.msra.mxu0 0.0
      %747 = vmatpush.xpose.msra.mxu0 0.0
      %748 = vmatpush.xpose.msra.mxu0 0.0
      %749 = vmatpush.xpose.msra.mxu0 0.0
      %750 = vmatpush.xpose.msra.mxu0 0.0
      %751 = vmatpush.xpose.msra.mxu0 0.0
      %752 = vmatpush.xpose.msra.mxu0 0.0
      %753 = vmatpush.xpose.msra.mxu0 0.0
      %754 = vmatpush.xpose.msra.mxu0 0.0
      %755 = vmatpush.xpose.msra.mxu0 0.0
      %756 = vmatpush.xpose.msra.mxu0 %v610
      %757 = vmatpush.xpose.msra.mxu0 %v607
      %758 = vmatmul.f32.gmra.mxu0 %v719
      %v759 = vpop.f32.mrf.mxu0
      %v760 = vadd.f32 %v710, %v759
      %761 = vmatmul.f32.gmra.mxu0 %v722
      %v762 = vpop.f32.mrf.mxu0
      %v763 = vadd.f32 %v711, %v762
      %764 = vmatmul.f32.gmra.mxu0 %v725
      %v765 = vpop.f32.mrf.mxu0
      %v766 = vadd.f32 %v712, %v765
      %767 = vmatmul.f32.gmra.mxu0 %v728
      %v768 = vpop.f32.mrf.mxu0
      %v769 = vadd.f32 %v713, %v768
      %770 = vmatmul.f32.gmra.mxu0 %v731
      %v771 = vpop.f32.mrf.mxu0
      %v772 = vadd.f32 %v714, %v771
      %773 = vmatmul.f32.gmra.mxu0 %v734
      %v774 = vpop.f32.mrf.mxu0
      %v775 = vadd.f32 %v715, %v774
      %776 = vmatmul.f32.gmra.mxu0 %v737
      %v777 = vpop.f32.mrf.mxu0
      %v778 = vadd.f32 %v716, %v777
      %779 = vmatmul.f32.gmra.mxu0 %v740
      %v780 = vpop.f32.mrf.mxu0
      %v781 = vadd.f32 %v717, %v780
      %782 = vdwg.mxu0
      %vm783 = vcmask 130048
      %v784 = vsel %vm783, %v760, -inf
      %785 = vmax.xlane.f32.xlu0 %v784
      %v786 = vpop.xlane.xlu0 %785
      %v787 = vsel %vm783, %v763, -inf
      %788 = vmax.xlane.f32.xlu0 %v787
      %v789 = vpop.xlane.xlu0 %788
      %v790 = vsel %vm783, %v766, -inf
      %791 = vmax.xlane.f32.xlu0 %v790
      %v792 = vpop.xlane.xlu0 %791
      %v793 = vsel %vm783, %v769, -inf
      %794 = vmax.xlane.f32.xlu0 %v793
      %v795 = vpop.xlane.xlu0 %794
      %v796 = vsel %vm783, %v772, -inf
      %797 = vmax.xlane.f32.xlu0 %v796
      %v798 = vpop.xlane.xlu0 %797
      %v799 = vsel %vm783, %v775, -inf
      %800 = vmax.xlane.f32.xlu0 %v799
      %v801 = vpop.xlane.xlu0 %800
      %v802 = vsel %vm783, %v778, -inf
      %803 = vmax.xlane.f32.xlu0 %v802
      %v804 = vpop.xlane.xlu0 %803
      %v805 = vsel %vm783, %v781, -inf
      %806 = vmax.xlane.f32.xlu0 %v805
      %v807 = vpop.xlane.xlu0 %806
      %v808 = vsub.f32 %v760, %v786
      %v809 = vsub.f32 %v763, %v789
      %v810 = vsub.f32 %v766, %v792
      %v811 = vsub.f32 %v769, %v795
      %v812 = vsub.f32 %v772, %v798
      %v813 = vsub.f32 %v775, %v801
      %v814 = vsub.f32 %v778, %v804
      %v815 = vsub.f32 %v781, %v807
      %v816 = vmul.f32 %v808, 1.442695
      %v817 = vpow.pop %v816
      %v818 = vmul.f32 %v809, 1.442695
      %v819 = vpow.pop %v818
      %v820 = vmul.f32 %v810, 1.442695
      %v821 = vpow.pop %v820
      %v822 = vmul.f32 %v811, 1.442695
      %v823 = vpow.pop %v822
      %v824 = vmul.f32 %v812, 1.442695
      %v825 = vpow.pop %v824
      %v826 = vmul.f32 %v813, 1.442695
      %v827 = vpow.pop %v826
      %v828 = vmul.f32 %v814, 1.442695
      %v829 = vpow.pop %v828
      %v830 = vmul.f32 %v815, 1.442695
      %v831 = vpow.pop %v830
      %v832 = vsel %vm783, %v817, 0.0
      %833 = vadd.xlane.f32.xlu0 %v832
      %v834 = vpop.xlane.xlu0 %833
      %v835 = vsel %vm783, %v819, 0.0
      %836 = vadd.xlane.f32.xlu0 %v835
      %v837 = vpop.xlane.xlu0 %836
      %v838 = vsel %vm783, %v821, 0.0
      %839 = vadd.xlane.f32.xlu0 %v838
      %v840 = vpop.xlane.xlu0 %839
      %v841 = vsel %vm783, %v823, 0.0
      %842 = vadd.xlane.f32.xlu0 %v841
      %v843 = vpop.xlane.xlu0 %842
      %v844 = vsel %vm783, %v825, 0.0
      %845 = vadd.xlane.f32.xlu0 %v844
      %v846 = vpop.xlane.xlu0 %845
      %v847 = vsel %vm783, %v827, 0.0
      %848 = vadd.xlane.f32.xlu0 %v847
      %v849 = vpop.xlane.xlu0 %848
      %v850 = vsel %vm783, %v829, 0.0
      %851 = vadd.xlane.f32.xlu0 %v850
      %v852 = vpop.xlane.xlu0 %851
      %v853 = vsel %vm783, %v831, 0.0
      %854 = vadd.xlane.f32.xlu0 %v853
      %v855 = vpop.xlane.xlu0 %854
      %v856 = vrcp.pop %v834
      %v857 = vrcp.pop %v837
      %v858 = vrcp.pop %v840
      %v859 = vrcp.pop %v843
      %v860 = vrcp.pop %v846
      %v861 = vrcp.pop %v849
      %v862 = vrcp.pop %v852
      %v863 = vrcp.pop %v855
      %v864 = vmul.f32 %v817, %v856
      %v865 = vmul.f32 %v819, %v857
      %v866 = vmul.f32 %v821, %v858
      %v867 = vmul.f32 %v823, %v859
      %v868 = vmul.f32 %v825, %v860
      %v869 = vmul.f32 %v827, %v861
      %v870 = vmul.f32 %v829, %v862
      %v871 = vmul.f32 %v831, %v863
      %v873 = vsel %vm783, %v864, 0
      %v876 = vsel %vm783, %v865, 0
      %v879 = vsel %vm783, %v866, 0
      %v882 = vsel %vm783, %v867, 0
      %v885 = vsel %vm783, %v868, 0
      %v888 = vsel %vm783, %v869, 0
      %v891 = vsel %vm783, %v870, 0
      %v894 = vsel %vm783, %v871, 0
      %896 = vmatpush.msra.mxu0 0.0
      %897 = vmatpush.msra.mxu0 0.0
      %898 = vmatpush.msra.mxu0 0.0
      %899 = vmatpush.msra.mxu0 0.0
      %900 = vmatpush.msra.mxu0 0.0
      %901 = vmatpush.msra.mxu0 0.0
      %902 = vmatpush.msra.mxu0 0.0
      %903 = vmatpush.msra.mxu0 0.0
      %904 = vmatpush.msra.mxu0 0.0
      %905 = vmatpush.msra.mxu0 0.0
      %906 = vmatpush.msra.mxu0 0.0
      %907 = vmatpush.msra.mxu0 0.0
      %908 = vmatpush.msra.mxu0 0.0
      %909 = vmatpush.msra.mxu0 0.0
      %910 = vmatpush.msra.mxu0 %v708
      %911 = vmatpush.msra.mxu0 %v705
      %912 = vmatmul.f32.gmra.mxu0 %v873
      %v913 = vpop.f32.mrf.mxu0
      %v914 = vadd.f32 0.0, %v913
      %915 = vmatmul.f32.gmra.mxu0 %v876
      %v916 = vpop.f32.mrf.mxu0
      %v917 = vadd.f32 0.0, %v916
      %918 = vmatmul.f32.gmra.mxu0 %v879
      %v919 = vpop.f32.mrf.mxu0
      %v920 = vadd.f32 0.0, %v919
      %921 = vmatmul.f32.gmra.mxu0 %v882
      %v922 = vpop.f32.mrf.mxu0
      %v923 = vadd.f32 0.0, %v922
      %924 = vmatmul.f32.gmra.mxu0 %v885
      %v925 = vpop.f32.mrf.mxu0
      %v926 = vadd.f32 0.0, %v925
      %927 = vmatmul.f32.gmra.mxu0 %v888
      %v928 = vpop.f32.mrf.mxu0
      %v929 = vadd.f32 0.0, %v928
      %930 = vmatmul.f32.gmra.mxu0 %v891
      %v931 = vpop.f32.mrf.mxu0
      %v932 = vadd.f32 0.0, %v931
      %933 = vmatmul.f32.gmra.mxu0 %v894
      %v934 = vpop.f32.mrf.mxu0
      %v935 = vadd.f32 0.0, %v934
      %936 = vdwg.mxu0
      %s937 = scalar_lea.vmem %s5, 16
      %v938 = vld [vmem:[%s937] sm:$0xff]
      %v939 = vld [vmem:[%s937 + $0x8] sm:$0xff]
      %940 = vrot.lane.b32.xlu0 %v582, 120
      %v941 = vpop.permute.xlu0 %940
      %942 = vrot.lane.b32.xlu0 %v585, 120
      %v943 = vpop.permute.xlu0 %942
      %944 = vrot.lane.b32.xlu0 %v595, 120
      %v945 = vpop.permute.xlu0 %944
      %946 = vrot.lane.b32.xlu0 %v596, 120
      %v947 = vpop.permute.xlu0 %946
      %948 = vrot.lane.b32.xlu0 %v597, 120
      %v949 = vpop.permute.xlu0 %948
      %950 = vrot.lane.b32.xlu0 %v598, 120
      %v951 = vpop.permute.xlu0 %950
      %952 = vrot.lane.b32.xlu0 %v599, 120
      %v953 = vpop.permute.xlu0 %952
      %954 = vrot.lane.b32.xlu0 %v600, 120
      %v955 = vpop.permute.xlu0 %954
      %956 = vrot.lane.b32.xlu0 %v601, 120
      %v957 = vpop.permute.xlu0 %956
      %958 = vrot.lane.b32.xlu0 %v602, 120
      %v959 = vpop.permute.xlu0 %958
      %v960 = vsel %vm605, %v941, 0
      %v962 = vsel %vm605, %v943, 0
      %v964 = vsel %vm605, %v945, 0
      %v966 = vsel %vm605, %v947, 0
      %v968 = vsel %vm605, %v949, 0
      %v970 = vsel %vm605, %v951, 0
      %v972 = vsel %vm605, %v953, 0
      %v974 = vsel %vm605, %v955, 0
      %v976 = vsel %vm605, %v957, 0
      %v978 = vsel %vm605, %v959, 0
      %980 = vmatpush.xpose.msra.mxu0 0.0
      %981 = vmatpush.xpose.msra.mxu0 0.0
      %982 = vmatpush.xpose.msra.mxu0 0.0
      %983 = vmatpush.xpose.msra.mxu0 0.0
      %984 = vmatpush.xpose.msra.mxu0 0.0
      %985 = vmatpush.xpose.msra.mxu0 0.0
      %986 = vmatpush.xpose.msra.mxu0 0.0
      %987 = vmatpush.xpose.msra.mxu0 0.0
      %988 = vmatpush.xpose.msra.mxu0 %v978
      %989 = vmatpush.xpose.msra.mxu0 %v976
      %990 = vmatpush.xpose.msra.mxu0 %v974
      %991 = vmatpush.xpose.msra.mxu0 %v972
      %992 = vmatpush.xpose.msra.mxu0 %v970
      %993 = vmatpush.xpose.msra.mxu0 %v968
      %994 = vmatpush.xpose.msra.mxu0 %v966
      %995 = vmatpush.xpose.msra.mxu0 %v964
      %996 = vmatmul.f32.gmra.mxu0 %v960
      %v997 = vpop.f32.mrf.mxu0
      %v998 = vadd.f32 %v938, %v997
      %999 = vmatmul.f32.gmra.mxu0 %v962
      %v1000 = vpop.f32.mrf.mxu0
      %v1001 = vadd.f32 %v939, %v1000
      %1002 = vdwg.mxu0
      %v1003 = vsel %vm557, %v998, -inf
      %1004 = vmax.xlane.f32.xlu0 %v1003
      %v1005 = vpop.xlane.xlu0 %1004
      %v1006 = vsel %vm557, %v1001, -inf
      %1007 = vmax.xlane.f32.xlu0 %v1006
      %v1008 = vpop.xlane.xlu0 %1007
      %v1009 = vsub.f32 %v998, %v1005
      %v1010 = vsub.f32 %v1001, %v1008
      %v1011 = vmul.f32 %v1009, 1.442695
      %v1012 = vpow.pop %v1011
      %v1013 = vmul.f32 %v1010, 1.442695
      %v1014 = vpow.pop %v1013
      %v1015 = vsel %vm557, %v1012, 0.0
      %1016 = vadd.xlane.f32.xlu0 %v1015
      %v1017 = vpop.xlane.xlu0 %1016
      %v1018 = vsel %vm557, %v1014, 0.0
      %1019 = vadd.xlane.f32.xlu0 %v1018
      %v1020 = vpop.xlane.xlu0 %1019
      %v1021 = vrcp.pop %v1017
      %v1022 = vrcp.pop %v1020
      %v1023 = vmul.f32 %v1012, %v1021
      %v1024 = vmul.f32 %v1014, %v1022
      %1033 = vrot.lane.b32.xlu0 %v532, 120
      %v1034 = vpop.permute.xlu0 %1033
      %1035 = vrot.lane.b32.xlu0 %v535, 120
      %v1036 = vpop.permute.xlu0 %1035
      %1037 = vrot.lane.b32.xlu0 %v538, 120
      %v1038 = vpop.permute.xlu0 %1037
      %1039 = vrot.lane.b32.xlu0 %v541, 120
      %v1040 = vpop.permute.xlu0 %1039
      %1041 = vrot.lane.b32.xlu0 %v544, 120
      %v1042 = vpop.permute.xlu0 %1041
      %1043 = vrot.lane.b32.xlu0 %v547, 120
      %v1044 = vpop.permute.xlu0 %1043
      %1045 = vrot.lane.b32.xlu0 %v550, 120
      %v1046 = vpop.permute.xlu0 %1045
      %1047 = vrot.lane.b32.xlu0 %v553, 120
      %v1048 = vpop.permute.xlu0 %1047
      %v1058 = vsel %vm557, %v1023, 0
      %v1061 = vsel %vm557, %v1024, 0
      %1063 = vmatpush.msra.mxu0 0.0
      %1064 = vmatpush.msra.mxu0 0.0
      %1065 = vmatpush.msra.mxu0 0.0
      %1066 = vmatpush.msra.mxu0 0.0
      %1067 = vmatpush.msra.mxu0 0.0
      %1068 = vmatpush.msra.mxu0 0.0
      %1069 = vmatpush.msra.mxu0 0.0
      %1070 = vmatpush.msra.mxu0 0.0
      %1071 = vmatpush.msra.mxu0 %v1048
      %1072 = vmatpush.msra.mxu0 %v1046
      %1073 = vmatpush.msra.mxu0 %v1044
      %1074 = vmatpush.msra.mxu0 %v1042
      %1075 = vmatpush.msra.mxu0 %v1040
      %1076 = vmatpush.msra.mxu0 %v1038
      %1077 = vmatpush.msra.mxu0 %v1036
      %1078 = vmatpush.msra.mxu0 %v1034
      %1079 = vmatmul.f32.gmra.mxu0 %v1058
      %v1080 = vpop.f32.mrf.mxu0
      %v1081 = vadd.f32 0.0, %v1080
      %1082 = vmatmul.f32.gmra.mxu0 %v1061
      %v1083 = vpop.f32.mrf.mxu0
      %v1084 = vadd.f32 0.0, %v1083
      %1085 = vdwg.mxu0
      %s1086 = scalar_lea.vmem %s6, 64
      %v1087 = vld [vmem:[%s1086] sm:$0xff]
      %v1088 = vld [vmem:[%s1086 + $0x8] sm:$0xff]
      %v1089 = vld [vmem:[%s1086 + $0x10] sm:$0xff]
      %v1090 = vld [vmem:[%s1086 + $0x18] sm:$0xff]
      %v1091 = vld [vmem:[%s1086 + $0x20] sm:$0xff]
      %v1092 = vld [vmem:[%s1086 + $0x28] sm:$0xff]
      %v1093 = vld [vmem:[%s1086 + $0x30] sm:$0xff]
      %v1094 = vld [vmem:[%s1086 + $0x38] sm:$0xff]
      %1095 = vrot.lane.b32.xlu0 %v587, 120
      %v1096 = vpop.permute.xlu0 %1095
      %1097 = vrot.lane.b32.xlu0 %v588, 120
      %v1098 = vpop.permute.xlu0 %1097
      %1099 = vrot.lane.b32.xlu0 %v589, 120
      %v1100 = vpop.permute.xlu0 %1099
      %1101 = vrot.lane.b32.xlu0 %v590, 120
      %v1102 = vpop.permute.xlu0 %1101
      %1103 = vrot.lane.b32.xlu0 %v591, 120
      %v1104 = vpop.permute.xlu0 %1103
      %1105 = vrot.lane.b32.xlu0 %v592, 120
      %v1106 = vpop.permute.xlu0 %1105
      %1107 = vrot.lane.b32.xlu0 %v593, 120
      %v1108 = vpop.permute.xlu0 %1107
      %1109 = vrot.lane.b32.xlu0 %v594, 120
      %v1110 = vpop.permute.xlu0 %1109
      %v1111 = vsel %vm605, %v1096, 0
      %v1113 = vsel %vm605, %v1098, 0
      %v1115 = vsel %vm605, %v1100, 0
      %v1117 = vsel %vm605, %v1102, 0
      %v1119 = vsel %vm605, %v1104, 0
      %v1121 = vsel %vm605, %v1106, 0
      %v1123 = vsel %vm605, %v1108, 0
      %v1125 = vsel %vm605, %v1110, 0
      %1127 = vmatpush.xpose.msra.mxu0 0.0
      %1128 = vmatpush.xpose.msra.mxu0 0.0
      %1129 = vmatpush.xpose.msra.mxu0 0.0
      %1130 = vmatpush.xpose.msra.mxu0 0.0
      %1131 = vmatpush.xpose.msra.mxu0 0.0
      %1132 = vmatpush.xpose.msra.mxu0 0.0
      %1133 = vmatpush.xpose.msra.mxu0 0.0
      %1134 = vmatpush.xpose.msra.mxu0 0.0
      %1135 = vmatpush.xpose.msra.mxu0 0.0
      %1136 = vmatpush.xpose.msra.mxu0 0.0
      %1137 = vmatpush.xpose.msra.mxu0 0.0
      %1138 = vmatpush.xpose.msra.mxu0 0.0
      %1139 = vmatpush.xpose.msra.mxu0 0.0
      %1140 = vmatpush.xpose.msra.mxu0 0.0
      %1141 = vmatpush.xpose.msra.mxu0 %v962
      %1142 = vmatpush.xpose.msra.mxu0 %v960
      %1143 = vmatmul.f32.gmra.mxu0 %v1111
      %v1144 = vpop.f32.mrf.mxu0
      %v1145 = vadd.f32 %v1087, %v1144
      %1146 = vmatmul.f32.gmra.mxu0 %v1113
      %v1147 = vpop.f32.mrf.mxu0
      %v1148 = vadd.f32 %v1088, %v1147
      %1149 = vmatmul.f32.gmra.mxu0 %v1115
      %v1150 = vpop.f32.mrf.mxu0
      %v1151 = vadd.f32 %v1089, %v1150
      %1152 = vmatmul.f32.gmra.mxu0 %v1117
      %v1153 = vpop.f32.mrf.mxu0
      %v1154 = vadd.f32 %v1090, %v1153
      %1155 = vmatmul.f32.gmra.mxu0 %v1119
      %v1156 = vpop.f32.mrf.mxu0
      %v1157 = vadd.f32 %v1091, %v1156
      %1158 = vmatmul.f32.gmra.mxu0 %v1121
      %v1159 = vpop.f32.mrf.mxu0
      %v1160 = vadd.f32 %v1092, %v1159
      %1161 = vmatmul.f32.gmra.mxu0 %v1123
      %v1162 = vpop.f32.mrf.mxu0
      %v1163 = vadd.f32 %v1093, %v1162
      %1164 = vmatmul.f32.gmra.mxu0 %v1125
      %v1165 = vpop.f32.mrf.mxu0
      %v1166 = vadd.f32 %v1094, %v1165
      %1167 = vdwg.mxu0
      %v1168 = vsel %vm783, %v1145, -inf
      %1169 = vmax.xlane.f32.xlu0 %v1168
      %v1170 = vpop.xlane.xlu0 %1169
      %v1171 = vsel %vm783, %v1148, -inf
      %1172 = vmax.xlane.f32.xlu0 %v1171
      %v1173 = vpop.xlane.xlu0 %1172
      %v1174 = vsel %vm783, %v1151, -inf
      %1175 = vmax.xlane.f32.xlu0 %v1174
      %v1176 = vpop.xlane.xlu0 %1175
      %v1177 = vsel %vm783, %v1154, -inf
      %1178 = vmax.xlane.f32.xlu0 %v1177
      %v1179 = vpop.xlane.xlu0 %1178
      %v1180 = vsel %vm783, %v1157, -inf
      %1181 = vmax.xlane.f32.xlu0 %v1180
      %v1182 = vpop.xlane.xlu0 %1181
      %v1183 = vsel %vm783, %v1160, -inf
      %1184 = vmax.xlane.f32.xlu0 %v1183
      %v1185 = vpop.xlane.xlu0 %1184
      %v1186 = vsel %vm783, %v1163, -inf
      %1187 = vmax.xlane.f32.xlu0 %v1186
      %v1188 = vpop.xlane.xlu0 %1187
      %v1189 = vsel %vm783, %v1166, -inf
      %1190 = vmax.xlane.f32.xlu0 %v1189
      %v1191 = vpop.xlane.xlu0 %1190
      %v1192 = vsub.f32 %v1145, %v1170
      %v1193 = vsub.f32 %v1148, %v1173
      %v1194 = vsub.f32 %v1151, %v1176
      %v1195 = vsub.f32 %v1154, %v1179
      %v1196 = vsub.f32 %v1157, %v1182
      %v1197 = vsub.f32 %v1160, %v1185
      %v1198 = vsub.f32 %v1163, %v1188
      %v1199 = vsub.f32 %v1166, %v1191
      %v1200 = vmul.f32 %v1192, 1.442695
      %v1201 = vpow.pop %v1200
      %v1202 = vmul.f32 %v1193, 1.442695
      %v1203 = vpow.pop %v1202
      %v1204 = vmul.f32 %v1194, 1.442695
      %v1205 = vpow.pop %v1204
      %v1206 = vmul.f32 %v1195, 1.442695
      %v1207 = vpow.pop %v1206
      %v1208 = vmul.f32 %v1196, 1.442695
      %v1209 = vpow.pop %v1208
      %v1210 = vmul.f32 %v1197, 1.442695
      %v1211 = vpow.pop %v1210
      %v1212 = vmul.f32 %v1198, 1.442695
      %v1213 = vpow.pop %v1212
      %v1214 = vmul.f32 %v1199, 1.442695
      %v1215 = vpow.pop %v1214
      %v1216 = vsel %vm783, %v1201, 0.0
      %1217 = vadd.xlane.f32.xlu0 %v1216
      %v1218 = vpop.xlane.xlu0 %1217
      %v1219 = vsel %vm783, %v1203, 0.0
      %1220 = vadd.xlane.f32.xlu0 %v1219
      %v1221 = vpop.xlane.xlu0 %1220
      %v1222 = vsel %vm783, %v1205, 0.0
      %1223 = vadd.xlane.f32.xlu0 %v1222
      %v1224 = vpop.xlane.xlu0 %1223
      %v1225 = vsel %vm783, %v1207, 0.0
      %1226 = vadd.xlane.f32.xlu0 %v1225
      %v1227 = vpop.xlane.xlu0 %1226
      %v1228 = vsel %vm783, %v1209, 0.0
      %1229 = vadd.xlane.f32.xlu0 %v1228
      %v1230 = vpop.xlane.xlu0 %1229
      %v1231 = vsel %vm783, %v1211, 0.0
      %1232 = vadd.xlane.f32.xlu0 %v1231
      %v1233 = vpop.xlane.xlu0 %1232
      %v1234 = vsel %vm783, %v1213, 0.0
      %1235 = vadd.xlane.f32.xlu0 %v1234
      %v1236 = vpop.xlane.xlu0 %1235
      %v1237 = vsel %vm783, %v1215, 0.0
      %1238 = vadd.xlane.f32.xlu0 %v1237
      %v1239 = vpop.xlane.xlu0 %1238
      %v1240 = vrcp.pop %v1218
      %v1241 = vrcp.pop %v1221
      %v1242 = vrcp.pop %v1224
      %v1243 = vrcp.pop %v1227
      %v1244 = vrcp.pop %v1230
      %v1245 = vrcp.pop %v1233
      %v1246 = vrcp.pop %v1236
      %v1247 = vrcp.pop %v1239
      %v1248 = vmul.f32 %v1201, %v1240
      %v1249 = vmul.f32 %v1203, %v1241
      %v1250 = vmul.f32 %v1205, %v1242
      %v1251 = vmul.f32 %v1207, %v1243
      %v1252 = vmul.f32 %v1209, %v1244
      %v1253 = vmul.f32 %v1211, %v1245
      %v1254 = vmul.f32 %v1213, %v1246
      %v1255 = vmul.f32 %v1215, %v1247
      %v1257 = vsel %vm783, %v1248, 0
      %v1260 = vsel %vm783, %v1249, 0
      %v1263 = vsel %vm783, %v1250, 0
      %v1266 = vsel %vm783, %v1251, 0
      %v1269 = vsel %vm783, %v1252, 0
      %v1272 = vsel %vm783, %v1253, 0
      %v1275 = vsel %vm783, %v1254, 0
      %v1278 = vsel %vm783, %v1255, 0
      %1280 = vmatpush.msra.mxu0 0.0
      %1281 = vmatpush.msra.mxu0 0.0
      %1282 = vmatpush.msra.mxu0 0.0
      %1283 = vmatpush.msra.mxu0 0.0
      %1284 = vmatpush.msra.mxu0 0.0
      %1285 = vmatpush.msra.mxu0 0.0
      %1286 = vmatpush.msra.mxu0 0.0
      %1287 = vmatpush.msra.mxu0 0.0
      %1288 = vmatpush.msra.mxu0 0.0
      %1289 = vmatpush.msra.mxu0 0.0
      %1290 = vmatpush.msra.mxu0 0.0
      %1291 = vmatpush.msra.mxu0 0.0
      %1292 = vmatpush.msra.mxu0 0.0
      %1293 = vmatpush.msra.mxu0 0.0
      %1294 = vmatpush.msra.mxu0 %v1084
      %1295 = vmatpush.msra.mxu0 %v1081
      %1296 = vmatmul.f32.gmra.mxu0 %v1257
      %v1297 = vpop.f32.mrf.mxu0
      %v1298 = vadd.f32 0.0, %v1297
      %1299 = vmatmul.f32.gmra.mxu0 %v1260
      %v1300 = vpop.f32.mrf.mxu0
      %v1301 = vadd.f32 0.0, %v1300
      %1302 = vmatmul.f32.gmra.mxu0 %v1263
      %v1303 = vpop.f32.mrf.mxu0
      %v1304 = vadd.f32 0.0, %v1303
      %1305 = vmatmul.f32.gmra.mxu0 %v1266
      %v1306 = vpop.f32.mrf.mxu0
      %v1307 = vadd.f32 0.0, %v1306
      %1308 = vmatmul.f32.gmra.mxu0 %v1269
      %v1309 = vpop.f32.mrf.mxu0
      %v1310 = vadd.f32 0.0, %v1309
      %1311 = vmatmul.f32.gmra.mxu0 %v1272
      %v1312 = vpop.f32.mrf.mxu0
      %v1313 = vadd.f32 0.0, %v1312
      %1314 = vmatmul.f32.gmra.mxu0 %v1275
      %v1315 = vpop.f32.mrf.mxu0
      %v1316 = vadd.f32 0.0, %v1315
      %1317 = vmatmul.f32.gmra.mxu0 %v1278
      %v1318 = vpop.f32.mrf.mxu0
      %v1319 = vadd.f32 0.0, %v1318
      %1320 = vdwg.mxu0
      %s1321 = scalar_lea.vmem %s5, 32
      %v1322 = vld [vmem:[%s1321] sm:$0xff]
      %v1323 = vld [vmem:[%s1321 + $0x8] sm:$0xff]
      %1324 = vrot.lane.b32.xlu0 %v582, 112
      %v1325 = vpop.permute.xlu0 %1324
      %1326 = vrot.lane.b32.xlu0 %v585, 112
      %v1327 = vpop.permute.xlu0 %1326
      %1328 = vrot.lane.b32.xlu0 %v595, 112
      %v1329 = vpop.permute.xlu0 %1328
      %1330 = vrot.lane.b32.xlu0 %v596, 112
      %v1331 = vpop.permute.xlu0 %1330
      %1332 = vrot.lane.b32.xlu0 %v597, 112
      %v1333 = vpop.permute.xlu0 %1332
      %1334 = vrot.lane.b32.xlu0 %v598, 112
      %v1335 = vpop.permute.xlu0 %1334
      %1336 = vrot.lane.b32.xlu0 %v599, 112
      %v1337 = vpop.permute.xlu0 %1336
      %1338 = vrot.lane.b32.xlu0 %v600, 112
      %v1339 = vpop.permute.xlu0 %1338
      %1340 = vrot.lane.b32.xlu0 %v601, 112
      %v1341 = vpop.permute.xlu0 %1340
      %1342 = vrot.lane.b32.xlu0 %v602, 112
      %v1343 = vpop.permute.xlu0 %1342
      %v1344 = vsel %vm605, %v1325, 0
      %v1346 = vsel %vm605, %v1327, 0
      %v1348 = vsel %vm605, %v1329, 0
      %v1350 = vsel %vm605, %v1331, 0
      %v1352 = vsel %vm605, %v1333, 0
      %v1354 = vsel %vm605, %v1335, 0
      %v1356 = vsel %vm605, %v1337, 0
      %v1358 = vsel %vm605, %v1339, 0
      %v1360 = vsel %vm605, %v1341, 0
      %v1362 = vsel %vm605, %v1343, 0
      %1364 = vmatpush.xpose.msra.mxu0 0.0
      %1365 = vmatpush.xpose.msra.mxu0 0.0
      %1366 = vmatpush.xpose.msra.mxu0 0.0
      %1367 = vmatpush.xpose.msra.mxu0 0.0
      %1368 = vmatpush.xpose.msra.mxu0 0.0
      %1369 = vmatpush.xpose.msra.mxu0 0.0
      %1370 = vmatpush.xpose.msra.mxu0 0.0
      %1371 = vmatpush.xpose.msra.mxu0 0.0
      %1372 = vmatpush.xpose.msra.mxu0 %v1362
      %1373 = vmatpush.xpose.msra.mxu0 %v1360
      %1374 = vmatpush.xpose.msra.mxu0 %v1358
      %1375 = vmatpush.xpose.msra.mxu0 %v1356
      %1376 = vmatpush.xpose.msra.mxu0 %v1354
      %1377 = vmatpush.xpose.msra.mxu0 %v1352
      %1378 = vmatpush.xpose.msra.mxu0 %v1350
      %1379 = vmatpush.xpose.msra.mxu0 %v1348
      %1380 = vmatmul.f32.gmra.mxu0 %v1344
      %v1381 = vpop.f32.mrf.mxu0
      %v1382 = vadd.f32 %v1322, %v1381
      %1383 = vmatmul.f32.gmra.mxu0 %v1346
      %v1384 = vpop.f32.mrf.mxu0
      %v1385 = vadd.f32 %v1323, %v1384
      %1386 = vdwg.mxu0
      %v1387 = vsel %vm557, %v1382, -inf
      %1388 = vmax.xlane.f32.xlu0 %v1387
      %v1389 = vpop.xlane.xlu0 %1388
      %v1390 = vsel %vm557, %v1385, -inf
      %1391 = vmax.xlane.f32.xlu0 %v1390
      %v1392 = vpop.xlane.xlu0 %1391
      %v1393 = vsub.f32 %v1382, %v1389
      %v1394 = vsub.f32 %v1385, %v1392
      %v1395 = vmul.f32 %v1393, 1.442695
      %v1396 = vpow.pop %v1395
      %v1397 = vmul.f32 %v1394, 1.442695
      %v1398 = vpow.pop %v1397
      %v1399 = vsel %vm557, %v1396, 0.0
      %1400 = vadd.xlane.f32.xlu0 %v1399
      %v1401 = vpop.xlane.xlu0 %1400
      %v1402 = vsel %vm557, %v1398, 0.0
      %1403 = vadd.xlane.f32.xlu0 %v1402
      %v1404 = vpop.xlane.xlu0 %1403
      %v1405 = vrcp.pop %v1401
      %v1406 = vrcp.pop %v1404
      %v1407 = vmul.f32 %v1396, %v1405
      %v1408 = vmul.f32 %v1398, %v1406
      %1409 = vrot.lane.b32.xlu0 %v532, 112
      %v1410 = vpop.permute.xlu0 %1409
      %1411 = vrot.lane.b32.xlu0 %v535, 112
      %v1412 = vpop.permute.xlu0 %1411
      %1413 = vrot.lane.b32.xlu0 %v538, 112
      %v1414 = vpop.permute.xlu0 %1413
      %1415 = vrot.lane.b32.xlu0 %v541, 112
      %v1416 = vpop.permute.xlu0 %1415
      %1417 = vrot.lane.b32.xlu0 %v544, 112
      %v1418 = vpop.permute.xlu0 %1417
      %1419 = vrot.lane.b32.xlu0 %v547, 112
      %v1420 = vpop.permute.xlu0 %1419
      %1421 = vrot.lane.b32.xlu0 %v550, 112
      %v1422 = vpop.permute.xlu0 %1421
      %1423 = vrot.lane.b32.xlu0 %v553, 112
      %v1424 = vpop.permute.xlu0 %1423
      %v1434 = vsel %vm557, %v1407, 0
      %v1437 = vsel %vm557, %v1408, 0
      %1439 = vmatpush.msra.mxu0 0.0
      %1440 = vmatpush.msra.mxu0 0.0
      %1441 = vmatpush.msra.mxu0 0.0
      %1442 = vmatpush.msra.mxu0 0.0
      %1443 = vmatpush.msra.mxu0 0.0
      %1444 = vmatpush.msra.mxu0 0.0
      %1445 = vmatpush.msra.mxu0 0.0
      %1446 = vmatpush.msra.mxu0 0.0
      %1447 = vmatpush.msra.mxu0 %v1424
      %1448 = vmatpush.msra.mxu0 %v1422
      %1449 = vmatpush.msra.mxu0 %v1420
      %1450 = vmatpush.msra.mxu0 %v1418
      %1451 = vmatpush.msra.mxu0 %v1416
      %1452 = vmatpush.msra.mxu0 %v1414
      %1453 = vmatpush.msra.mxu0 %v1412
      %1454 = vmatpush.msra.mxu0 %v1410
      %1455 = vmatmul.f32.gmra.mxu0 %v1434
      %v1456 = vpop.f32.mrf.mxu0
      %v1457 = vadd.f32 0.0, %v1456
      %1458 = vmatmul.f32.gmra.mxu0 %v1437
      %v1459 = vpop.f32.mrf.mxu0
      %v1460 = vadd.f32 0.0, %v1459
      %1461 = vdwg.mxu0
      %s1462 = scalar_lea.vmem %s6, 128
      %v1463 = vld [vmem:[%s1462] sm:$0xff]
      %v1464 = vld [vmem:[%s1462 + $0x8] sm:$0xff]
      %v1465 = vld [vmem:[%s1462 + $0x10] sm:$0xff]
      %v1466 = vld [vmem:[%s1462 + $0x18] sm:$0xff]
      %v1467 = vld [vmem:[%s1462 + $0x20] sm:$0xff]
      %v1468 = vld [vmem:[%s1462 + $0x28] sm:$0xff]
      %v1469 = vld [vmem:[%s1462 + $0x30] sm:$0xff]
      %v1470 = vld [vmem:[%s1462 + $0x38] sm:$0xff]
      %1471 = vrot.lane.b32.xlu0 %v587, 112
      %v1472 = vpop.permute.xlu0 %1471
      %1473 = vrot.lane.b32.xlu0 %v588, 112
      %v1474 = vpop.permute.xlu0 %1473
      %1475 = vrot.lane.b32.xlu0 %v589, 112
      %v1476 = vpop.permute.xlu0 %1475
      %1477 = vrot.lane.b32.xlu0 %v590, 112
      %v1478 = vpop.permute.xlu0 %1477
      %1479 = vrot.lane.b32.xlu0 %v591, 112
      %v1480 = vpop.permute.xlu0 %1479
      %1481 = vrot.lane.b32.xlu0 %v592, 112
      %v1482 = vpop.permute.xlu0 %1481
      %1483 = vrot.lane.b32.xlu0 %v593, 112
      %v1484 = vpop.permute.xlu0 %1483
      %1485 = vrot.lane.b32.xlu0 %v594, 112
      %v1486 = vpop.permute.xlu0 %1485
      %v1487 = vsel %vm605, %v1472, 0
      %v1489 = vsel %vm605, %v1474, 0
      %v1491 = vsel %vm605, %v1476, 0
      %v1493 = vsel %vm605, %v1478, 0
      %v1495 = vsel %vm605, %v1480, 0
      %v1497 = vsel %vm605, %v1482, 0
      %v1499 = vsel %vm605, %v1484, 0
      %v1501 = vsel %vm605, %v1486, 0
      %1503 = vmatpush.xpose.msra.mxu0 0.0
      %1504 = vmatpush.xpose.msra.mxu0 0.0
      %1505 = vmatpush.xpose.msra.mxu0 0.0
      %1506 = vmatpush.xpose.msra.mxu0 0.0
      %1507 = vmatpush.xpose.msra.mxu0 0.0
      %1508 = vmatpush.xpose.msra.mxu0 0.0
      %1509 = vmatpush.xpose.msra.mxu0 0.0
      %1510 = vmatpush.xpose.msra.mxu0 0.0
      %1511 = vmatpush.xpose.msra.mxu0 0.0
      %1512 = vmatpush.xpose.msra.mxu0 0.0
      %1513 = vmatpush.xpose.msra.mxu0 0.0
      %1514 = vmatpush.xpose.msra.mxu0 0.0
      %1515 = vmatpush.xpose.msra.mxu0 0.0
      %1516 = vmatpush.xpose.msra.mxu0 0.0
      %1517 = vmatpush.xpose.msra.mxu0 %v1346
      %1518 = vmatpush.xpose.msra.mxu0 %v1344
      %1519 = vmatmul.f32.gmra.mxu0 %v1487
      %v1520 = vpop.f32.mrf.mxu0
      %v1521 = vadd.f32 %v1463, %v1520
      %1522 = vmatmul.f32.gmra.mxu0 %v1489
      %v1523 = vpop.f32.mrf.mxu0
      %v1524 = vadd.f32 %v1464, %v1523
      %1525 = vmatmul.f32.gmra.mxu0 %v1491
      %v1526 = vpop.f32.mrf.mxu0
      %v1527 = vadd.f32 %v1465, %v1526
      %1528 = vmatmul.f32.gmra.mxu0 %v1493
      %v1529 = vpop.f32.mrf.mxu0
      %v1530 = vadd.f32 %v1466, %v1529
      %1531 = vmatmul.f32.gmra.mxu0 %v1495
      %v1532 = vpop.f32.mrf.mxu0
      %v1533 = vadd.f32 %v1467, %v1532
      %1534 = vmatmul.f32.gmra.mxu0 %v1497
      %v1535 = vpop.f32.mrf.mxu0
      %v1536 = vadd.f32 %v1468, %v1535
      %1537 = vmatmul.f32.gmra.mxu0 %v1499
      %v1538 = vpop.f32.mrf.mxu0
      %v1539 = vadd.f32 %v1469, %v1538
      %1540 = vmatmul.f32.gmra.mxu0 %v1501
      %v1541 = vpop.f32.mrf.mxu0
      %v1542 = vadd.f32 %v1470, %v1541
      %1543 = vdwg.mxu0
      %v1544 = vsel %vm783, %v1521, -inf
      %1545 = vmax.xlane.f32.xlu0 %v1544
      %v1546 = vpop.xlane.xlu0 %1545
      %v1547 = vsel %vm783, %v1524, -inf
      %1548 = vmax.xlane.f32.xlu0 %v1547
      %v1549 = vpop.xlane.xlu0 %1548
      %v1550 = vsel %vm783, %v1527, -inf
      %1551 = vmax.xlane.f32.xlu0 %v1550
      %v1552 = vpop.xlane.xlu0 %1551
      %v1553 = vsel %vm783, %v1530, -inf
      %1554 = vmax.xlane.f32.xlu0 %v1553
      %v1555 = vpop.xlane.xlu0 %1554
      %v1556 = vsel %vm783, %v1533, -inf
      %1557 = vmax.xlane.f32.xlu0 %v1556
      %v1558 = vpop.xlane.xlu0 %1557
      %v1559 = vsel %vm783, %v1536, -inf
      %1560 = vmax.xlane.f32.xlu0 %v1559
      %v1561 = vpop.xlane.xlu0 %1560
      %v1562 = vsel %vm783, %v1539, -inf
      %1563 = vmax.xlane.f32.xlu0 %v1562
      %v1564 = vpop.xlane.xlu0 %1563
      %v1565 = vsel %vm783, %v1542, -inf
      %1566 = vmax.xlane.f32.xlu0 %v1565
      %v1567 = vpop.xlane.xlu0 %1566
      %v1568 = vsub.f32 %v1521, %v1546
      %v1569 = vsub.f32 %v1524, %v1549
      %v1570 = vsub.f32 %v1527, %v1552
      %v1571 = vsub.f32 %v1530, %v1555
      %v1572 = vsub.f32 %v1533, %v1558
      %v1573 = vsub.f32 %v1536, %v1561
      %v1574 = vsub.f32 %v1539, %v1564
      %v1575 = vsub.f32 %v1542, %v1567
      %v1576 = vmul.f32 %v1568, 1.442695
      %v1577 = vpow.pop %v1576
      %v1578 = vmul.f32 %v1569, 1.442695
      %v1579 = vpow.pop %v1578
      %v1580 = vmul.f32 %v1570, 1.442695
      %v1581 = vpow.pop %v1580
      %v1582 = vmul.f32 %v1571, 1.442695
      %v1583 = vpow.pop %v1582
      %v1584 = vmul.f32 %v1572, 1.442695
      %v1585 = vpow.pop %v1584
      %v1586 = vmul.f32 %v1573, 1.442695
      %v1587 = vpow.pop %v1586
      %v1588 = vmul.f32 %v1574, 1.442695
      %v1589 = vpow.pop %v1588
      %v1590 = vmul.f32 %v1575, 1.442695
      %v1591 = vpow.pop %v1590
      %v1592 = vsel %vm783, %v1577, 0.0
      %1593 = vadd.xlane.f32.xlu0 %v1592
      %v1594 = vpop.xlane.xlu0 %1593
      %v1595 = vsel %vm783, %v1579, 0.0
      %1596 = vadd.xlane.f32.xlu0 %v1595
      %v1597 = vpop.xlane.xlu0 %1596
      %v1598 = vsel %vm783, %v1581, 0.0
      %1599 = vadd.xlane.f32.xlu0 %v1598
      %v1600 = vpop.xlane.xlu0 %1599
      %v1601 = vsel %vm783, %v1583, 0.0
      %1602 = vadd.xlane.f32.xlu0 %v1601
      %v1603 = vpop.xlane.xlu0 %1602
      %v1604 = vsel %vm783, %v1585, 0.0
      %1605 = vadd.xlane.f32.xlu0 %v1604
      %v1606 = vpop.xlane.xlu0 %1605
      %v1607 = vsel %vm783, %v1587, 0.0
      %1608 = vadd.xlane.f32.xlu0 %v1607
      %v1609 = vpop.xlane.xlu0 %1608
      %v1610 = vsel %vm783, %v1589, 0.0
      %1611 = vadd.xlane.f32.xlu0 %v1610
      %v1612 = vpop.xlane.xlu0 %1611
      %v1613 = vsel %vm783, %v1591, 0.0
      %1614 = vadd.xlane.f32.xlu0 %v1613
      %v1615 = vpop.xlane.xlu0 %1614
      %v1616 = vrcp.pop %v1594
      %v1617 = vrcp.pop %v1597
      %v1618 = vrcp.pop %v1600
      %v1619 = vrcp.pop %v1603
      %v1620 = vrcp.pop %v1606
      %v1621 = vrcp.pop %v1609
      %v1622 = vrcp.pop %v1612
      %v1623 = vrcp.pop %v1615
      %v1624 = vmul.f32 %v1577, %v1616
      %v1625 = vmul.f32 %v1579, %v1617
      %v1626 = vmul.f32 %v1581, %v1618
      %v1627 = vmul.f32 %v1583, %v1619
      %v1628 = vmul.f32 %v1585, %v1620
      %v1629 = vmul.f32 %v1587, %v1621
      %v1630 = vmul.f32 %v1589, %v1622
      %v1631 = vmul.f32 %v1591, %v1623
      %v1633 = vsel %vm783, %v1624, 0
      %v1636 = vsel %vm783, %v1625, 0
      %v1639 = vsel %vm783, %v1626, 0
      %v1642 = vsel %vm783, %v1627, 0
      %v1645 = vsel %vm783, %v1628, 0
      %v1648 = vsel %vm783, %v1629, 0
      %v1651 = vsel %vm783, %v1630, 0
      %v1654 = vsel %vm783, %v1631, 0
      %1656 = vmatpush.msra.mxu0 0.0
      %1657 = vmatpush.msra.mxu0 0.0
      %1658 = vmatpush.msra.mxu0 0.0
      %1659 = vmatpush.msra.mxu0 0.0
      %1660 = vmatpush.msra.mxu0 0.0
      %1661 = vmatpush.msra.mxu0 0.0
      %1662 = vmatpush.msra.mxu0 0.0
      %1663 = vmatpush.msra.mxu0 0.0
      %1664 = vmatpush.msra.mxu0 0.0
      %1665 = vmatpush.msra.mxu0 0.0
      %1666 = vmatpush.msra.mxu0 0.0
      %1667 = vmatpush.msra.mxu0 0.0
      %1668 = vmatpush.msra.mxu0 0.0
      %1669 = vmatpush.msra.mxu0 0.0
      %1670 = vmatpush.msra.mxu0 %v1460
      %1671 = vmatpush.msra.mxu0 %v1457
      %1672 = vmatmul.f32.gmra.mxu0 %v1633
      %v1673 = vpop.f32.mrf.mxu0
      %v1674 = vadd.f32 0.0, %v1673
      %1675 = vmatmul.f32.gmra.mxu0 %v1636
      %v1676 = vpop.f32.mrf.mxu0
      %v1677 = vadd.f32 0.0, %v1676
      %1678 = vmatmul.f32.gmra.mxu0 %v1639
      %v1679 = vpop.f32.mrf.mxu0
      %v1680 = vadd.f32 0.0, %v1679
      %1681 = vmatmul.f32.gmra.mxu0 %v1642
      %v1682 = vpop.f32.mrf.mxu0
      %v1683 = vadd.f32 0.0, %v1682
      %1684 = vmatmul.f32.gmra.mxu0 %v1645
      %v1685 = vpop.f32.mrf.mxu0
      %v1686 = vadd.f32 0.0, %v1685
      %1687 = vmatmul.f32.gmra.mxu0 %v1648
      %v1688 = vpop.f32.mrf.mxu0
      %v1689 = vadd.f32 0.0, %v1688
      %1690 = vmatmul.f32.gmra.mxu0 %v1651
      %v1691 = vpop.f32.mrf.mxu0
      %v1692 = vadd.f32 0.0, %v1691
      %1693 = vmatmul.f32.gmra.mxu0 %v1654
      %v1694 = vpop.f32.mrf.mxu0
      %v1695 = vadd.f32 0.0, %v1694
      %1696 = vdwg.mxu0
      %s1697 = scalar_lea.vmem %s5, 48
      %v1698 = vld [vmem:[%s1697] sm:$0xff]
      %v1699 = vld [vmem:[%s1697 + $0x8] sm:$0xff]
      %1700 = vrot.lane.b32.xlu0 %v582, 104
      %v1701 = vpop.permute.xlu0 %1700
      %1702 = vrot.lane.b32.xlu0 %v585, 104
      %v1703 = vpop.permute.xlu0 %1702
      %1704 = vrot.lane.b32.xlu0 %v595, 104
      %v1705 = vpop.permute.xlu0 %1704
      %1706 = vrot.lane.b32.xlu0 %v596, 104
      %v1707 = vpop.permute.xlu0 %1706
      %1708 = vrot.lane.b32.xlu0 %v597, 104
      %v1709 = vpop.permute.xlu0 %1708
      %1710 = vrot.lane.b32.xlu0 %v598, 104
      %v1711 = vpop.permute.xlu0 %1710
      %1712 = vrot.lane.b32.xlu0 %v599, 104
      %v1713 = vpop.permute.xlu0 %1712
      %1714 = vrot.lane.b32.xlu0 %v600, 104
      %v1715 = vpop.permute.xlu0 %1714
      %1716 = vrot.lane.b32.xlu0 %v601, 104
      %v1717 = vpop.permute.xlu0 %1716
      %1718 = vrot.lane.b32.xlu0 %v602, 104
      %v1719 = vpop.permute.xlu0 %1718
      %v1720 = vsel %vm605, %v1701, 0
      %v1722 = vsel %vm605, %v1703, 0
      %v1724 = vsel %vm605, %v1705, 0
      %v1726 = vsel %vm605, %v1707, 0
      %v1728 = vsel %vm605, %v1709, 0
      %v1730 = vsel %vm605, %v1711, 0
      %v1732 = vsel %vm605, %v1713, 0
      %v1734 = vsel %vm605, %v1715, 0
      %v1736 = vsel %vm605, %v1717, 0
      %v1738 = vsel %vm605, %v1719, 0
      %1740 = vmatpush.xpose.msra.mxu0 0.0
      %1741 = vmatpush.xpose.msra.mxu0 0.0
      %1742 = vmatpush.xpose.msra.mxu0 0.0
      %1743 = vmatpush.xpose.msra.mxu0 0.0
      %1744 = vmatpush.xpose.msra.mxu0 0.0
      %1745 = vmatpush.xpose.msra.mxu0 0.0
      %1746 = vmatpush.xpose.msra.mxu0 0.0
      %1747 = vmatpush.xpose.msra.mxu0 0.0
      %1748 = vmatpush.xpose.msra.mxu0 %v1738
      %1749 = vmatpush.xpose.msra.mxu0 %v1736
      %1750 = vmatpush.xpose.msra.mxu0 %v1734
      %1751 = vmatpush.xpose.msra.mxu0 %v1732
      %1752 = vmatpush.xpose.msra.mxu0 %v1730
      %1753 = vmatpush.xpose.msra.mxu0 %v1728
      %1754 = vmatpush.xpose.msra.mxu0 %v1726
      %1755 = vmatpush.xpose.msra.mxu0 %v1724
      %1756 = vmatmul.f32.gmra.mxu0 %v1720
      %v1757 = vpop.f32.mrf.mxu0
      %v1758 = vadd.f32 %v1698, %v1757
      %1759 = vmatmul.f32.gmra.mxu0 %v1722
      %v1760 = vpop.f32.mrf.mxu0
      %v1761 = vadd.f32 %v1699, %v1760
      %1762 = vdwg.mxu0
      %v1763 = vsel %vm557, %v1758, -inf
      %1764 = vmax.xlane.f32.xlu0 %v1763
      %v1765 = vpop.xlane.xlu0 %1764
      %v1766 = vsel %vm557, %v1761, -inf
      %1767 = vmax.xlane.f32.xlu0 %v1766
      %v1768 = vpop.xlane.xlu0 %1767
      %v1769 = vsub.f32 %v1758, %v1765
      %v1770 = vsub.f32 %v1761, %v1768
      %v1771 = vmul.f32 %v1769, 1.442695
      %v1772 = vpow.pop %v1771
      %v1773 = vmul.f32 %v1770, 1.442695
      %v1774 = vpow.pop %v1773
      %v1775 = vsel %vm557, %v1772, 0.0
      %1776 = vadd.xlane.f32.xlu0 %v1775
      %v1777 = vpop.xlane.xlu0 %1776
      %v1778 = vsel %vm557, %v1774, 0.0
      %1779 = vadd.xlane.f32.xlu0 %v1778
      %v1780 = vpop.xlane.xlu0 %1779
      %v1781 = vrcp.pop %v1777
      %v1782 = vrcp.pop %v1780
      %v1783 = vmul.f32 %v1772, %v1781
      %v1784 = vmul.f32 %v1774, %v1782
      %1785 = vrot.lane.b32.xlu0 %v532, 104
      %v1786 = vpop.permute.xlu0 %1785
      %1787 = vrot.lane.b32.xlu0 %v535, 104
      %v1788 = vpop.permute.xlu0 %1787
      %1789 = vrot.lane.b32.xlu0 %v538, 104
      %v1790 = vpop.permute.xlu0 %1789
      %1791 = vrot.lane.b32.xlu0 %v541, 104
      %v1792 = vpop.permute.xlu0 %1791
      %1793 = vrot.lane.b32.xlu0 %v544, 104
      %v1794 = vpop.permute.xlu0 %1793
      %1795 = vrot.lane.b32.xlu0 %v547, 104
      %v1796 = vpop.permute.xlu0 %1795
      %1797 = vrot.lane.b32.xlu0 %v550, 104
      %v1798 = vpop.permute.xlu0 %1797
      %1799 = vrot.lane.b32.xlu0 %v553, 104
      %v1800 = vpop.permute.xlu0 %1799
      %v1810 = vsel %vm557, %v1783, 0
      %v1813 = vsel %vm557, %v1784, 0
      %1815 = vmatpush.msra.mxu0 0.0
      %1816 = vmatpush.msra.mxu0 0.0
      %1817 = vmatpush.msra.mxu0 0.0
      %1818 = vmatpush.msra.mxu0 0.0
      %1819 = vmatpush.msra.mxu0 0.0
      %1820 = vmatpush.msra.mxu0 0.0
      %1821 = vmatpush.msra.mxu0 0.0
      %1822 = vmatpush.msra.mxu0 0.0
      %1823 = vmatpush.msra.mxu0 %v1800
      %1824 = vmatpush.msra.mxu0 %v1798
      %1825 = vmatpush.msra.mxu0 %v1796
      %1826 = vmatpush.msra.mxu0 %v1794
      %1827 = vmatpush.msra.mxu0 %v1792
      %1828 = vmatpush.msra.mxu0 %v1790
      %1829 = vmatpush.msra.mxu0 %v1788
      %1830 = vmatpush.msra.mxu0 %v1786
      %1831 = vmatmul.f32.gmra.mxu0 %v1810
      %v1832 = vpop.f32.mrf.mxu0
      %v1833 = vadd.f32 0.0, %v1832
      %1834 = vmatmul.f32.gmra.mxu0 %v1813
      %v1835 = vpop.f32.mrf.mxu0
      %v1836 = vadd.f32 0.0, %v1835
      %1837 = vdwg.mxu0
      %s1838 = scalar_lea.vmem %s6, 192
      %v1839 = vld [vmem:[%s1838] sm:$0xff]
      %v1840 = vld [vmem:[%s1838 + $0x8] sm:$0xff]
      %v1841 = vld [vmem:[%s1838 + $0x10] sm:$0xff]
      %v1842 = vld [vmem:[%s1838 + $0x18] sm:$0xff]
      %v1843 = vld [vmem:[%s1838 + $0x20] sm:$0xff]
      %v1844 = vld [vmem:[%s1838 + $0x28] sm:$0xff]
      %v1845 = vld [vmem:[%s1838 + $0x30] sm:$0xff]
      %v1846 = vld [vmem:[%s1838 + $0x38] sm:$0xff]
      %1847 = vrot.lane.b32.xlu0 %v587, 104
      %v1848 = vpop.permute.xlu0 %1847
      %1849 = vrot.lane.b32.xlu0 %v588, 104
      %v1850 = vpop.permute.xlu0 %1849
      %1851 = vrot.lane.b32.xlu0 %v589, 104
      %v1852 = vpop.permute.xlu0 %1851
      %1853 = vrot.lane.b32.xlu0 %v590, 104
      %v1854 = vpop.permute.xlu0 %1853
      %1855 = vrot.lane.b32.xlu0 %v591, 104
      %v1856 = vpop.permute.xlu0 %1855
      %1857 = vrot.lane.b32.xlu0 %v592, 104
      %v1858 = vpop.permute.xlu0 %1857
      %1859 = vrot.lane.b32.xlu0 %v593, 104
      %v1860 = vpop.permute.xlu0 %1859
      %1861 = vrot.lane.b32.xlu0 %v594, 104
      %v1862 = vpop.permute.xlu0 %1861
      %v1863 = vsel %vm605, %v1848, 0
      %v1865 = vsel %vm605, %v1850, 0
      %v1867 = vsel %vm605, %v1852, 0
      %v1869 = vsel %vm605, %v1854, 0
      %v1871 = vsel %vm605, %v1856, 0
      %v1873 = vsel %vm605, %v1858, 0
      %v1875 = vsel %vm605, %v1860, 0
      %v1877 = vsel %vm605, %v1862, 0
      %1879 = vmatpush.xpose.msra.mxu0 0.0
      %1880 = vmatpush.xpose.msra.mxu0 0.0
      %1881 = vmatpush.xpose.msra.mxu0 0.0
      %1882 = vmatpush.xpose.msra.mxu0 0.0
      %1883 = vmatpush.xpose.msra.mxu0 0.0
      %1884 = vmatpush.xpose.msra.mxu0 0.0
      %1885 = vmatpush.xpose.msra.mxu0 0.0
      %1886 = vmatpush.xpose.msra.mxu0 0.0
      %1887 = vmatpush.xpose.msra.mxu0 0.0
      %1888 = vmatpush.xpose.msra.mxu0 0.0
      %1889 = vmatpush.xpose.msra.mxu0 0.0
      %1890 = vmatpush.xpose.msra.mxu0 0.0
      %1891 = vmatpush.xpose.msra.mxu0 0.0
      %1892 = vmatpush.xpose.msra.mxu0 0.0
      %1893 = vmatpush.xpose.msra.mxu0 %v1722
      %1894 = vmatpush.xpose.msra.mxu0 %v1720
      %1895 = vmatmul.f32.gmra.mxu0 %v1863
      %v1896 = vpop.f32.mrf.mxu0
      %v1897 = vadd.f32 %v1839, %v1896
      %1898 = vmatmul.f32.gmra.mxu0 %v1865
      %v1899 = vpop.f32.mrf.mxu0
      %v1900 = vadd.f32 %v1840, %v1899
      %1901 = vmatmul.f32.gmra.mxu0 %v1867
      %v1902 = vpop.f32.mrf.mxu0
      %v1903 = vadd.f32 %v1841, %v1902
      %1904 = vmatmul.f32.gmra.mxu0 %v1869
      %v1905 = vpop.f32.mrf.mxu0
      %v1906 = vadd.f32 %v1842, %v1905
      %1907 = vmatmul.f32.gmra.mxu0 %v1871
      %v1908 = vpop.f32.mrf.mxu0
      %v1909 = vadd.f32 %v1843, %v1908
      %1910 = vmatmul.f32.gmra.mxu0 %v1873
      %v1911 = vpop.f32.mrf.mxu0
      %v1912 = vadd.f32 %v1844, %v1911
      %1913 = vmatmul.f32.gmra.mxu0 %v1875
      %v1914 = vpop.f32.mrf.mxu0
      %v1915 = vadd.f32 %v1845, %v1914
      %1916 = vmatmul.f32.gmra.mxu0 %v1877
      %v1917 = vpop.f32.mrf.mxu0
      %v1918 = vadd.f32 %v1846, %v1917
      %1919 = vdwg.mxu0
      %v1920 = vsel %vm783, %v1897, -inf
      %1921 = vmax.xlane.f32.xlu0 %v1920
      %v1922 = vpop.xlane.xlu0 %1921
      %v1923 = vsel %vm783, %v1900, -inf
      %1924 = vmax.xlane.f32.xlu0 %v1923
      %v1925 = vpop.xlane.xlu0 %1924
      %v1926 = vsel %vm783, %v1903, -inf
      %1927 = vmax.xlane.f32.xlu0 %v1926
      %v1928 = vpop.xlane.xlu0 %1927
      %v1929 = vsel %vm783, %v1906, -inf
      %1930 = vmax.xlane.f32.xlu0 %v1929
      %v1931 = vpop.xlane.xlu0 %1930
      %v1932 = vsel %vm783, %v1909, -inf
      %1933 = vmax.xlane.f32.xlu0 %v1932
      %v1934 = vpop.xlane.xlu0 %1933
      %v1935 = vsel %vm783, %v1912, -inf
      %1936 = vmax.xlane.f32.xlu0 %v1935
      %v1937 = vpop.xlane.xlu0 %1936
      %v1938 = vsel %vm783, %v1915, -inf
      %1939 = vmax.xlane.f32.xlu0 %v1938
      %v1940 = vpop.xlane.xlu0 %1939
      %v1941 = vsel %vm783, %v1918, -inf
      %1942 = vmax.xlane.f32.xlu0 %v1941
      %v1943 = vpop.xlane.xlu0 %1942
      %v1944 = vsub.f32 %v1897, %v1922
      %v1945 = vsub.f32 %v1900, %v1925
      %v1946 = vsub.f32 %v1903, %v1928
      %v1947 = vsub.f32 %v1906, %v1931
      %v1948 = vsub.f32 %v1909, %v1934
      %v1949 = vsub.f32 %v1912, %v1937
      %v1950 = vsub.f32 %v1915, %v1940
      %v1951 = vsub.f32 %v1918, %v1943
      %v1952 = vmul.f32 %v1944, 1.442695
      %v1953 = vpow.pop %v1952
      %v1954 = vmul.f32 %v1945, 1.442695
      %v1955 = vpow.pop %v1954
      %v1956 = vmul.f32 %v1946, 1.442695
      %v1957 = vpow.pop %v1956
      %v1958 = vmul.f32 %v1947, 1.442695
      %v1959 = vpow.pop %v1958
      %v1960 = vmul.f32 %v1948, 1.442695
      %v1961 = vpow.pop %v1960
      %v1962 = vmul.f32 %v1949, 1.442695
      %v1963 = vpow.pop %v1962
      %v1964 = vmul.f32 %v1950, 1.442695
      %v1965 = vpow.pop %v1964
      %v1966 = vmul.f32 %v1951, 1.442695
      %v1967 = vpow.pop %v1966
      %v1968 = vsel %vm783, %v1953, 0.0
      %1969 = vadd.xlane.f32.xlu0 %v1968
      %v1970 = vpop.xlane.xlu0 %1969
      %v1971 = vsel %vm783, %v1955, 0.0
      %1972 = vadd.xlane.f32.xlu0 %v1971
      %v1973 = vpop.xlane.xlu0 %1972
      %v1974 = vsel %vm783, %v1957, 0.0
      %1975 = vadd.xlane.f32.xlu0 %v1974
      %v1976 = vpop.xlane.xlu0 %1975
      %v1977 = vsel %vm783, %v1959, 0.0
      %1978 = vadd.xlane.f32.xlu0 %v1977
      %v1979 = vpop.xlane.xlu0 %1978
      %v1980 = vsel %vm783, %v1961, 0.0
      %1981 = vadd.xlane.f32.xlu0 %v1980
      %v1982 = vpop.xlane.xlu0 %1981
      %v1983 = vsel %vm783, %v1963, 0.0
      %1984 = vadd.xlane.f32.xlu0 %v1983
      %v1985 = vpop.xlane.xlu0 %1984
      %v1986 = vsel %vm783, %v1965, 0.0
      %1987 = vadd.xlane.f32.xlu0 %v1986
      %v1988 = vpop.xlane.xlu0 %1987
      %v1989 = vsel %vm783, %v1967, 0.0
      %1990 = vadd.xlane.f32.xlu0 %v1989
      %v1991 = vpop.xlane.xlu0 %1990
      %v1992 = vrcp.pop %v1970
      %v1993 = vrcp.pop %v1973
      %v1994 = vrcp.pop %v1976
      %v1995 = vrcp.pop %v1979
      %v1996 = vrcp.pop %v1982
      %v1997 = vrcp.pop %v1985
      %v1998 = vrcp.pop %v1988
      %v1999 = vrcp.pop %v1991
      %v2000 = vmul.f32 %v1953, %v1992
      %v2001 = vmul.f32 %v1955, %v1993
      %v2002 = vmul.f32 %v1957, %v1994
      %v2003 = vmul.f32 %v1959, %v1995
      %v2004 = vmul.f32 %v1961, %v1996
      %v2005 = vmul.f32 %v1963, %v1997
      %v2006 = vmul.f32 %v1965, %v1998
      %v2007 = vmul.f32 %v1967, %v1999
      %v2009 = vsel %vm783, %v2000, 0
      %v2012 = vsel %vm783, %v2001, 0
      %v2015 = vsel %vm783, %v2002, 0
      %v2018 = vsel %vm783, %v2003, 0
      %v2021 = vsel %vm783, %v2004, 0
      %v2024 = vsel %vm783, %v2005, 0
      %v2027 = vsel %vm783, %v2006, 0
      %v2030 = vsel %vm783, %v2007, 0
      %2032 = vmatpush.msra.mxu0 0.0
      %2033 = vmatpush.msra.mxu0 0.0
      %2034 = vmatpush.msra.mxu0 0.0
      %2035 = vmatpush.msra.mxu0 0.0
      %2036 = vmatpush.msra.mxu0 0.0
      %2037 = vmatpush.msra.mxu0 0.0
      %2038 = vmatpush.msra.mxu0 0.0
      %2039 = vmatpush.msra.mxu0 0.0
      %2040 = vmatpush.msra.mxu0 0.0
      %2041 = vmatpush.msra.mxu0 0.0
      %2042 = vmatpush.msra.mxu0 0.0
      %2043 = vmatpush.msra.mxu0 0.0
      %2044 = vmatpush.msra.mxu0 0.0
      %2045 = vmatpush.msra.mxu0 0.0
      %2046 = vmatpush.msra.mxu0 %v1836
      %2047 = vmatpush.msra.mxu0 %v1833
      %2048 = vmatmul.f32.gmra.mxu0 %v2009
      %v2049 = vpop.f32.mrf.mxu0
      %v2050 = vadd.f32 0.0, %v2049
      %2051 = vmatmul.f32.gmra.mxu0 %v2012
      %v2052 = vpop.f32.mrf.mxu0
      %v2053 = vadd.f32 0.0, %v2052
      %2054 = vmatmul.f32.gmra.mxu0 %v2015
      %v2055 = vpop.f32.mrf.mxu0
      %v2056 = vadd.f32 0.0, %v2055
      %2057 = vmatmul.f32.gmra.mxu0 %v2018
      %v2058 = vpop.f32.mrf.mxu0
      %v2059 = vadd.f32 0.0, %v2058
      %2060 = vmatmul.f32.gmra.mxu0 %v2021
      %v2061 = vpop.f32.mrf.mxu0
      %v2062 = vadd.f32 0.0, %v2061
      %2063 = vmatmul.f32.gmra.mxu0 %v2024
      %v2064 = vpop.f32.mrf.mxu0
      %v2065 = vadd.f32 0.0, %v2064
      %2066 = vmatmul.f32.gmra.mxu0 %v2027
      %v2067 = vpop.f32.mrf.mxu0
      %v2068 = vadd.f32 0.0, %v2067
      %2069 = vmatmul.f32.gmra.mxu0 %v2030
      %v2070 = vpop.f32.mrf.mxu0
      %v2071 = vadd.f32 0.0, %v2070
      %2072 = vdwg.mxu0
      %2081 = vrot.lane.b32.xlu0 %v1298, 8
      %v2082 = vpop.permute.xlu0 %2081
      %2083 = vrot.lane.b32.xlu0 %v1301, 8
      %v2084 = vpop.permute.xlu0 %2083
      %2085 = vrot.lane.b32.xlu0 %v1304, 8
      %v2086 = vpop.permute.xlu0 %2085
      %2087 = vrot.lane.b32.xlu0 %v1307, 8
      %v2088 = vpop.permute.xlu0 %2087
      %2089 = vrot.lane.b32.xlu0 %v1310, 8
      %v2090 = vpop.permute.xlu0 %2089
      %2091 = vrot.lane.b32.xlu0 %v1313, 8
      %v2092 = vpop.permute.xlu0 %2091
      %2093 = vrot.lane.b32.xlu0 %v1316, 8
      %v2094 = vpop.permute.xlu0 %2093
      %2095 = vrot.lane.b32.xlu0 %v1319, 8
      %v2096 = vpop.permute.xlu0 %2095
      %2113 = vrot.lane.b32.xlu0 %v1674, 16
      %v2114 = vpop.permute.xlu0 %2113
      %2115 = vrot.lane.b32.xlu0 %v1677, 16
      %v2116 = vpop.permute.xlu0 %2115
      %2117 = vrot.lane.b32.xlu0 %v1680, 16
      %v2118 = vpop.permute.xlu0 %2117
      %2119 = vrot.lane.b32.xlu0 %v1683, 16
      %v2120 = vpop.permute.xlu0 %2119
      %2121 = vrot.lane.b32.xlu0 %v1686, 16
      %v2122 = vpop.permute.xlu0 %2121
      %2123 = vrot.lane.b32.xlu0 %v1689, 16
      %v2124 = vpop.permute.xlu0 %2123
      %2125 = vrot.lane.b32.xlu0 %v1692, 16
      %v2126 = vpop.permute.xlu0 %2125
      %2127 = vrot.lane.b32.xlu0 %v1695, 16
      %v2128 = vpop.permute.xlu0 %2127
      %2145 = vrot.lane.b32.xlu0 %v2050, 24
      %v2146 = vpop.permute.xlu0 %2145
      %2147 = vrot.lane.b32.xlu0 %v2053, 24
      %v2148 = vpop.permute.xlu0 %2147
      %2149 = vrot.lane.b32.xlu0 %v2056, 24
      %v2150 = vpop.permute.xlu0 %2149
      %2151 = vrot.lane.b32.xlu0 %v2059, 24
      %v2152 = vpop.permute.xlu0 %2151
      %2153 = vrot.lane.b32.xlu0 %v2062, 24
      %v2154 = vpop.permute.xlu0 %2153
      %2155 = vrot.lane.b32.xlu0 %v2065, 24
      %v2156 = vpop.permute.xlu0 %2155
      %2157 = vrot.lane.b32.xlu0 %v2068, 24
      %v2158 = vpop.permute.xlu0 %2157
      %2159 = vrot.lane.b32.xlu0 %v2071, 24
      %v2160 = vpop.permute.xlu0 %2159
      %v2169 = vsel %vm605, %v914, %v2082
      %v2170 = vsel %vm605, %v917, %v2084
      %v2171 = vsel %vm605, %v920, %v2086
      %v2172 = vsel %vm605, %v923, %v2088
      %v2173 = vsel %vm605, %v926, %v2090
      %v2174 = vsel %vm605, %v929, %v2092
      %v2175 = vsel %vm605, %v932, %v2094
      %v2176 = vsel %vm605, %v935, %v2096
      %v2177 = vsel %vm783, %v2169, %v2114
      %v2178 = vsel %vm783, %v2170, %v2116
      %v2179 = vsel %vm783, %v2171, %v2118
      %v2180 = vsel %vm783, %v2172, %v2120
      %v2181 = vsel %vm783, %v2173, %v2122
      %v2182 = vsel %vm783, %v2174, %v2124
      %v2183 = vsel %vm783, %v2175, %v2126
      %v2184 = vsel %vm783, %v2176, %v2128
      %vm2185 = vcmask 195584
      %v2186 = vsel %vm2185, %v2177, %v2146
      %v2187 = vsel %vm2185, %v2178, %v2148
      %v2188 = vsel %vm2185, %v2179, %v2150
      %v2189 = vsel %vm2185, %v2180, %v2152
      %v2190 = vsel %vm2185, %v2181, %v2154
      %v2191 = vsel %vm2185, %v2182, %v2156
      %v2192 = vsel %vm2185, %v2183, %v2158
      %v2193 = vsel %vm2185, %v2184, %v2160
      %v2194 = vld [vmem:[%s7] sm:$0xff]
      %v2195 = vld [vmem:[%s7 + $0x8] sm:$0x1]
      %v2196 = vlaneseq
      %v2197 = vshrl.u32 %v2196, 7
      %v2198 = vadd.s32 %v2197, 8
      %v2199 = vadd.s32 %v2197, 16
      %v2200 = vadd.s32 %v2197, 24
      %v2201 = vadd.s32 %v2197, 32
      %v2202 = vadd.s32 %v2197, 40
      %v2203 = vadd.s32 %v2197, 48
      %v2204 = vadd.s32 %v2197, 56
      %vm2205 = vcmp.lt.s32.totalorder %v2197, 0
      %v2206 = vsub.s32 0, %v2197
      %v2207 = vsel %vm2205, %v2206, %v2197
      %v2208 = vshrl.u32 %v2207, 3
      %v2209 = vand.u32 %v2207, 7
      %v2210 = vsub.s32 0, %v2209
      %v2211 = vsel %vm2205, %v2210, %v2209
      %vm2212 = vcmp.lt.s32.totalorder %v2198, 0
      %v2213 = vsub.s32 0, %v2198
      %v2214 = vsel %vm2212, %v2213, %v2198
      %v2215 = vshrl.u32 %v2214, 3
      %v2216 = vand.u32 %v2214, 7
      %v2217 = vsub.s32 0, %v2216
      %v2218 = vsel %vm2212, %v2217, %v2216
      %vm2219 = vcmp.lt.s32.totalorder %v2199, 0
      %v2220 = vsub.s32 0, %v2199
      %v2221 = vsel %vm2219, %v2220, %v2199
      %v2222 = vshrl.u32 %v2221, 3
      %v2223 = vand.u32 %v2221, 7
      %v2224 = vsub.s32 0, %v2223
      %v2225 = vsel %vm2219, %v2224, %v2223
      %vm2226 = vcmp.lt.s32.totalorder %v2200, 0
      %v2227 = vsub.s32 0, %v2200
      %v2228 = vsel %vm2226, %v2227, %v2200
      %v2229 = vshrl.u32 %v2228, 3
      %v2230 = vand.u32 %v2228, 7
      %v2231 = vsub.s32 0, %v2230
      %v2232 = vsel %vm2226, %v2231, %v2230
      %vm2233 = vcmp.lt.s32.totalorder %v2201, 0
      %v2234 = vsub.s32 0, %v2201
      %v2235 = vsel %vm2233, %v2234, %v2201
      %v2236 = vshrl.u32 %v2235, 3
      %v2237 = vand.u32 %v2235, 7
      %v2238 = vsub.s32 0, %v2237
      %v2239 = vsel %vm2233, %v2238, %v2237
      %vm2240 = vcmp.lt.s32.totalorder %v2202, 0
      %v2241 = vsub.s32 0, %v2202
      %v2242 = vsel %vm2240, %v2241, %v2202
      %v2243 = vshrl.u32 %v2242, 3
      %v2244 = vand.u32 %v2242, 7
      %v2245 = vsub.s32 0, %v2244
      %v2246 = vsel %vm2240, %v2245, %v2244
      %vm2247 = vcmp.lt.s32.totalorder %v2203, 0
      %v2248 = vsub.s32 0, %v2203
      %v2249 = vsel %vm2247, %v2248, %v2203
      %v2250 = vshrl.u32 %v2249, 3
      %v2251 = vand.u32 %v2249, 7
      %v2252 = vsub.s32 0, %v2251
      %v2253 = vsel %vm2247, %v2252, %v2251
      %vm2254 = vcmp.lt.s32.totalorder %v2204, 0
      %v2255 = vsub.s32 0, %v2204
      %v2256 = vsel %vm2254, %v2255, %v2204
      %v2257 = vshrl.u32 %v2256, 3
      %v2258 = vand.u32 %v2256, 7
      %v2259 = vsub.s32 0, %v2258
      %v2260 = vsel %vm2254, %v2259, %v2258
      %vm2261 = vcmp.ne.s32.totalorder %v2211, 0
      %vm2262 = vcmp.ne.s32.totalorder %v2218, 0
      %vm2263 = vcmp.ne.s32.totalorder %v2225, 0
      %vm2264 = vcmp.ne.s32.totalorder %v2232, 0
      %vm2265 = vcmp.ne.s32.totalorder %v2239, 0
      %vm2266 = vcmp.ne.s32.totalorder %v2246, 0
      %vm2267 = vcmp.ne.s32.totalorder %v2253, 0
      %vm2268 = vcmp.ne.s32.totalorder %v2260, 0
      %vm2269 = vcmp.lt.s32.totalorder %v2211, 0
      %vm2270 = vcmp.lt.s32.totalorder %v2218, 0
      %vm2271 = vcmp.lt.s32.totalorder %v2225, 0
      %vm2272 = vcmp.lt.s32.totalorder %v2232, 0
      %vm2273 = vcmp.lt.s32.totalorder %v2239, 0
      %vm2274 = vcmp.lt.s32.totalorder %v2246, 0
      %vm2275 = vcmp.lt.s32.totalorder %v2253, 0
      %vm2276 = vcmp.lt.s32.totalorder %v2260, 0
      %vm2277 = vmand %vm2269, %vm2261
      %vm2278 = vmand %vm2270, %vm2262
      %vm2279 = vmand %vm2271, %vm2263
      %vm2280 = vmand %vm2272, %vm2264
      %vm2281 = vmand %vm2273, %vm2265
      %vm2282 = vmand %vm2274, %vm2266
      %vm2283 = vmand %vm2275, %vm2267
      %vm2284 = vmand %vm2276, %vm2268
      %v2285 = vadd.s32 %v2211, 8
      %v2286 = vadd.s32 %v2218, 8
      %v2287 = vadd.s32 %v2225, 8
      %v2288 = vadd.s32 %v2232, 8
      %v2289 = vadd.s32 %v2239, 8
      %v2290 = vadd.s32 %v2246, 8
      %v2291 = vadd.s32 %v2253, 8
      %v2292 = vadd.s32 %v2260, 8
      %v2293 = vsel %vm2277, %v2285, %v2211
      %v2294 = vsel %vm2278, %v2286, %v2218
      %v2295 = vsel %vm2279, %v2287, %v2225
      %v2296 = vsel %vm2280, %v2288, %v2232
      %v2297 = vsel %vm2281, %v2289, %v2239
      %v2298 = vsel %vm2282, %v2290, %v2246
      %v2299 = vsel %vm2283, %v2291, %v2253
      %v2300 = vsel %vm2284, %v2292, %v2260
      %v2301 = vld [vmem:[%s8] sm:$0x1]
      %v2303 = vperm.slane %v2301, 0
      %v2305 = vadd.f32 %v2186, %v2303
      %v2306 = vadd.f32 %v2187, %v2303
      %v2307 = vadd.f32 %v2188, %v2303
      %v2308 = vadd.f32 %v2189, %v2303
      %v2309 = vadd.f32 %v2190, %v2303
      %v2310 = vadd.f32 %v2191, %v2303
      %v2311 = vadd.f32 %v2192, %v2303
      %v2312 = vadd.f32 %v2193, %v2303
      %v2313 = vrot.slane %v532, 7
      %v2314 = vrot.slane %v535, 7
      %v2315 = vrot.slane %v538, 7
      %v2316 = vrot.slane %v541, 7
      %v2317 = vrot.slane %v544, 7
      %v2318 = vrot.slane %v547, 7
      %v2319 = vrot.slane %v550, 7
      %v2320 = vrot.slane %v553, 7
      %vm2321 = vcmp.lt.s32.totalorder %v2197, 1
      %v2322 = vsel %vm2321, %v2319, %v2320
      %v2323 = vsel %vm2321, %v2318, %v2319
      %v2324 = vsel %vm2321, %v2317, %v2318
      %v2325 = vsel %vm2321, %v2316, %v2317
      %v2326 = vsel %vm2321, %v2315, %v2316
      %v2327 = vsel %vm2321, %v2314, %v2315
      %v2328 = vsel %vm2321, %v2313, %v2314
      %v2329 = vsel %vm2321, %v2320, %v2313
      %v2330 = vadd.s32 %v2197, 4294967287
      %v2331 = vadd.s32 %v2198, 4294967287
      %v2332 = vadd.s32 %v2199, 4294967287
      %v2333 = vadd.s32 %v2200, 4294967287
      %v2334 = vadd.s32 %v2201, 4294967287
      %v2335 = vadd.s32 %v2202, 4294967287
      %v2336 = vadd.s32 %v2203, 4294967287
      %v2337 = vadd.s32 %v2204, 4294967287
      %vm2338 = vcmp.ge.s32.totalorder %v2330, 0
      %vm2339 = vcmp.ge.s32.totalorder %v2331, 0
      %vm2340 = vcmp.ge.s32.totalorder %v2332, 0
      %vm2341 = vcmp.ge.s32.totalorder %v2333, 0
      %vm2342 = vcmp.ge.s32.totalorder %v2334, 0
      %vm2343 = vcmp.ge.s32.totalorder %v2335, 0
      %vm2344 = vcmp.ge.s32.totalorder %v2336, 0
      %vm2345 = vcmp.ge.s32.totalorder %v2337, 0
      %vm2346 = vcmp.lt.s32.totalorder %v2330, 64
      %vm2347 = vcmp.lt.s32.totalorder %v2331, 64
      %vm2348 = vcmp.lt.s32.totalorder %v2332, 64
      %vm2349 = vcmp.lt.s32.totalorder %v2333, 64
      %vm2350 = vcmp.lt.s32.totalorder %v2334, 64
      %vm2351 = vcmp.lt.s32.totalorder %v2335, 64
      %vm2352 = vcmp.lt.s32.totalorder %v2336, 64
      %vm2353 = vcmp.lt.s32.totalorder %v2337, 64
      %vm2354 = vmand %vm2338, %vm2346
      %vm2355 = vmand %vm2339, %vm2347
      %vm2356 = vmand %vm2340, %vm2348
      %vm2357 = vmand %vm2341, %vm2349
      %vm2358 = vmand %vm2342, %vm2350
      %vm2359 = vmand %vm2343, %vm2351
      %vm2360 = vmand %vm2344, %vm2352
      %vm2361 = vmand %vm2345, %vm2353
      %v2362 = vadd.s32 %v2293, 4294967295
      %v2363 = vadd.s32 %v2294, 4294967295
      %v2364 = vadd.s32 %v2295, 4294967295
      %v2365 = vadd.s32 %v2296, 4294967295
      %v2366 = vadd.s32 %v2297, 4294967295
      %v2367 = vadd.s32 %v2298, 4294967295
      %v2368 = vadd.s32 %v2299, 4294967295
      %v2369 = vadd.s32 %v2300, 4294967295
      %vm2370 = vcmp.ge.s32.totalorder %v2362, 0
      %vm2371 = vcmp.ge.s32.totalorder %v2363, 0
      %vm2372 = vcmp.ge.s32.totalorder %v2364, 0
      %vm2373 = vcmp.ge.s32.totalorder %v2365, 0
      %vm2374 = vcmp.ge.s32.totalorder %v2366, 0
      %vm2375 = vcmp.ge.s32.totalorder %v2367, 0
      %vm2376 = vcmp.ge.s32.totalorder %v2368, 0
      %vm2377 = vcmp.ge.s32.totalorder %v2369, 0
      %vm2378 = vmand %vm2354, %vm2370
      %vm2379 = vmand %vm2355, %vm2371
      %vm2380 = vmand %vm2356, %vm2372
      %vm2381 = vmand %vm2357, %vm2373
      %vm2382 = vmand %vm2358, %vm2374
      %vm2383 = vmand %vm2359, %vm2375
      %vm2384 = vmand %vm2360, %vm2376
      %vm2385 = vmand %vm2361, %vm2377
      %vm2386 = vcmp.lt.s32.totalorder %v2362, 8
      %vm2387 = vcmp.lt.s32.totalorder %v2363, 8
      %vm2388 = vcmp.lt.s32.totalorder %v2364, 8
      %vm2389 = vcmp.lt.s32.totalorder %v2365, 8
      %vm2390 = vcmp.lt.s32.totalorder %v2366, 8
      %vm2391 = vcmp.lt.s32.totalorder %v2367, 8
      %vm2392 = vcmp.lt.s32.totalorder %v2368, 8
      %vm2393 = vcmp.lt.s32.totalorder %v2369, 8
      %vm2394 = vmand %vm2378, %vm2386
      %vm2395 = vmand %vm2379, %vm2387
      %vm2396 = vmand %vm2380, %vm2388
      %vm2397 = vmand %vm2381, %vm2389
      %vm2398 = vmand %vm2382, %vm2390
      %vm2399 = vmand %vm2383, %vm2391
      %vm2400 = vmand %vm2384, %vm2392
      %vm2401 = vmand %vm2385, %vm2393
      %v2402 = vsel %vm2394, 1, 0
      %v2403 = vsel %vm2395, 1, 0
      %v2404 = vsel %vm2396, 1, 0
      %v2405 = vsel %vm2397, 1, 0
      %v2406 = vsel %vm2398, 1, 0
      %v2407 = vsel %vm2399, 1, 0
      %v2408 = vsel %vm2400, 1, 0
      %v2409 = vsel %vm2401, 1, 0
      %v2410 = vcvt.s32.f32 %v2402
      %v2411 = vcvt.s32.f32 %v2403
      %v2412 = vcvt.s32.f32 %v2404
      %v2413 = vcvt.s32.f32 %v2405
      %v2414 = vcvt.s32.f32 %v2406
      %v2415 = vcvt.s32.f32 %v2407
      %v2416 = vcvt.s32.f32 %v2408
      %v2417 = vcvt.s32.f32 %v2409
      %v2418 = vmul.f32 %v2322, %v2410
      %v2419 = vmul.f32 %v2329, %v2411
      %v2420 = vmul.f32 %v2328, %v2412
      %v2421 = vmul.f32 %v2327, %v2413
      %v2422 = vmul.f32 %v2326, %v2414
      %v2423 = vmul.f32 %v2325, %v2415
      %v2424 = vmul.f32 %v2324, %v2416
      %v2425 = vmul.f32 %v2323, %v2417
      %v2426 = vperm.slane %v2194, 0
      %v2427 = vmul.f32 %v2418, %v2426
      %v2428 = vmul.f32 %v2419, %v2426
      %v2429 = vmul.f32 %v2420, %v2426
      %v2430 = vmul.f32 %v2421, %v2426
      %v2431 = vmul.f32 %v2422, %v2426
      %v2432 = vmul.f32 %v2423, %v2426
      %v2433 = vmul.f32 %v2424, %v2426
      %v2434 = vmul.f32 %v2425, %v2426
      %v2435 = vadd.f32 %v2305, %v2427
      %v2436 = vadd.f32 %v2306, %v2428
      %v2437 = vadd.f32 %v2307, %v2429
      %v2438 = vadd.f32 %v2308, %v2430
      %v2439 = vadd.f32 %v2309, %v2431
      %v2440 = vadd.f32 %v2310, %v2432
      %v2441 = vadd.f32 %v2311, %v2433
      %v2442 = vadd.f32 %v2312, %v2434
      %v2443 = vadd.s32 %v2197, 4294967288
      %v2444 = vadd.s32 %v2198, 4294967288
      %v2445 = vadd.s32 %v2199, 4294967288
      %v2446 = vadd.s32 %v2200, 4294967288
      %v2447 = vadd.s32 %v2201, 4294967288
      %v2448 = vadd.s32 %v2202, 4294967288
      %v2449 = vadd.s32 %v2203, 4294967288
      %v2450 = vadd.s32 %v2204, 4294967288
      %vm2451 = vcmp.ge.s32.totalorder %v2443, 0
      %vm2452 = vcmp.ge.s32.totalorder %v2444, 0
      %vm2453 = vcmp.ge.s32.totalorder %v2445, 0
      %vm2454 = vcmp.ge.s32.totalorder %v2446, 0
      %vm2455 = vcmp.ge.s32.totalorder %v2447, 0
      %vm2456 = vcmp.ge.s32.totalorder %v2448, 0
      %vm2457 = vcmp.ge.s32.totalorder %v2449, 0
      %vm2458 = vcmp.ge.s32.totalorder %v2450, 0
      %vm2459 = vcmp.lt.s32.totalorder %v2443, 64
      %vm2460 = vcmp.lt.s32.totalorder %v2444, 64
      %vm2461 = vcmp.lt.s32.totalorder %v2445, 64
      %vm2462 = vcmp.lt.s32.totalorder %v2446, 64
      %vm2463 = vcmp.lt.s32.totalorder %v2447, 64
      %vm2464 = vcmp.lt.s32.totalorder %v2448, 64
      %vm2465 = vcmp.lt.s32.totalorder %v2449, 64
      %vm2466 = vcmp.lt.s32.totalorder %v2450, 64
      %vm2467 = vmand %vm2451, %vm2459
      %vm2468 = vmand %vm2452, %vm2460
      %vm2469 = vmand %vm2453, %vm2461
      %vm2470 = vmand %vm2454, %vm2462
      %vm2471 = vmand %vm2455, %vm2463
      %vm2472 = vmand %vm2456, %vm2464
      %vm2473 = vmand %vm2457, %vm2465
      %vm2474 = vmand %vm2458, %vm2466
      %v2475 = vsel %vm2467, 1, 0
      %v2476 = vsel %vm2468, 1, 0
      %v2477 = vsel %vm2469, 1, 0
      %v2478 = vsel %vm2470, 1, 0
      %v2479 = vsel %vm2471, 1, 0
      %v2480 = vsel %vm2472, 1, 0
      %v2481 = vsel %vm2473, 1, 0
      %v2482 = vsel %vm2474, 1, 0
      %v2483 = vcvt.s32.f32 %v2475
      %v2484 = vcvt.s32.f32 %v2476
      %v2485 = vcvt.s32.f32 %v2477
      %v2486 = vcvt.s32.f32 %v2478
      %v2487 = vcvt.s32.f32 %v2479
      %v2488 = vcvt.s32.f32 %v2480
      %v2489 = vcvt.s32.f32 %v2481
      %v2490 = vcvt.s32.f32 %v2482
      %v2491 = vmul.f32 %v553, %v2483
      %v2492 = vmul.f32 %v532, %v2484
      %v2493 = vmul.f32 %v535, %v2485
      %v2494 = vmul.f32 %v538, %v2486
      %v2495 = vmul.f32 %v541, %v2487
      %v2496 = vmul.f32 %v544, %v2488
      %v2497 = vmul.f32 %v547, %v2489
      %v2498 = vmul.f32 %v550, %v2490
      %v2499 = vperm.slane %v2194, 1
      %v2500 = vmul.f32 %v2491, %v2499
      %v2501 = vmul.f32 %v2492, %v2499
      %v2502 = vmul.f32 %v2493, %v2499
      %v2503 = vmul.f32 %v2494, %v2499
      %v2504 = vmul.f32 %v2495, %v2499
      %v2505 = vmul.f32 %v2496, %v2499
      %v2506 = vmul.f32 %v2497, %v2499
      %v2507 = vmul.f32 %v2498, %v2499
      %v2508 = vadd.f32 %v2435, %v2500
      %v2509 = vadd.f32 %v2436, %v2501
      %v2510 = vadd.f32 %v2437, %v2502
      %v2511 = vadd.f32 %v2438, %v2503
      %v2512 = vadd.f32 %v2439, %v2504
      %v2513 = vadd.f32 %v2440, %v2505
      %v2514 = vadd.f32 %v2441, %v2506
      %v2515 = vadd.f32 %v2442, %v2507
      %v2516 = vrot.slane %v532, 1
      %v2517 = vrot.slane %v535, 1
      %v2518 = vrot.slane %v538, 1
      %v2519 = vrot.slane %v541, 1
      %v2520 = vrot.slane %v544, 1
      %v2521 = vrot.slane %v547, 1
      %v2522 = vrot.slane %v550, 1
      %v2523 = vrot.slane %v553, 1
      %vm2524 = vcmp.lt.s32.totalorder %v2197, 7
      %v2525 = vsel %vm2524, %v2522, %v2523
      %v2526 = vsel %vm2524, %v2521, %v2522
      %v2527 = vsel %vm2524, %v2520, %v2521
      %v2528 = vsel %vm2524, %v2519, %v2520
      %v2529 = vsel %vm2524, %v2518, %v2519
      %v2530 = vsel %vm2524, %v2517, %v2518
      %v2531 = vsel %vm2524, %v2516, %v2517
      %v2532 = vsel %vm2524, %v2523, %v2516
      %v2533 = vadd.s32 %v2197, 4294967289
      %v2534 = vadd.s32 %v2198, 4294967289
      %v2535 = vadd.s32 %v2199, 4294967289
      %v2536 = vadd.s32 %v2200, 4294967289
      %v2537 = vadd.s32 %v2201, 4294967289
      %v2538 = vadd.s32 %v2202, 4294967289
      %v2539 = vadd.s32 %v2203, 4294967289
      %v2540 = vadd.s32 %v2204, 4294967289
      %vm2541 = vcmp.ge.s32.totalorder %v2533, 0
      %vm2542 = vcmp.ge.s32.totalorder %v2534, 0
      %vm2543 = vcmp.ge.s32.totalorder %v2535, 0
      %vm2544 = vcmp.ge.s32.totalorder %v2536, 0
      %vm2545 = vcmp.ge.s32.totalorder %v2537, 0
      %vm2546 = vcmp.ge.s32.totalorder %v2538, 0
      %vm2547 = vcmp.ge.s32.totalorder %v2539, 0
      %vm2548 = vcmp.ge.s32.totalorder %v2540, 0
      %vm2549 = vcmp.lt.s32.totalorder %v2533, 64
      %vm2550 = vcmp.lt.s32.totalorder %v2534, 64
      %vm2551 = vcmp.lt.s32.totalorder %v2535, 64
      %vm2552 = vcmp.lt.s32.totalorder %v2536, 64
      %vm2553 = vcmp.lt.s32.totalorder %v2537, 64
      %vm2554 = vcmp.lt.s32.totalorder %v2538, 64
      %vm2555 = vcmp.lt.s32.totalorder %v2539, 64
      %vm2556 = vcmp.lt.s32.totalorder %v2540, 64
      %vm2557 = vmand %vm2541, %vm2549
      %vm2558 = vmand %vm2542, %vm2550
      %vm2559 = vmand %vm2543, %vm2551
      %vm2560 = vmand %vm2544, %vm2552
      %vm2561 = vmand %vm2545, %vm2553
      %vm2562 = vmand %vm2546, %vm2554
      %vm2563 = vmand %vm2547, %vm2555
      %vm2564 = vmand %vm2548, %vm2556
      %v2565 = vadd.s32 %v2293, 1
      %v2566 = vadd.s32 %v2294, 1
      %v2567 = vadd.s32 %v2295, 1
      %v2568 = vadd.s32 %v2296, 1
      %v2569 = vadd.s32 %v2297, 1
      %v2570 = vadd.s32 %v2298, 1
      %v2571 = vadd.s32 %v2299, 1
      %v2572 = vadd.s32 %v2300, 1
      %vm2573 = vcmp.ge.s32.totalorder %v2565, 0
      %vm2574 = vcmp.ge.s32.totalorder %v2566, 0
      %vm2575 = vcmp.ge.s32.totalorder %v2567, 0
      %vm2576 = vcmp.ge.s32.totalorder %v2568, 0
      %vm2577 = vcmp.ge.s32.totalorder %v2569, 0
      %vm2578 = vcmp.ge.s32.totalorder %v2570, 0
      %vm2579 = vcmp.ge.s32.totalorder %v2571, 0
      %vm2580 = vcmp.ge.s32.totalorder %v2572, 0
      %vm2581 = vmand %vm2557, %vm2573
      %vm2582 = vmand %vm2558, %vm2574
      %vm2583 = vmand %vm2559, %vm2575
      %vm2584 = vmand %vm2560, %vm2576
      %vm2585 = vmand %vm2561, %vm2577
      %vm2586 = vmand %vm2562, %vm2578
      %vm2587 = vmand %vm2563, %vm2579
      %vm2588 = vmand %vm2564, %vm2580
      %vm2589 = vcmp.lt.s32.totalorder %v2565, 8
      %vm2590 = vcmp.lt.s32.totalorder %v2566, 8
      %vm2591 = vcmp.lt.s32.totalorder %v2567, 8
      %vm2592 = vcmp.lt.s32.totalorder %v2568, 8
      %vm2593 = vcmp.lt.s32.totalorder %v2569, 8
      %vm2594 = vcmp.lt.s32.totalorder %v2570, 8
      %vm2595 = vcmp.lt.s32.totalorder %v2571, 8
      %vm2596 = vcmp.lt.s32.totalorder %v2572, 8
      %vm2597 = vmand %vm2581, %vm2589
      %vm2598 = vmand %vm2582, %vm2590
      %vm2599 = vmand %vm2583, %vm2591
      %vm2600 = vmand %vm2584, %vm2592
      %vm2601 = vmand %vm2585, %vm2593
      %vm2602 = vmand %vm2586, %vm2594
      %vm2603 = vmand %vm2587, %vm2595
      %vm2604 = vmand %vm2588, %vm2596
      %v2605 = vsel %vm2597, 1, 0
      %v2606 = vsel %vm2598, 1, 0
      %v2607 = vsel %vm2599, 1, 0
      %v2608 = vsel %vm2600, 1, 0
      %v2609 = vsel %vm2601, 1, 0
      %v2610 = vsel %vm2602, 1, 0
      %v2611 = vsel %vm2603, 1, 0
      %v2612 = vsel %vm2604, 1, 0
      %v2613 = vcvt.s32.f32 %v2605
      %v2614 = vcvt.s32.f32 %v2606
      %v2615 = vcvt.s32.f32 %v2607
      %v2616 = vcvt.s32.f32 %v2608
      %v2617 = vcvt.s32.f32 %v2609
      %v2618 = vcvt.s32.f32 %v2610
      %v2619 = vcvt.s32.f32 %v2611
      %v2620 = vcvt.s32.f32 %v2612
      %v2621 = vmul.f32 %v2532, %v2613
      %v2622 = vmul.f32 %v2531, %v2614
      %v2623 = vmul.f32 %v2530, %v2615
      %v2624 = vmul.f32 %v2529, %v2616
      %v2625 = vmul.f32 %v2528, %v2617
      %v2626 = vmul.f32 %v2527, %v2618
      %v2627 = vmul.f32 %v2526, %v2619
      %v2628 = vmul.f32 %v2525, %v2620
      %v2629 = vperm.slane %v2194, 2
      %v2630 = vmul.f32 %v2621, %v2629
      %v2631 = vmul.f32 %v2622, %v2629
      %v2632 = vmul.f32 %v2623, %v2629
      %v2633 = vmul.f32 %v2624, %v2629
      %v2634 = vmul.f32 %v2625, %v2629
      %v2635 = vmul.f32 %v2626, %v2629
      %v2636 = vmul.f32 %v2627, %v2629
      %v2637 = vmul.f32 %v2628, %v2629
      %v2638 = vadd.f32 %v2508, %v2630
      %v2639 = vadd.f32 %v2509, %v2631
      %v2640 = vadd.f32 %v2510, %v2632
      %v2641 = vadd.f32 %v2511, %v2633
      %v2642 = vadd.f32 %v2512, %v2634
      %v2643 = vadd.f32 %v2513, %v2635
      %v2644 = vadd.f32 %v2514, %v2636
      %v2645 = vadd.f32 %v2515, %v2637
      %v2646 = vadd.s32 %v2197, 4294967295
      %v2647 = vadd.s32 %v2198, 4294967295
      %v2648 = vadd.s32 %v2199, 4294967295
      %v2649 = vadd.s32 %v2200, 4294967295
      %v2650 = vadd.s32 %v2201, 4294967295
      %v2651 = vadd.s32 %v2202, 4294967295
      %v2652 = vadd.s32 %v2203, 4294967295
      %v2653 = vadd.s32 %v2204, 4294967295
      %vm2654 = vcmp.ge.s32.totalorder %v2646, 0
      %vm2655 = vcmp.ge.s32.totalorder %v2647, 0
      %vm2656 = vcmp.ge.s32.totalorder %v2648, 0
      %vm2657 = vcmp.ge.s32.totalorder %v2649, 0
      %vm2658 = vcmp.ge.s32.totalorder %v2650, 0
      %vm2659 = vcmp.ge.s32.totalorder %v2651, 0
      %vm2660 = vcmp.ge.s32.totalorder %v2652, 0
      %vm2661 = vcmp.ge.s32.totalorder %v2653, 0
      %vm2662 = vcmp.lt.s32.totalorder %v2646, 64
      %vm2663 = vcmp.lt.s32.totalorder %v2647, 64
      %vm2664 = vcmp.lt.s32.totalorder %v2648, 64
      %vm2665 = vcmp.lt.s32.totalorder %v2649, 64
      %vm2666 = vcmp.lt.s32.totalorder %v2650, 64
      %vm2667 = vcmp.lt.s32.totalorder %v2651, 64
      %vm2668 = vcmp.lt.s32.totalorder %v2652, 64
      %vm2669 = vcmp.lt.s32.totalorder %v2653, 64
      %vm2670 = vmand %vm2654, %vm2662
      %vm2671 = vmand %vm2655, %vm2663
      %vm2672 = vmand %vm2656, %vm2664
      %vm2673 = vmand %vm2657, %vm2665
      %vm2674 = vmand %vm2658, %vm2666
      %vm2675 = vmand %vm2659, %vm2667
      %vm2676 = vmand %vm2660, %vm2668
      %vm2677 = vmand %vm2661, %vm2669
      %vm2678 = vmand %vm2670, %vm2370
      %vm2679 = vmand %vm2671, %vm2371
      %vm2680 = vmand %vm2672, %vm2372
      %vm2681 = vmand %vm2673, %vm2373
      %vm2682 = vmand %vm2674, %vm2374
      %vm2683 = vmand %vm2675, %vm2375
      %vm2684 = vmand %vm2676, %vm2376
      %vm2685 = vmand %vm2677, %vm2377
      %vm2686 = vmand %vm2678, %vm2386
      %vm2687 = vmand %vm2679, %vm2387
      %vm2688 = vmand %vm2680, %vm2388
      %vm2689 = vmand %vm2681, %vm2389
      %vm2690 = vmand %vm2682, %vm2390
      %vm2691 = vmand %vm2683, %vm2391
      %vm2692 = vmand %vm2684, %vm2392
      %vm2693 = vmand %vm2685, %vm2393
      %v2694 = vsel %vm2686, 1, 0
      %v2695 = vsel %vm2687, 1, 0
      %v2696 = vsel %vm2688, 1, 0
      %v2697 = vsel %vm2689, 1, 0
      %v2698 = vsel %vm2690, 1, 0
      %v2699 = vsel %vm2691, 1, 0
      %v2700 = vsel %vm2692, 1, 0
      %v2701 = vsel %vm2693, 1, 0
      %v2702 = vcvt.s32.f32 %v2694
      %v2703 = vcvt.s32.f32 %v2695
      %v2704 = vcvt.s32.f32 %v2696
      %v2705 = vcvt.s32.f32 %v2697
      %v2706 = vcvt.s32.f32 %v2698
      %v2707 = vcvt.s32.f32 %v2699
      %v2708 = vcvt.s32.f32 %v2700
      %v2709 = vcvt.s32.f32 %v2701
      %v2710 = vmul.f32 %v2329, %v2702
      %v2711 = vmul.f32 %v2328, %v2703
      %v2712 = vmul.f32 %v2327, %v2704
      %v2713 = vmul.f32 %v2326, %v2705
      %v2714 = vmul.f32 %v2325, %v2706
      %v2715 = vmul.f32 %v2324, %v2707
      %v2716 = vmul.f32 %v2323, %v2708
      %v2717 = vmul.f32 %v2322, %v2709
      %v2718 = vperm.slane %v2194, 3
      %v2719 = vmul.f32 %v2710, %v2718
      %v2720 = vmul.f32 %v2711, %v2718
      %v2721 = vmul.f32 %v2712, %v2718
      %v2722 = vmul.f32 %v2713, %v2718
      %v2723 = vmul.f32 %v2714, %v2718
      %v2724 = vmul.f32 %v2715, %v2718
      %v2725 = vmul.f32 %v2716, %v2718
      %v2726 = vmul.f32 %v2717, %v2718
      %v2727 = vadd.f32 %v2638, %v2719
      %v2728 = vadd.f32 %v2639, %v2720
      %v2729 = vadd.f32 %v2640, %v2721
      %v2730 = vadd.f32 %v2641, %v2722
      %v2731 = vadd.f32 %v2642, %v2723
      %v2732 = vadd.f32 %v2643, %v2724
      %v2733 = vadd.f32 %v2644, %v2725
      %v2734 = vadd.f32 %v2645, %v2726
      %v2735 = vperm.slane %v2194, 4
      %v2736 = vmul.f32 %v532, %v2735
      %v2737 = vmul.f32 %v535, %v2735
      %v2738 = vmul.f32 %v538, %v2735
      %v2739 = vmul.f32 %v541, %v2735
      %v2740 = vmul.f32 %v544, %v2735
      %v2741 = vmul.f32 %v547, %v2735
      %v2742 = vmul.f32 %v550, %v2735
      %v2743 = vmul.f32 %v553, %v2735
      %v2744 = vadd.f32 %v2727, %v2736
      %v2745 = vadd.f32 %v2728, %v2737
      %v2746 = vadd.f32 %v2729, %v2738
      %v2747 = vadd.f32 %v2730, %v2739
      %v2748 = vadd.f32 %v2731, %v2740
      %v2749 = vadd.f32 %v2732, %v2741
      %v2750 = vadd.f32 %v2733, %v2742
      %v2751 = vadd.f32 %v2734, %v2743
      %v2752 = vadd.s32 %v2197, 1
      %v2753 = vadd.s32 %v2198, 1
      %v2754 = vadd.s32 %v2199, 1
      %v2755 = vadd.s32 %v2200, 1
      %v2756 = vadd.s32 %v2201, 1
      %v2757 = vadd.s32 %v2202, 1
      %v2758 = vadd.s32 %v2203, 1
      %v2759 = vadd.s32 %v2204, 1
      %vm2760 = vcmp.ge.s32.totalorder %v2752, 0
      %vm2761 = vcmp.ge.s32.totalorder %v2753, 0
      %vm2762 = vcmp.ge.s32.totalorder %v2754, 0
      %vm2763 = vcmp.ge.s32.totalorder %v2755, 0
      %vm2764 = vcmp.ge.s32.totalorder %v2756, 0
      %vm2765 = vcmp.ge.s32.totalorder %v2757, 0
      %vm2766 = vcmp.ge.s32.totalorder %v2758, 0
      %vm2767 = vcmp.ge.s32.totalorder %v2759, 0
      %vm2768 = vcmp.lt.s32.totalorder %v2752, 64
      %vm2769 = vcmp.lt.s32.totalorder %v2753, 64
      %vm2770 = vcmp.lt.s32.totalorder %v2754, 64
      %vm2771 = vcmp.lt.s32.totalorder %v2755, 64
      %vm2772 = vcmp.lt.s32.totalorder %v2756, 64
      %vm2773 = vcmp.lt.s32.totalorder %v2757, 64
      %vm2774 = vcmp.lt.s32.totalorder %v2758, 64
      %vm2775 = vcmp.lt.s32.totalorder %v2759, 64
      %vm2776 = vmand %vm2760, %vm2768
      %vm2777 = vmand %vm2761, %vm2769
      %vm2778 = vmand %vm2762, %vm2770
      %vm2779 = vmand %vm2763, %vm2771
      %vm2780 = vmand %vm2764, %vm2772
      %vm2781 = vmand %vm2765, %vm2773
      %vm2782 = vmand %vm2766, %vm2774
      %vm2783 = vmand %vm2767, %vm2775
      %vm2784 = vmand %vm2776, %vm2573
      %vm2785 = vmand %vm2777, %vm2574
      %vm2786 = vmand %vm2778, %vm2575
      %vm2787 = vmand %vm2779, %vm2576
      %vm2788 = vmand %vm2780, %vm2577
      %vm2789 = vmand %vm2781, %vm2578
      %vm2790 = vmand %vm2782, %vm2579
      %vm2791 = vmand %vm2783, %vm2580
      %vm2792 = vmand %vm2784, %vm2589
      %vm2793 = vmand %vm2785, %vm2590
      %vm2794 = vmand %vm2786, %vm2591
      %vm2795 = vmand %vm2787, %vm2592
      %vm2796 = vmand %vm2788, %vm2593
      %vm2797 = vmand %vm2789, %vm2594
      %vm2798 = vmand %vm2790, %vm2595
      %vm2799 = vmand %vm2791, %vm2596
      %v2800 = vsel %vm2792, 1, 0
      %v2801 = vsel %vm2793, 1, 0
      %v2802 = vsel %vm2794, 1, 0
      %v2803 = vsel %vm2795, 1, 0
      %v2804 = vsel %vm2796, 1, 0
      %v2805 = vsel %vm2797, 1, 0
      %v2806 = vsel %vm2798, 1, 0
      %v2807 = vsel %vm2799, 1, 0
      %v2808 = vcvt.s32.f32 %v2800
      %v2809 = vcvt.s32.f32 %v2801
      %v2810 = vcvt.s32.f32 %v2802
      %v2811 = vcvt.s32.f32 %v2803
      %v2812 = vcvt.s32.f32 %v2804
      %v2813 = vcvt.s32.f32 %v2805
      %v2814 = vcvt.s32.f32 %v2806
      %v2815 = vcvt.s32.f32 %v2807
      %v2816 = vmul.f32 %v2531, %v2808
      %v2817 = vmul.f32 %v2530, %v2809
      %v2818 = vmul.f32 %v2529, %v2810
      %v2819 = vmul.f32 %v2528, %v2811
      %v2820 = vmul.f32 %v2527, %v2812
      %v2821 = vmul.f32 %v2526, %v2813
      %v2822 = vmul.f32 %v2525, %v2814
      %v2823 = vmul.f32 %v2532, %v2815
      %v2824 = vperm.slane %v2194, 5
      %v2825 = vmul.f32 %v2816, %v2824
      %v2826 = vmul.f32 %v2817, %v2824
      %v2827 = vmul.f32 %v2818, %v2824
      %v2828 = vmul.f32 %v2819, %v2824
      %v2829 = vmul.f32 %v2820, %v2824
      %v2830 = vmul.f32 %v2821, %v2824
      %v2831 = vmul.f32 %v2822, %v2824
      %v2832 = vmul.f32 %v2823, %v2824
      %v2833 = vadd.f32 %v2744, %v2825
      %v2834 = vadd.f32 %v2745, %v2826
      %v2835 = vadd.f32 %v2746, %v2827
      %v2836 = vadd.f32 %v2747, %v2828
      %v2837 = vadd.f32 %v2748, %v2829
      %v2838 = vadd.f32 %v2749, %v2830
      %v2839 = vadd.f32 %v2750, %v2831
      %v2840 = vadd.f32 %v2751, %v2832
      %v2841 = vadd.s32 %v2197, 7
      %v2842 = vadd.s32 %v2198, 7
      %v2843 = vadd.s32 %v2199, 7
      %v2844 = vadd.s32 %v2200, 7
      %v2845 = vadd.s32 %v2201, 7
      %v2846 = vadd.s32 %v2202, 7
      %v2847 = vadd.s32 %v2203, 7
      %v2848 = vadd.s32 %v2204, 7
      %vm2849 = vcmp.ge.s32.totalorder %v2841, 0
      %vm2850 = vcmp.ge.s32.totalorder %v2842, 0
      %vm2851 = vcmp.ge.s32.totalorder %v2843, 0
      %vm2852 = vcmp.ge.s32.totalorder %v2844, 0
      %vm2853 = vcmp.ge.s32.totalorder %v2845, 0
      %vm2854 = vcmp.ge.s32.totalorder %v2846, 0
      %vm2855 = vcmp.ge.s32.totalorder %v2847, 0
      %vm2856 = vcmp.ge.s32.totalorder %v2848, 0
      %vm2857 = vcmp.lt.s32.totalorder %v2841, 64
      %vm2858 = vcmp.lt.s32.totalorder %v2842, 64
      %vm2859 = vcmp.lt.s32.totalorder %v2843, 64
      %vm2860 = vcmp.lt.s32.totalorder %v2844, 64
      %vm2861 = vcmp.lt.s32.totalorder %v2845, 64
      %vm2862 = vcmp.lt.s32.totalorder %v2846, 64
      %vm2863 = vcmp.lt.s32.totalorder %v2847, 64
      %vm2864 = vcmp.lt.s32.totalorder %v2848, 64
      %vm2865 = vmand %vm2849, %vm2857
      %vm2866 = vmand %vm2850, %vm2858
      %vm2867 = vmand %vm2851, %vm2859
      %vm2868 = vmand %vm2852, %vm2860
      %vm2869 = vmand %vm2853, %vm2861
      %vm2870 = vmand %vm2854, %vm2862
      %vm2871 = vmand %vm2855, %vm2863
      %vm2872 = vmand %vm2856, %vm2864
      %vm2873 = vmand %vm2865, %vm2370
      %vm2874 = vmand %vm2866, %vm2371
      %vm2875 = vmand %vm2867, %vm2372
      %vm2876 = vmand %vm2868, %vm2373
      %vm2877 = vmand %vm2869, %vm2374
      %vm2878 = vmand %vm2870, %vm2375
      %vm2879 = vmand %vm2871, %vm2376
      %vm2880 = vmand %vm2872, %vm2377
      %vm2881 = vmand %vm2873, %vm2386
      %vm2882 = vmand %vm2874, %vm2387
      %vm2883 = vmand %vm2875, %vm2388
      %vm2884 = vmand %vm2876, %vm2389
      %vm2885 = vmand %vm2877, %vm2390
      %vm2886 = vmand %vm2878, %vm2391
      %vm2887 = vmand %vm2879, %vm2392
      %vm2888 = vmand %vm2880, %vm2393
      %v2889 = vsel %vm2881, 1, 0
      %v2890 = vsel %vm2882, 1, 0
      %v2891 = vsel %vm2883, 1, 0
      %v2892 = vsel %vm2884, 1, 0
      %v2893 = vsel %vm2885, 1, 0
      %v2894 = vsel %vm2886, 1, 0
      %v2895 = vsel %vm2887, 1, 0
      %v2896 = vsel %vm2888, 1, 0
      %v2897 = vcvt.s32.f32 %v2889
      %v2898 = vcvt.s32.f32 %v2890
      %v2899 = vcvt.s32.f32 %v2891
      %v2900 = vcvt.s32.f32 %v2892
      %v2901 = vcvt.s32.f32 %v2893
      %v2902 = vcvt.s32.f32 %v2894
      %v2903 = vcvt.s32.f32 %v2895
      %v2904 = vcvt.s32.f32 %v2896
      %v2905 = vmul.f32 %v2328, %v2897
      %v2906 = vmul.f32 %v2327, %v2898
      %v2907 = vmul.f32 %v2326, %v2899
      %v2908 = vmul.f32 %v2325, %v2900
      %v2909 = vmul.f32 %v2324, %v2901
      %v2910 = vmul.f32 %v2323, %v2902
      %v2911 = vmul.f32 %v2322, %v2903
      %v2912 = vmul.f32 %v2329, %v2904
      %v2913 = vperm.slane %v2194, 6
      %v2914 = vmul.f32 %v2905, %v2913
      %v2915 = vmul.f32 %v2906, %v2913
      %v2916 = vmul.f32 %v2907, %v2913
      %v2917 = vmul.f32 %v2908, %v2913
      %v2918 = vmul.f32 %v2909, %v2913
      %v2919 = vmul.f32 %v2910, %v2913
      %v2920 = vmul.f32 %v2911, %v2913
      %v2921 = vmul.f32 %v2912, %v2913
      %v2922 = vadd.f32 %v2833, %v2914
      %v2923 = vadd.f32 %v2834, %v2915
      %v2924 = vadd.f32 %v2835, %v2916
      %v2925 = vadd.f32 %v2836, %v2917
      %v2926 = vadd.f32 %v2837, %v2918
      %v2927 = vadd.f32 %v2838, %v2919
      %v2928 = vadd.f32 %v2839, %v2920
      %v2929 = vadd.f32 %v2840, %v2921
      %v2930 = vadd.s32 %v2198, 8
      %v2931 = vadd.s32 %v2199, 8
      %v2932 = vadd.s32 %v2200, 8
      %v2933 = vadd.s32 %v2201, 8
      %v2934 = vadd.s32 %v2202, 8
      %v2935 = vadd.s32 %v2203, 8
      %v2936 = vadd.s32 %v2204, 8
      %vm2937 = vcmp.ge.s32.totalorder %v2198, 0
      %vm2938 = vcmp.ge.s32.totalorder %v2930, 0
      %vm2939 = vcmp.ge.s32.totalorder %v2931, 0
      %vm2940 = vcmp.ge.s32.totalorder %v2932, 0
      %vm2941 = vcmp.ge.s32.totalorder %v2933, 0
      %vm2942 = vcmp.ge.s32.totalorder %v2934, 0
      %vm2943 = vcmp.ge.s32.totalorder %v2935, 0
      %vm2944 = vcmp.ge.s32.totalorder %v2936, 0
      %vm2945 = vcmp.lt.s32.totalorder %v2198, 64
      %vm2946 = vcmp.lt.s32.totalorder %v2930, 64
      %vm2947 = vcmp.lt.s32.totalorder %v2931, 64
      %vm2948 = vcmp.lt.s32.totalorder %v2932, 64
      %vm2949 = vcmp.lt.s32.totalorder %v2933, 64
      %vm2950 = vcmp.lt.s32.totalorder %v2934, 64
      %vm2951 = vcmp.lt.s32.totalorder %v2935, 64
      %vm2952 = vcmp.lt.s32.totalorder %v2936, 64
      %vm2953 = vmand %vm2937, %vm2945
      %vm2954 = vmand %vm2938, %vm2946
      %vm2955 = vmand %vm2939, %vm2947
      %vm2956 = vmand %vm2940, %vm2948
      %vm2957 = vmand %vm2941, %vm2949
      %vm2958 = vmand %vm2942, %vm2950
      %vm2959 = vmand %vm2943, %vm2951
      %vm2960 = vmand %vm2944, %vm2952
      %v2961 = vsel %vm2953, 1, 0
      %v2962 = vsel %vm2954, 1, 0
      %v2963 = vsel %vm2955, 1, 0
      %v2964 = vsel %vm2956, 1, 0
      %v2965 = vsel %vm2957, 1, 0
      %v2966 = vsel %vm2958, 1, 0
      %v2967 = vsel %vm2959, 1, 0
      %v2968 = vsel %vm2960, 1, 0
      %v2969 = vcvt.s32.f32 %v2961
      %v2970 = vcvt.s32.f32 %v2962
      %v2971 = vcvt.s32.f32 %v2963
      %v2972 = vcvt.s32.f32 %v2964
      %v2973 = vcvt.s32.f32 %v2965
      %v2974 = vcvt.s32.f32 %v2966
      %v2975 = vcvt.s32.f32 %v2967
      %v2976 = vcvt.s32.f32 %v2968
      %v2977 = vmul.f32 %v535, %v2969
      %v2978 = vmul.f32 %v538, %v2970
      %v2979 = vmul.f32 %v541, %v2971
      %v2980 = vmul.f32 %v544, %v2972
      %v2981 = vmul.f32 %v547, %v2973
      %v2982 = vmul.f32 %v550, %v2974
      %v2983 = vmul.f32 %v553, %v2975
      %v2984 = vmul.f32 %v532, %v2976
      %v2985 = vperm.slane %v2194, 7
      %v2986 = vmul.f32 %v2977, %v2985
      %v2987 = vmul.f32 %v2978, %v2985
      %v2988 = vmul.f32 %v2979, %v2985
      %v2989 = vmul.f32 %v2980, %v2985
      %v2990 = vmul.f32 %v2981, %v2985
      %v2991 = vmul.f32 %v2982, %v2985
      %v2992 = vmul.f32 %v2983, %v2985
      %v2993 = vmul.f32 %v2984, %v2985
      %v2994 = vadd.f32 %v2922, %v2986
      %v2995 = vadd.f32 %v2923, %v2987
      %v2996 = vadd.f32 %v2924, %v2988
      %v2997 = vadd.f32 %v2925, %v2989
      %v2998 = vadd.f32 %v2926, %v2990
      %v2999 = vadd.f32 %v2927, %v2991
      %v3000 = vadd.f32 %v2928, %v2992
      %v3001 = vadd.f32 %v2929, %v2993
      %v3002 = vadd.s32 %v2197, 9
      %v3003 = vadd.s32 %v2198, 9
      %v3004 = vadd.s32 %v2199, 9
      %v3005 = vadd.s32 %v2200, 9
      %v3006 = vadd.s32 %v2201, 9
      %v3007 = vadd.s32 %v2202, 9
      %v3008 = vadd.s32 %v2203, 9
      %v3009 = vadd.s32 %v2204, 9
      %vm3010 = vcmp.ge.s32.totalorder %v3002, 0
      %vm3011 = vcmp.ge.s32.totalorder %v3003, 0
      %vm3012 = vcmp.ge.s32.totalorder %v3004, 0
      %vm3013 = vcmp.ge.s32.totalorder %v3005, 0
      %vm3014 = vcmp.ge.s32.totalorder %v3006, 0
      %vm3015 = vcmp.ge.s32.totalorder %v3007, 0
      %vm3016 = vcmp.ge.s32.totalorder %v3008, 0
      %vm3017 = vcmp.ge.s32.totalorder %v3009, 0
      %vm3018 = vcmp.lt.s32.totalorder %v3002, 64
      %vm3019 = vcmp.lt.s32.totalorder %v3003, 64
      %vm3020 = vcmp.lt.s32.totalorder %v3004, 64
      %vm3021 = vcmp.lt.s32.totalorder %v3005, 64
      %vm3022 = vcmp.lt.s32.totalorder %v3006, 64
      %vm3023 = vcmp.lt.s32.totalorder %v3007, 64
      %vm3024 = vcmp.lt.s32.totalorder %v3008, 64
      %vm3025 = vcmp.lt.s32.totalorder %v3009, 64
      %vm3026 = vmand %vm3010, %vm3018
      %vm3027 = vmand %vm3011, %vm3019
      %vm3028 = vmand %vm3012, %vm3020
      %vm3029 = vmand %vm3013, %vm3021
      %vm3030 = vmand %vm3014, %vm3022
      %vm3031 = vmand %vm3015, %vm3023
      %vm3032 = vmand %vm3016, %vm3024
      %vm3033 = vmand %vm3017, %vm3025
      %vm3034 = vmand %vm3026, %vm2573
      %vm3035 = vmand %vm3027, %vm2574
      %vm3036 = vmand %vm3028, %vm2575
      %vm3037 = vmand %vm3029, %vm2576
      %vm3038 = vmand %vm3030, %vm2577
      %vm3039 = vmand %vm3031, %vm2578
      %vm3040 = vmand %vm3032, %vm2579
      %vm3041 = vmand %vm3033, %vm2580
      %vm3042 = vmand %vm3034, %vm2589
      %vm3043 = vmand %vm3035, %vm2590
      %vm3044 = vmand %vm3036, %vm2591
      %vm3045 = vmand %vm3037, %vm2592
      %vm3046 = vmand %vm3038, %vm2593
      %vm3047 = vmand %vm3039, %vm2594
      %vm3048 = vmand %vm3040, %vm2595
      %vm3049 = vmand %vm3041, %vm2596
      %v3050 = vsel %vm3042, 1, 0
      %v3051 = vsel %vm3043, 1, 0
      %v3052 = vsel %vm3044, 1, 0
      %v3053 = vsel %vm3045, 1, 0
      %v3054 = vsel %vm3046, 1, 0
      %v3055 = vsel %vm3047, 1, 0
      %v3056 = vsel %vm3048, 1, 0
      %v3057 = vsel %vm3049, 1, 0
      %v3058 = vcvt.s32.f32 %v3050
      %v3059 = vcvt.s32.f32 %v3051
      %v3060 = vcvt.s32.f32 %v3052
      %v3061 = vcvt.s32.f32 %v3053
      %v3062 = vcvt.s32.f32 %v3054
      %v3063 = vcvt.s32.f32 %v3055
      %v3064 = vcvt.s32.f32 %v3056
      %v3065 = vcvt.s32.f32 %v3057
      %v3066 = vmul.f32 %v2530, %v3058
      %v3067 = vmul.f32 %v2529, %v3059
      %v3068 = vmul.f32 %v2528, %v3060
      %v3069 = vmul.f32 %v2527, %v3061
      %v3070 = vmul.f32 %v2526, %v3062
      %v3071 = vmul.f32 %v2525, %v3063
      %v3072 = vmul.f32 %v2532, %v3064
      %v3073 = vmul.f32 %v2531, %v3065
      %v3074 = vperm.slane %v2195, 0
      %v3075 = vmul.f32 %v3066, %v3074
      %v3076 = vmul.f32 %v3067, %v3074
      %v3077 = vmul.f32 %v3068, %v3074
      %v3078 = vmul.f32 %v3069, %v3074
      %v3079 = vmul.f32 %v3070, %v3074
      %v3080 = vmul.f32 %v3071, %v3074
      %v3081 = vmul.f32 %v3072, %v3074
      %v3082 = vmul.f32 %v3073, %v3074
      %v3083 = vadd.f32 %v2994, %v3075
      %v3084 = vadd.f32 %v2995, %v3076
      %v3085 = vadd.f32 %v2996, %v3077
      %v3086 = vadd.f32 %v2997, %v3078
      %v3087 = vadd.f32 %v2998, %v3079
      %v3088 = vadd.f32 %v2999, %v3080
      %v3089 = vadd.f32 %v3000, %v3081
      %v3090 = vadd.f32 %v3001, %v3082
      %v3091 = vld [vmem:[%s9] sm:$0xff]
      %v3092 = vld [vmem:[%s9 + $0x8] sm:$0xff]
      %v3093 = vld [vmem:[%s9 + $0x10] sm:$0xff]
      %v3094 = vld [vmem:[%s9 + $0x18] sm:$0xff]
      %v3095 = vld [vmem:[%s10] sm:$0x1]
      %v3097 = vperm.slane %v3095, 0
      %v3100 = vsel %vm399, %v3083, 0
      %v3103 = vsel %vm399, %v3084, 0
      %v3106 = vsel %vm399, %v3085, 0
      %v3109 = vsel %vm399, %v3086, 0
      %v3112 = vsel %vm399, %v3087, 0
      %v3115 = vsel %vm399, %v3088, 0
      %v3118 = vsel %vm399, %v3089, 0
      %v3121 = vsel %vm399, %v3090, 0
      %3123 = vmatpush.msra.mxu0 0.0
      %3124 = vmatpush.msra.mxu0 0.0
      %3125 = vmatpush.msra.mxu0 0.0
      %3126 = vmatpush.msra.mxu0 0.0
      %3127 = vmatpush.msra.mxu0 0.0
      %3128 = vmatpush.msra.mxu0 0.0
      %3129 = vmatpush.msra.mxu0 0.0
      %3130 = vmatpush.msra.mxu0 0.0
      %3131 = vmatpush.msra.mxu0 0.0
      %3132 = vmatpush.msra.mxu0 0.0
      %3133 = vmatpush.msra.mxu0 0.0
      %3134 = vmatpush.msra.mxu0 0.0
      %3135 = vmatpush.msra.mxu0 %v3094
      %3136 = vmatpush.msra.mxu0 %v3093
      %3137 = vmatpush.msra.mxu0 %v3092
      %3138 = vmatpush.msra.mxu0 %v3091
      %3139 = vmatmul.f32.gmra.mxu0 %v3100
      %v3140 = vpop.f32.mrf.mxu0
      %v3141 = vadd.f32 %v3097, %v3140
      %3142 = vmatmul.f32.gmra.mxu0 %v3103
      %v3143 = vpop.f32.mrf.mxu0
      %v3144 = vadd.f32 %v3097, %v3143
      %3145 = vmatmul.f32.gmra.mxu0 %v3106
      %v3146 = vpop.f32.mrf.mxu0
      %v3147 = vadd.f32 %v3097, %v3146
      %3148 = vmatmul.f32.gmra.mxu0 %v3109
      %v3149 = vpop.f32.mrf.mxu0
      %v3150 = vadd.f32 %v3097, %v3149
      %3151 = vmatmul.f32.gmra.mxu0 %v3112
      %v3152 = vpop.f32.mrf.mxu0
      %v3153 = vadd.f32 %v3097, %v3152
      %3154 = vmatmul.f32.gmra.mxu0 %v3115
      %v3155 = vpop.f32.mrf.mxu0
      %v3156 = vadd.f32 %v3097, %v3155
      %3157 = vmatmul.f32.gmra.mxu0 %v3118
      %v3158 = vpop.f32.mrf.mxu0
      %v3159 = vadd.f32 %v3097, %v3158
      %3160 = vmatmul.f32.gmra.mxu0 %v3121
      %v3161 = vpop.f32.mrf.mxu0
      %v3162 = vadd.f32 %v3097, %v3161
      %3163 = vdwg.mxu0
      %3164 = vst.msk [vmem:[%s386] sm:$0xff] %vm399, %v3141
      %3165 = vst.msk [vmem:[%s386 + $0x8] sm:$0xff] %vm399, %v3144
      %3166 = vst.msk [vmem:[%s386 + $0x10] sm:$0xff] %vm399, %v3147
      %3167 = vst.msk [vmem:[%s386 + $0x18] sm:$0xff] %vm399, %v3150
      %3168 = vst.msk [vmem:[%s386 + $0x20] sm:$0xff] %vm399, %v3153
      %3169 = vst.msk [vmem:[%s386 + $0x28] sm:$0xff] %vm399, %v3156
      %3170 = vst.msk [vmem:[%s386 + $0x30] sm:$0xff] %vm399, %v3159
      %3171 = vst.msk [vmem:[%s386 + $0x38] sm:$0xff] %vm399, %v3162
      %p3172 = scmp.lt.s32.totalorder %s22, 1
      %s3173 = scalar_select %p3172, %s22, 1
      %s3174 = smul.addr %s3173, 8
      %s3175 = smul.addr %s3174, 8
      %s3176 = scalar_lea.vmem %s11, %s3175
      // Predicated region
      $region65: #{agent_attention_forward.1} parent=63 // pred_check
        %p3177 = pneg %p276
      $region66: #{agent_attention_forward.1} parent=63 // pred_check_branch
        %3179 = sbr.rel (%p3177) target = $region68
      $region67: #{agent_attention_forward.1} parent=63 // pred_region
        _
      $region68: #{agent_attention_forward.1} parent=63 // pred_fallthru
        _
    $region64: #{agent_attention_forward.1} parent=5 // pred_fallthru
      _
    %p3180 = scmp.le.s32.totalorder 2, %s17
    // Predicated region
    $region69: #{agent_attention_forward.1} parent=5 // pred_check
      %p3181 = pneg %p3180
    $region70: #{agent_attention_forward.1} parent=5 // pred_check_branch
      %3183 = sbr.rel (%p3181) target = $region72
    $region71: #{agent_attention_forward.1} parent=5 // pred_region
      %s3184 = ssub.s32 %s17, 2
      // Predicated region
      $region73: #{agent_attention_forward.1} parent=71 // pred_check
        %p3185 = pneg %p282
      $region74: #{agent_attention_forward.1} parent=71 // pred_check_branch
        %3187 = sbr.rel (%p3185) target = $region76
      $region75: #{agent_attention_forward.1} parent=71 // pred_region
        %p3188 = scmp.lt.s32.totalorder %s23, 1
        %s3189 = scalar_select %p3188, %s23, 1
        %s3190 = smul.addr %s3189, 8
        %s3191 = smul.addr %s3190, 8
        %s3192 = scalar_lea.vmem %s11, %s3191
      $region76: #{agent_attention_forward.1} parent=71 // pred_fallthru
        _
    $region72: #{agent_attention_forward.1} parent=5 // pred_fallthru
      _
  $region6: #{agent_attention_forward.1} parent=0 // loop_footer
    %s21 = sadd.s32 1, %s17
  $region7: #{agent_attention_forward.1} parent=0 // loop_footer_branch
    %16 = sbr.rel target = $region3
  $region8: #{agent_attention_forward.1} parent=0 // loop_exit
    _

</llo_original>
